<compile_context>
chip_gen: v5e
topology: v5e:2x2
jax: 0.10.0
libtpu: 0.0.40
codegen_flags: <defaults>
</compile_context>

<pallas_src>
import jax
import jax.numpy as jnp
from jax.experimental import pallas as pl
from jax.experimental.pallas import tpu as pltpu


# ----------------------------------------------------------------------------
# Phase 1 kernel: xyz -> x128; per-core per-segment max accumulation
# ----------------------------------------------------------------------------
def _phase1_kernel(xyz_ref, onehot_ref,
                   w1, b1, w2, b2, w3, b3, w4, b4, w5, b5, w6, b6,
                   x128_ref, gf_ref):
    # gf_ref is this core's resident [B_pad, 1024] partial-max block
    # (constant index along the inner "arbitrary" tile axis).
    @pl.when(pl.program_id(1) == 0)
    def _init():
        # ReLU activations are >= 0, so 0.0 is the identity for this max.
        gf_ref[...] = jnp.zeros_like(gf_ref)

    def lin_relu(x, w_ref, b_ref):
        y = jnp.dot(x.astype(jnp.bfloat16), w_ref[...],
                    preferred_element_type=jnp.float32) + b_ref[...]
        return jnp.maximum(y, 0.0)

    x = xyz_ref[...]                       # [TM, 8] f32 (cols 3..7 zero-padded)
    x = lin_relu(x, w1, b1)                # [TM, 64]
    x = lin_relu(x, w2, b2)                # [TM, 64]
    x128 = lin_relu(x, w3, b3)             # [TM, 128]
    x128 = lin_relu(x128, w4, b4)          # [TM, 128]
    x1024 = lin_relu(x128, w5, b5)         # [TM, 1024]
    x1024 = lin_relu(x1024, w6, b6)        # [TM, 1024]

    x128_ref[...] = x128.astype(jnp.bfloat16)

    # Per-segment masked max for this tile, accumulated directly into the
    # resident gf output block (no scratch, no concat copy).
    onehot = onehot_ref[...]               # [TM, B_pad] f32 0/1
    b_pad = onehot.shape[1]
    for b in range(b_pad):                 # B_pad is small & static
        mask = onehot[:, b:b + 1] > 0.0
        row = jnp.max(jnp.where(mask, x1024, 0.0), axis=0, keepdims=True)  # [1,1024]
        gf_ref[b:b + 1, :] = jnp.maximum(gf_ref[b:b + 1, :], row)


# ----------------------------------------------------------------------------
# Phase 2 kernel: [gf_proj[batch] (+) x128 @ W7b] -> seq3 -> sigmoid
# ----------------------------------------------------------------------------
def _phase2_kernel(x128_ref, onehot_ref, gfp_ref,
                   w7b, b7, w8, b8, w9, b9, w10, b10, w11, b11, w12, b12,
                   w13, b13, w14, b14,
                   out_ref):
    def lin_relu(x, w_ref, b_ref):
        y = jnp.dot(x.astype(jnp.bfloat16), w_ref[...],
                    preferred_element_type=jnp.float32) + b_ref[...]
        return jnp.maximum(y, 0.0)

    x128 = x128_ref[...]                                   # [TM, 128] bf16
    onehot = onehot_ref[...].astype(jnp.bfloat16)          # [TM, B_pad]

    # Hoisted concat layer:
    #   concat([gf[batch], x128]) @ W7  ==  (gf @ W7a)[batch] + x128 @ W7b
    # gf @ W7a is precomputed once in the wrapper; here a single tiny 0/1
    # selection matmul broadcasts the per-segment projection back to points.
    sel = jnp.dot(onehot, gfp_ref[...],
                  preferred_element_type=jnp.float32)      # [TM, 512]
    y = (sel
         + jnp.dot(x128, w7b[...], preferred_element_type=jnp.float32)
         + b7[...])
    y = jnp.maximum(y, 0.0)                                # [TM, 512]

    y = lin_relu(y, w8, b8)                                # [TM, 512]
    y = lin_relu(y, w9, b9)                                # [TM, 256]
    y = lin_relu(y, w10, b10)                              # [TM, 256]
    y = lin_relu(y, w11, b11)                              # [TM, 128]
    y = lin_relu(y, w12, b12)                              # [TM, 128]
    y = lin_relu(y, w13, b13)                              # [TM, 32]

    # Final Linear(32, 3) zero-padded to (32, 128): lane-dense output store.
    y = jnp.dot(y.astype(jnp.bfloat16), w14[...],
                preferred_element_type=jnp.float32) + b14[...]   # [TM, 128]
    out_ref[...] = jax.nn.sigmoid(y)


# ----------------------------------------------------------------------------
# Parameter construction (deterministic, PyTorch-style init), BN folding
# ----------------------------------------------------------------------------
_LAYER_DIMS = [
    (3, 64), (64, 64),            # seq_3_64
    (64, 128),                    # seq_64_128
    (128, 128),                   # seq_128_128
    (128, 1024), (1024, 1024),    # seq_128_1024
    (1152, 512), (512, 512), (512, 256), (256, 256),
    (256, 128), (128, 128), (128, 32), (32, 3),     # seq3
]
_HAS_BN = [True] * 13 + [False]
_BN_EPS = 1e-5


def make_params(key):
    """Deterministic Linear + BatchNorm params, BN (eval mode) folded into Linear."""
    folded = []
    for (fan_in, fan_out), has_bn in zip(_LAYER_DIMS, _HAS_BN):
        key, kw, kb, kg, kbe, km, kv = jax.random.split(key, 7)
        bound = 1.0 / jnp.sqrt(jnp.float32(fan_in))
        w = jax.random.uniform(kw, (fan_in, fan_out), jnp.float32, -bound, bound)
        b = jax.random.uniform(kb, (fan_out,), jnp.float32, -bound, bound)
        if has_bn:
            gamma = 1.0 + 0.05 * jax.random.uniform(kg, (fan_out,), jnp.float32, -1, 1)
            beta = 0.02 * jax.random.uniform(kbe, (fan_out,), jnp.float32, -1, 1)
            run_mean = 0.01 * jax.random.uniform(km, (fan_out,), jnp.float32, -1, 1)
            run_var = 1.0 + 0.1 * jax.random.uniform(kv, (fan_out,), jnp.float32, 0, 1)
            scale = gamma / jnp.sqrt(run_var + _BN_EPS)
            w = w * scale[None, :]
            b = (b - run_mean) * scale + beta
        folded.append((w, b.reshape(1, fan_out)))
    return folded


def prepare_kernel_params(params_f32):
    """Pad / split / bf16-cast the folded params for the two kernel phases."""
    ws = [w for w, _ in params_f32]
    bs = [b for _, b in params_f32]   # each bias is [1, C] f32

    # Pad Linear(3,64) -> (8,64) so the xyz input is [N, 8] (lane/pack friendly).
    w0 = jnp.zeros((8, 64), jnp.float32).at[:3, :].set(ws[0])
    # Split the concat layer's weight: W7a (gf part, hoisted) / W7b (x128 part).
    w7a_f32 = ws[6][:1024, :]          # kept f32: used once in the wrapper
    w7b = ws[6][1024:, :]
    # Pad the final Linear(32,3) -> (32,128) for a lane-dense output store.
    w13 = jnp.zeros((32, 128), jnp.float32).at[:, :3].set(ws[13])
    b13 = jnp.zeros((1, 128), jnp.float32).at[:, :3].set(bs[13])

    bf = lambda a: a.astype(jnp.bfloat16)
    p1_ws = [bf(w0)] + [bf(w) for w in ws[1:6]]
    p1_bs = list(bs[0:6])
    p2_ws = [bf(w7b)] + [bf(w) for w in ws[7:13]] + [bf(w13)]
    p2_bs = list(bs[6:13]) + [b13]
    return p1_ws, p1_bs, w7a_f32, p2_ws, p2_bs


# ----------------------------------------------------------------------------
# Wrapper
# ----------------------------------------------------------------------------
def pointnet_small_forward(x, batch, kparams, num_batches, tm=512, num_cores=2):
    """x: [N, 4] f32, batch: [N] int32 segment ids in [0, num_batches).

    tm: point-row tile (multiple of 8).  num_cores: leading "parallel" grid
    axis for phase 1 (2 shards phase 1 across v7x's TensorCores; harmless
    elsewhere).  N is zero-padded up to a multiple of num_cores * tm.
    """
    assert tm % 8 == 0
    p1_ws, p1_bs, w7a_f32, p2_ws, p2_bs = kparams
    n = x.shape[0]
    span = num_cores * tm
    n_pad = -(-n // span) * span
    b_pad = -(-num_batches // 8) * 8
    tiles_per_core = n_pad // span
    num_tiles = n_pad // tm

    # Lane/pack-friendly padded inputs (padded rows have all-zero one-hot, so
    # they never contribute to the segment max and their outputs are sliced off).
    xyz = jnp.zeros((n_pad, 8), jnp.float32).at[:n, :3].set(x[:, :3])
    onehot_core = (batch[:, None] ==
                   jnp.arange(num_batches, dtype=batch.dtype)[None, :]).astype(jnp.float32)
    onehot = jnp.zeros((n_pad, b_pad), jnp.float32).at[:n, :num_batches].set(onehot_core)

    vmem_cap = 48 << 20  # <= 64 MiB physical on v7x, leaves double-buffer headroom

    # ---------------- phase 1 ----------------
    p1_params = []
    for w, b in zip(p1_ws, p1_bs):
        p1_params += [w, b]

    def p1_row_spec(c):
        return pl.BlockSpec((tm, c), lambda ci, ti: (ci * tiles_per_core + ti, 0))

    def p1_const_spec(p):
        return pl.BlockSpec(p.shape, lambda ci, ti: (0, 0))

    x128, gf_parts = pl.pallas_call(
        _phase1_kernel,
        grid=(num_cores, tiles_per_core),
        in_specs=[p1_row_spec(8), p1_row_spec(b_pad)]
                 + [p1_const_spec(p) for p in p1_params],
        out_specs=(p1_row_spec(128),
                   pl.BlockSpec((None, b_pad, 1024), lambda ci, ti: (ci, 0, 0))),
        out_shape=(jax.ShapeDtypeStruct((n_pad, 128), jnp.bfloat16),
                   jax.ShapeDtypeStruct((num_cores, b_pad, 1024), jnp.float32)),
        compiler_params=pltpu.CompilerParams(
            dimension_semantics=("parallel", "arbitrary"),
            vmem_limit_bytes=vmem_cap),
    )(xyz, onehot, *p1_params)

    # Combine per-core partial maxima (tiny) and hoist the gf @ W7a contraction
    # out of the per-tile loop: done once here in f32, consumed in phase 2 via
    # an exact 0/1 selection matmul.
    gf = jnp.max(gf_parts, axis=0)                               # [B_pad, 1024]
    gf_proj = jnp.dot(gf, w7a_f32).astype(jnp.bfloat16)          # [B_pad, 512]

    # ---------------- phase 2 ----------------
    p2_params = []
    for w, b in zip(p2_ws, p2_bs):
        p2_params += [w, b]

    def p2_row_spec(c):
        return pl.BlockSpec((tm, c), lambda i: (i, 0))

    def p2_const_spec(p):
        return pl.BlockSpec(p.shape, lambda i: (0, 0))

    out_pad = pl.pallas_call(
        _phase2_kernel,
        grid=(num_tiles,),
        in_specs=[p2_row_spec(128), p2_row_spec(b_pad), p2_const_spec(gf_proj)]
                 + [p2_const_spec(p) for p in p2_params],
        out_specs=p2_row_spec(128),
        out_shape=jax.ShapeDtypeStruct((n_pad, 128), jnp.float32),
        compiler_params=pltpu.CompilerParams(
            dimension_semantics=("parallel",),    # point tiles shard across TCs
            vmem_limit_bytes=vmem_cap),
    )(x128, onehot, gf_proj, *p2_params)

    return out_pad[:n, :3]


# ----------------------------------------------------------------------------
# Pure-JAX references
# ----------------------------------------------------------------------------
def reference_forward_f32(x, batch, params, num_batches):
    """Module semantics in full f32 (matches the PyTorch eval-mode forward)."""
    xyz = x[:, :3]
    ws = [p[0] for p in params]
    bs = [p[1] for p in params]

    def lr(a, i):
        return jnp.maximum(a @ ws[i] + bs[i], 0.0)

    h = lr(lr(xyz, 0), 1)
    x128 = lr(lr(h, 2), 3)
    x1024 = lr(lr(x128, 4), 5)
    gf = jax.ops.segment_max(x1024, batch, num_segments=num_batches)
    y = jnp.concatenate([gf[batch], x128], axis=1)
    for i in range(6, 13):
        y = lr(y, i)
    y = y @ ws[13] + bs[13]
    return jax.nn.sigmoid(y)


def reference_forward_bf16(x, batch, params, num_batches):
    """Same numerics as the kernel path: bf16 matmul operands, f32 accumulation,
    gf @ W7a hoisted in f32 then cast to bf16 before the 0/1 selection."""
    ws = [p[0].astype(jnp.bfloat16) for p in params]
    bs = [p[1] for p in params]
    w7a_f32 = params[6][0][:1024, :]

    def lr(a, i):
        y = jnp.dot(a.astype(jnp.bfloat16), ws[i],
                    preferred_element_type=jnp.float32) + bs[i]
        return jnp.maximum(y, 0.0)

    xyz = x[:, :3]
    h = lr(lr(xyz, 0), 1)
    x128 = lr(lr(h, 2), 3)
    x128_bf16 = x128.astype(jnp.bfloat16)   # kernel stores x128 as bf16
    x1024 = lr(lr(x128, 4), 5)
    gf = jax.ops.segment_max(x1024, batch, num_segments=num_batches)
    gf_proj = jnp.dot(gf, w7a_f32).astype(jnp.bfloat16).astype(jnp.float32)
    w7b = ws[6][1024:, :]
    y = (gf_proj[batch]
         + jnp.dot(x128_bf16, w7b, preferred_element_type=jnp.float32)
         + bs[6])
    y = jnp.maximum(y, 0.0)
    for i in range(7, 13):
        y = lr(y, i)
    y = jnp.dot(y.astype(jnp.bfloat16), ws[13],
                preferred_element_type=jnp.float32) + bs[13]
    return jax.nn.sigmoid(y)


# ----------------------------------------------------------------------------
if __name__ == "__main__":
    key = jax.random.PRNGKey(0)
    k_params, k_x = jax.random.split(key)

    N, B = 64, 2  # 64 points total, 2 point clouds of 32 points each
    x = jax.random.normal(k_x, (N, 4), dtype=jnp.float32)
    batch = jnp.repeat(jnp.arange(B, dtype=jnp.int32), N // B)

    params = make_params(k_params)
    kparams = prepare_kernel_params(params)

    # tm=16, num_cores=2 -> phase-1 grid is (2 cores x 2 tiles): both the
    # cross-tile segment-max accumulation and the cross-core partial combine
    # are exercised even at this tiny test size.
    out = pointnet_small_forward(x, batch, kparams, B, tm=16, num_cores=2)
    out = jax.block_until_ready(out)

    ref_bf16 = jax.block_until_ready(reference_forward_bf16(x, batch, params, B))
    ref_f32 = jax.block_until_ready(reference_forward_f32(x, batch, params, B))

    assert out.shape == (N, 3), out.shape
    assert bool(jnp.all(jnp.isfinite(out)))
    # Tight check vs the numerics-matched (bf16 matmul / f32 accum) reference.
    assert bool(jnp.allclose(out, ref_bf16, atol=5e-3, rtol=5e-3)), (
        float(jnp.max(jnp.abs(out - ref_bf16))))
    # Looser semantic check vs the full-f32 module reference.
    assert bool(jnp.allclose(out, ref_f32, atol=5e-2, rtol=5e-2)), (
        float(jnp.max(jnp.abs(out - ref_f32))))

    print("KERNEL_OK")
</pallas_src>

<mosaic_0001>
module attributes {stable_mosaic.version = 11 : i64} {
  func.func @_phase1_kernel(%arg0: i32, %arg1: i32, %arg2: memref<16x8xf32, #tpu.memory_space<vmem>>, %arg3: memref<16x8xf32, #tpu.memory_space<vmem>>, %arg4: memref<8x64xbf16, #tpu.memory_space<vmem>>, %arg5: memref<1x64xf32, #tpu.memory_space<vmem>>, %arg6: memref<64x64xbf16, #tpu.memory_space<vmem>>, %arg7: memref<1x64xf32, #tpu.memory_space<vmem>>, %arg8: memref<64x128xbf16, #tpu.memory_space<vmem>>, %arg9: memref<1x128xf32, #tpu.memory_space<vmem>>, %arg10: memref<128x128xbf16, #tpu.memory_space<vmem>>, %arg11: memref<1x128xf32, #tpu.memory_space<vmem>>, %arg12: memref<128x1024xbf16, #tpu.memory_space<vmem>>, %arg13: memref<1x1024xf32, #tpu.memory_space<vmem>>, %arg14: memref<1024x1024xbf16, #tpu.memory_space<vmem>>, %arg15: memref<1x1024xf32, #tpu.memory_space<vmem>>, %arg16: memref<16x128xbf16, #tpu.memory_space<vmem>>, %arg17: memref<1x8x1024xf32, #tpu.memory_space<vmem>>) attributes {dimension_semantics = [#tpu.dimension_semantics<parallel>, #tpu.dimension_semantics<arbitrary>], iteration_bounds = array<i64: 2, 2>, scalar_prefetch = 0 : i64, scratch_operands = 0 : i64, tpu.core_type = #tpu.core_type<tc>, window_params = [{transform_indices = @transform_0, window_bounds = array<i64: 16, 8>}, {transform_indices = @transform_1, window_bounds = array<i64: 16, 8>}, {pipeline_mode = #tpu.pipeline_mode<synchronous>, transform_indices = @transform_2, window_bounds = array<i64: 8, 64>}, {pipeline_mode = #tpu.pipeline_mode<synchronous>, transform_indices = @transform_3, window_bounds = array<i64: 1, 64>}, {pipeline_mode = #tpu.pipeline_mode<synchronous>, transform_indices = @transform_4, window_bounds = array<i64: 64, 64>}, {pipeline_mode = #tpu.pipeline_mode<synchronous>, transform_indices = @transform_5, window_bounds = array<i64: 1, 64>}, {pipeline_mode = #tpu.pipeline_mode<synchronous>, transform_indices = @transform_6, window_bounds = array<i64: 64, 128>}, {pipeline_mode = #tpu.pipeline_mode<synchronous>, transform_indices = @transform_7, window_bounds = array<i64: 1, 128>}, {pipeline_mode = #tpu.pipeline_mode<synchronous>, transform_indices = @transform_8, window_bounds = array<i64: 128, 128>}, {pipeline_mode = #tpu.pipeline_mode<synchronous>, transform_indices = @transform_9, window_bounds = array<i64: 1, 128>}, {pipeline_mode = #tpu.pipeline_mode<synchronous>, transform_indices = @transform_10, window_bounds = array<i64: 128, 1024>}, {pipeline_mode = #tpu.pipeline_mode<synchronous>, transform_indices = @transform_11, window_bounds = array<i64: 1, 1024>}, {pipeline_mode = #tpu.pipeline_mode<synchronous>, transform_indices = @transform_12, window_bounds = array<i64: 1024, 1024>}, {pipeline_mode = #tpu.pipeline_mode<synchronous>, transform_indices = @transform_13, window_bounds = array<i64: 1, 1024>}, {transform_indices = @transform_14, window_bounds = array<i64: 16, 128>}, {transform_indices = @transform_15, window_bounds = array<i64: 1, 8, 1024>}]} {
    %c0_i32 = arith.constant 0 : i32
    %0 = arith.cmpi eq, %arg1, %c0_i32 : i32
    %1 = arith.extui %0 : i1 to i32
    %c0_i32_0 = arith.constant 0 : i32
    %2 = arith.cmpi ne, %1, %c0_i32_0 : i32
    scf.if %2 {
      %cst_106 = arith.constant 0.000000e+00 : f32
      %175 = vector.broadcast %cst_106 : f32 to vector<8x1024xf32>
      %c0_107 = arith.constant 0 : index
      %c0_108 = arith.constant 0 : index
      %c0_109 = arith.constant 0 : index
      %176 = vector.load %arg17[%c0_107, %c0_108, %c0_109] : memref<1x8x1024xf32, #tpu.memory_space<vmem>>, vector<1x8x1024xf32>
      %177 = vector.shape_cast %176 : vector<1x8x1024xf32> to vector<8x1024xf32>
      %178 = vector.shape_cast %175 : vector<8x1024xf32> to vector<1x8x1024xf32>
      tpu.vector_store %arg17[%c0_107, %c0_108, %c0_109], %178 {strides = array<i32>} : memref<1x8x1024xf32, #tpu.memory_space<vmem>>, vector<1x8x1024xf32>,
    } else {
    }
    %c0 = arith.constant 0 : index
    %c0_1 = arith.constant 0 : index
    %3 = vector.load %arg2[%c0, %c0_1] : memref<16x8xf32, #tpu.memory_space<vmem>>, vector<16x8xf32>
    %4 = arith.truncf %3 : vector<16x8xf32> to vector<16x8xbf16>
    %c0_2 = arith.constant 0 : index
    %c0_3 = arith.constant 0 : index
    %5 = vector.load %arg4[%c0_2, %c0_3] : memref<8x64xbf16, #tpu.memory_space<vmem>>, vector<8x64xbf16>
    %cst = arith.constant dense<0.000000e+00> : vector<16x64xf32>
    %6 = tpu.matmul %4, %5, %cst {dimension_numbers = #tpu.dot_dimension_numbers<[1], [0], [0], [1], [0, 0, 1, 1], [], []>} : vector<16x8xbf16>, vector<8x64xbf16>, vector<16x64xf32> -> vector<16x64xf32>
    %c0_4 = arith.constant 0 : index
    %c0_5 = arith.constant 0 : index
    %7 = vector.load %arg5[%c0_4, %c0_5] : memref<1x64xf32, #tpu.memory_space<vmem>>, vector<1x64xf32>
    %8 = vector.broadcast %7 : vector<1x64xf32> to vector<16x64xf32>
    %9 = arith.addf %6, %8 : vector<16x64xf32>
    %cst_6 = arith.constant 0.000000e+00 : f32
    %10 = vector.broadcast %cst_6 : f32 to vector<16x64xf32>
    %11 = arith.maximumf %9, %10 : vector<16x64xf32>
    %12 = arith.truncf %11 : vector<16x64xf32> to vector<16x64xbf16>
    %c0_7 = arith.constant 0 : index
    %c0_8 = arith.constant 0 : index
    %13 = vector.load %arg6[%c0_7, %c0_8] : memref<64x64xbf16, #tpu.memory_space<vmem>>, vector<64x64xbf16>
    %cst_9 = arith.constant dense<0.000000e+00> : vector<16x64xf32>
    %14 = tpu.matmul %12, %13, %cst_9 {dimension_numbers = #tpu.dot_dimension_numbers<[1], [0], [0], [1], [0, 0, 1, 1], [], []>} : vector<16x64xbf16>, vector<64x64xbf16>, vector<16x64xf32> -> vector<16x64xf32>
    %c0_10 = arith.constant 0 : index
    %c0_11 = arith.constant 0 : index
    %15 = vector.load %arg7[%c0_10, %c0_11] : memref<1x64xf32, #tpu.memory_space<vmem>>, vector<1x64xf32>
    %16 = vector.broadcast %15 : vector<1x64xf32> to vector<16x64xf32>
    %17 = arith.addf %14, %16 : vector<16x64xf32>
    %cst_12 = arith.constant 0.000000e+00 : f32
    %18 = vector.broadcast %cst_12 : f32 to vector<16x64xf32>
    %19 = arith.maximumf %17, %18 : vector<16x64xf32>
    %20 = arith.truncf %19 : vector<16x64xf32> to vector<16x64xbf16>
    %c0_13 = arith.constant 0 : index
    %c0_14 = arith.constant 0 : index
    %21 = vector.load %arg8[%c0_13, %c0_14] : memref<64x128xbf16, #tpu.memory_space<vmem>>, vector<64x128xbf16>
    %cst_15 = arith.constant dense<0.000000e+00> : vector<16x128xf32>
    %22 = tpu.matmul %20, %21, %cst_15 {dimension_numbers = #tpu.dot_dimension_numbers<[1], [0], [0], [1], [0, 0, 1, 1], [], []>} : vector<16x64xbf16>, vector<64x128xbf16>, vector<16x128xf32> -> vector<16x128xf32>
    %c0_16 = arith.constant 0 : index
    %c0_17 = arith.constant 0 : index
    %23 = vector.load %arg9[%c0_16, %c0_17] : memref<1x128xf32, #tpu.memory_space<vmem>>, vector<1x128xf32>
    %24 = vector.broadcast %23 : vector<1x128xf32> to vector<16x128xf32>
    %25 = arith.addf %22, %24 : vector<16x128xf32>
    %cst_18 = arith.constant 0.000000e+00 : f32
    %26 = vector.broadcast %cst_18 : f32 to vector<16x128xf32>
    %27 = arith.maximumf %25, %26 : vector<16x128xf32>
    %28 = arith.truncf %27 : vector<16x128xf32> to vector<16x128xbf16>
    %c0_19 = arith.constant 0 : index
    %c0_20 = arith.constant 0 : index
    %29 = vector.load %arg10[%c0_19, %c0_20] : memref<128x128xbf16, #tpu.memory_space<vmem>>, vector<128x128xbf16>
    %cst_21 = arith.constant dense<0.000000e+00> : vector<16x128xf32>
    %30 = tpu.matmul %28, %29, %cst_21 {dimension_numbers = #tpu.dot_dimension_numbers<[1], [0], [0], [1], [0, 0, 1, 1], [], []>} : vector<16x128xbf16>, vector<128x128xbf16>, vector<16x128xf32> -> vector<16x128xf32>
    %c0_22 = arith.constant 0 : index
    %c0_23 = arith.constant 0 : index
    %31 = vector.load %arg11[%c0_22, %c0_23] : memref<1x128xf32, #tpu.memory_space<vmem>>, vector<1x128xf32>
    %32 = vector.broadcast %31 : vector<1x128xf32> to vector<16x128xf32>
    %33 = arith.addf %30, %32 : vector<16x128xf32>
    %cst_24 = arith.constant 0.000000e+00 : f32
    %34 = vector.broadcast %cst_24 : f32 to vector<16x128xf32>
    %35 = arith.maximumf %33, %34 : vector<16x128xf32>
    %36 = arith.truncf %35 : vector<16x128xf32> to vector<16x128xbf16>
    %c0_25 = arith.constant 0 : index
    %c0_26 = arith.constant 0 : index
    %37 = vector.load %arg12[%c0_25, %c0_26] : memref<128x1024xbf16, #tpu.memory_space<vmem>>, vector<128x1024xbf16>
    %cst_27 = arith.constant dense<0.000000e+00> : vector<16x1024xf32>
    %38 = tpu.matmul %36, %37, %cst_27 {dimension_numbers = #tpu.dot_dimension_numbers<[1], [0], [0], [1], [0, 0, 1, 1], [], []>} : vector<16x128xbf16>, vector<128x1024xbf16>, vector<16x1024xf32> -> vector<16x1024xf32>
    %c0_28 = arith.constant 0 : index
    %c0_29 = arith.constant 0 : index
    %39 = vector.load %arg13[%c0_28, %c0_29] : memref<1x1024xf32, #tpu.memory_space<vmem>>, vector<1x1024xf32>
    %40 = vector.broadcast %39 : vector<1x1024xf32> to vector<16x1024xf32>
    %41 = arith.addf %38, %40 : vector<16x1024xf32>
    %cst_30 = arith.constant 0.000000e+00 : f32
    %42 = vector.broadcast %cst_30 : f32 to vector<16x1024xf32>
    %43 = arith.maximumf %41, %42 : vector<16x1024xf32>
    %44 = arith.truncf %43 : vector<16x1024xf32> to vector<16x1024xbf16>
    %c0_31 = arith.constant 0 : index
    %c0_32 = arith.constant 0 : index
    %45 = vector.load %arg14[%c0_31, %c0_32] : memref<1024x1024xbf16, #tpu.memory_space<vmem>>, vector<1024x1024xbf16>
    %cst_33 = arith.constant dense<0.000000e+00> : vector<16x1024xf32>
    %46 = tpu.matmul %44, %45, %cst_33 {dimension_numbers = #tpu.dot_dimension_numbers<[1], [0], [0], [1], [0, 0, 1, 1], [], []>} : vector<16x1024xbf16>, vector<1024x1024xbf16>, vector<16x1024xf32> -> vector<16x1024xf32>
    %c0_34 = arith.constant 0 : index
    %c0_35 = arith.constant 0 : index
    %47 = vector.load %arg15[%c0_34, %c0_35] : memref<1x1024xf32, #tpu.memory_space<vmem>>, vector<1x1024xf32>
    %48 = vector.broadcast %47 : vector<1x1024xf32> to vector<16x1024xf32>
    %49 = arith.addf %46, %48 : vector<16x1024xf32>
    %cst_36 = arith.constant 0.000000e+00 : f32
    %50 = vector.broadcast %cst_36 : f32 to vector<16x1024xf32>
    %51 = arith.maximumf %49, %50 : vector<16x1024xf32>
    %52 = arith.truncf %35 : vector<16x128xf32> to vector<16x128xbf16>
    %c0_37 = arith.constant 0 : index
    %c0_38 = arith.constant 0 : index
    %53 = vector.load %arg16[%c0_37, %c0_38] : memref<16x128xbf16, #tpu.memory_space<vmem>>, vector<16x128xbf16>
    tpu.vector_store %arg16[%c0_37, %c0_38], %52 {strides = array<i32>} : memref<16x128xbf16, #tpu.memory_space<vmem>>, vector<16x128xbf16>,
    %c0_39 = arith.constant 0 : index
    %c0_40 = arith.constant 0 : index
    %54 = vector.load %arg3[%c0_39, %c0_40] : memref<16x8xf32, #tpu.memory_space<vmem>>, vector<16x8xf32>
    %55 = vector.extract_strided_slice %54 {offsets = [0, 0], sizes = [16, 1], strides = [1, 1]} : vector<16x8xf32> to vector<16x1xf32>
    %cst_41 = arith.constant 0.000000e+00 : f32
    %56 = vector.broadcast %cst_41 : f32 to vector<16x1xf32>
    %57 = arith.cmpf ogt, %55, %56 : vector<16x1xf32>
    %cst_42 = arith.constant 0.000000e+00 : f32
    %58 = vector.shape_cast %57 : vector<16x1xi1> to vector<16x1xi1>
    %59 = vector.broadcast %58 : vector<16x1xi1> to vector<16x1024xi1>
    %60 = vector.broadcast %cst_42 : f32 to vector<16x1024xf32>
    %61 = arith.select %59, %51, %60 : vector<16x1024xi1>, vector<16x1024xf32>
    %cst_43 = arith.constant dense<0xFF800000> : vector<1024xf32>
    %62 = vector.multi_reduction <maximumf>, %61, %cst_43 [0] : vector<16x1024xf32> to vector<1024xf32>
    %63 = vector.shape_cast %62 : vector<1024xf32> to vector<1x1024xf32>
    %c0_44 = arith.constant 0 : index
    %c0_45 = arith.constant 0 : index
    %c0_46 = arith.constant 0 : index
    %64 = vector.load %arg17[%c0_44, %c0_45, %c0_46] : memref<1x8x1024xf32, #tpu.memory_space<vmem>>, vector<1x1x1024xf32>
    %65 = vector.shape_cast %64 : vector<1x1x1024xf32> to vector<1x1024xf32>
    %66 = arith.maximumf %65, %63 : vector<1x1024xf32>
    %c0_47 = arith.constant 0 : index
    %c0_48 = arith.constant 0 : index
    %c0_49 = arith.constant 0 : index
    %67 = vector.load %arg17[%c0_47, %c0_48, %c0_49] : memref<1x8x1024xf32, #tpu.memory_space<vmem>>, vector<1x1x1024xf32>
    %68 = vector.shape_cast %67 : vector<1x1x1024xf32> to vector<1x1024xf32>
    %69 = vector.shape_cast %66 : vector<1x1024xf32> to vector<1x1x1024xf32>
    tpu.vector_store %arg17[%c0_47, %c0_48, %c0_49], %69 {strides = array<i32>} : memref<1x8x1024xf32, #tpu.memory_space<vmem>>, vector<1x1x1024xf32>,
    %70 = vector.extract_strided_slice %54 {offsets = [0, 1], sizes = [16, 1], strides = [1, 1]} : vector<16x8xf32> to vector<16x1xf32>
    %cst_50 = arith.constant 0.000000e+00 : f32
    %71 = vector.broadcast %cst_50 : f32 to vector<16x1xf32>
    %72 = arith.cmpf ogt, %70, %71 : vector<16x1xf32>
    %cst_51 = arith.constant 0.000000e+00 : f32
    %73 = vector.shape_cast %72 : vector<16x1xi1> to vector<16x1xi1>
    %74 = vector.broadcast %73 : vector<16x1xi1> to vector<16x1024xi1>
    %75 = vector.broadcast %cst_51 : f32 to vector<16x1024xf32>
    %76 = arith.select %74, %51, %75 : vector<16x1024xi1>, vector<16x1024xf32>
    %cst_52 = arith.constant dense<0xFF800000> : vector<1024xf32>
    %77 = vector.multi_reduction <maximumf>, %76, %cst_52 [0] : vector<16x1024xf32> to vector<1024xf32>
    %78 = vector.shape_cast %77 : vector<1024xf32> to vector<1x1024xf32>
    %c0_53 = arith.constant 0 : index
    %c1 = arith.constant 1 : index
    %c0_54 = arith.constant 0 : index
    %79 = vector.load %arg17[%c0_53, %c1, %c0_54] : memref<1x8x1024xf32, #tpu.memory_space<vmem>>, vector<1x1x1024xf32>
    %80 = vector.shape_cast %79 : vector<1x1x1024xf32> to vector<1x1024xf32>
    %81 = arith.maximumf %80, %78 : vector<1x1024xf32>
    %c0_55 = arith.constant 0 : index
    %c1_56 = arith.constant 1 : index
    %c0_57 = arith.constant 0 : index
    %82 = vector.load %arg17[%c0_55, %c1_56, %c0_57] : memref<1x8x1024xf32, #tpu.memory_space<vmem>>, vector<1x1x1024xf32>
    %83 = vector.shape_cast %82 : vector<1x1x1024xf32> to vector<1x1024xf32>
    %84 = vector.shape_cast %81 : vector<1x1024xf32> to vector<1x1x1024xf32>
    tpu.vector_store %arg17[%c0_55, %c1_56, %c0_57], %84 {strides = array<i32>} : memref<1x8x1024xf32, #tpu.memory_space<vmem>>, vector<1x1x1024xf32>,
    %85 = vector.extract_strided_slice %54 {offsets = [0, 2], sizes = [16, 1], strides = [1, 1]} : vector<16x8xf32> to vector<16x1xf32>
    %cst_58 = arith.constant 0.000000e+00 : f32
    %86 = vector.broadcast %cst_58 : f32 to vector<16x1xf32>
    %87 = arith.cmpf ogt, %85, %86 : vector<16x1xf32>
    %cst_59 = arith.constant 0.000000e+00 : f32
    %88 = vector.shape_cast %87 : vector<16x1xi1> to vector<16x1xi1>
    %89 = vector.broadcast %88 : vector<16x1xi1> to vector<16x1024xi1>
    %90 = vector.broadcast %cst_59 : f32 to vector<16x1024xf32>
    %91 = arith.select %89, %51, %90 : vector<16x1024xi1>, vector<16x1024xf32>
    %cst_60 = arith.constant dense<0xFF800000> : vector<1024xf32>
    %92 = vector.multi_reduction <maximumf>, %91, %cst_60 [0] : vector<16x1024xf32> to vector<1024xf32>
    %93 = vector.shape_cast %92 : vector<1024xf32> to vector<1x1024xf32>
    %c0_61 = arith.constant 0 : index
    %c2 = arith.constant 2 : index
    %c0_62 = arith.constant 0 : index
    %94 = vector.load %arg17[%c0_61, %c2, %c0_62] : memref<1x8x1024xf32, #tpu.memory_space<vmem>>, vector<1x1x1024xf32>
    %95 = vector.shape_cast %94 : vector<1x1x1024xf32> to vector<1x1024xf32>
    %96 = arith.maximumf %95, %93 : vector<1x1024xf32>
    %c0_63 = arith.constant 0 : index
    %c2_64 = arith.constant 2 : index
    %c0_65 = arith.constant 0 : index
    %97 = vector.load %arg17[%c0_63, %c2_64, %c0_65] : memref<1x8x1024xf32, #tpu.memory_space<vmem>>, vector<1x1x1024xf32>
    %98 = vector.shape_cast %97 : vector<1x1x1024xf32> to vector<1x1024xf32>
    %99 = vector.shape_cast %96 : vector<1x1024xf32> to vector<1x1x1024xf32>
    tpu.vector_store %arg17[%c0_63, %c2_64, %c0_65], %99 {strides = array<i32>} : memref<1x8x1024xf32, #tpu.memory_space<vmem>>, vector<1x1x1024xf32>,
    %100 = vector.extract_strided_slice %54 {offsets = [0, 3], sizes = [16, 1], strides = [1, 1]} : vector<16x8xf32> to vector<16x1xf32>
    %cst_66 = arith.constant 0.000000e+00 : f32
    %101 = vector.broadcast %cst_66 : f32 to vector<16x1xf32>
    %102 = arith.cmpf ogt, %100, %101 : vector<16x1xf32>
    %cst_67 = arith.constant 0.000000e+00 : f32
    %103 = vector.shape_cast %102 : vector<16x1xi1> to vector<16x1xi1>
    %104 = vector.broadcast %103 : vector<16x1xi1> to vector<16x1024xi1>
    %105 = vector.broadcast %cst_67 : f32 to vector<16x1024xf32>
    %106 = arith.select %104, %51, %105 : vector<16x1024xi1>, vector<16x1024xf32>
    %cst_68 = arith.constant dense<0xFF800000> : vector<1024xf32>
    %107 = vector.multi_reduction <maximumf>, %106, %cst_68 [0] : vector<16x1024xf32> to vector<1024xf32>
    %108 = vector.shape_cast %107 : vector<1024xf32> to vector<1x1024xf32>
    %c0_69 = arith.constant 0 : index
    %c3 = arith.constant 3 : index
    %c0_70 = arith.constant 0 : index
    %109 = vector.load %arg17[%c0_69, %c3, %c0_70] : memref<1x8x1024xf32, #tpu.memory_space<vmem>>, vector<1x1x1024xf32>
    %110 = vector.shape_cast %109 : vector<1x1x1024xf32> to vector<1x1024xf32>
    %111 = arith.maximumf %110, %108 : vector<1x1024xf32>
    %c0_71 = arith.constant 0 : index
    %c3_72 = arith.constant 3 : index
    %c0_73 = arith.constant 0 : index
    %112 = vector.load %arg17[%c0_71, %c3_72, %c0_73] : memref<1x8x1024xf32, #tpu.memory_space<vmem>>, vector<1x1x1024xf32>
    %113 = vector.shape_cast %112 : vector<1x1x1024xf32> to vector<1x1024xf32>
    %114 = vector.shape_cast %111 : vector<1x1024xf32> to vector<1x1x1024xf32>
    tpu.vector_store %arg17[%c0_71, %c3_72, %c0_73], %114 {strides = array<i32>} : memref<1x8x1024xf32, #tpu.memory_space<vmem>>, vector<1x1x1024xf32>,
    %115 = vector.extract_strided_slice %54 {offsets = [0, 4], sizes = [16, 1], strides = [1, 1]} : vector<16x8xf32> to vector<16x1xf32>
    %cst_74 = arith.constant 0.000000e+00 : f32
    %116 = vector.broadcast %cst_74 : f32 to vector<16x1xf32>
    %117 = arith.cmpf ogt, %115, %116 : vector<16x1xf32>
    %cst_75 = arith.constant 0.000000e+00 : f32
    %118 = vector.shape_cast %117 : vector<16x1xi1> to vector<16x1xi1>
    %119 = vector.broadcast %118 : vector<16x1xi1> to vector<16x1024xi1>
    %120 = vector.broadcast %cst_75 : f32 to vector<16x1024xf32>
    %121 = arith.select %119, %51, %120 : vector<16x1024xi1>, vector<16x1024xf32>
    %cst_76 = arith.constant dense<0xFF800000> : vector<1024xf32>
    %122 = vector.multi_reduction <maximumf>, %121, %cst_76 [0] : vector<16x1024xf32> to vector<1024xf32>
    %123 = vector.shape_cast %122 : vector<1024xf32> to vector<1x1024xf32>
    %c0_77 = arith.constant 0 : index
    %c4 = arith.constant 4 : index
    %c0_78 = arith.constant 0 : index
    %124 = vector.load %arg17[%c0_77, %c4, %c0_78] : memref<1x8x1024xf32, #tpu.memory_space<vmem>>, vector<1x1x1024xf32>
    %125 = vector.shape_cast %124 : vector<1x1x1024xf32> to vector<1x1024xf32>
    %126 = arith.maximumf %125, %123 : vector<1x1024xf32>
    %c0_79 = arith.constant 0 : index
    %c4_80 = arith.constant 4 : index
    %c0_81 = arith.constant 0 : index
    %127 = vector.load %arg17[%c0_79, %c4_80, %c0_81] : memref<1x8x1024xf32, #tpu.memory_space<vmem>>, vector<1x1x1024xf32>
    %128 = vector.shape_cast %127 : vector<1x1x1024xf32> to vector<1x1024xf32>
    %129 = vector.shape_cast %126 : vector<1x1024xf32> to vector<1x1x1024xf32>
    tpu.vector_store %arg17[%c0_79, %c4_80, %c0_81], %129 {strides = array<i32>} : memref<1x8x1024xf32, #tpu.memory_space<vmem>>, vector<1x1x1024xf32>,
    %130 = vector.extract_strided_slice %54 {offsets = [0, 5], sizes = [16, 1], strides = [1, 1]} : vector<16x8xf32> to vector<16x1xf32>
    %cst_82 = arith.constant 0.000000e+00 : f32
    %131 = vector.broadcast %cst_82 : f32 to vector<16x1xf32>
    %132 = arith.cmpf ogt, %130, %131 : vector<16x1xf32>
    %cst_83 = arith.constant 0.000000e+00 : f32
    %133 = vector.shape_cast %132 : vector<16x1xi1> to vector<16x1xi1>
    %134 = vector.broadcast %133 : vector<16x1xi1> to vector<16x1024xi1>
    %135 = vector.broadcast %cst_83 : f32 to vector<16x1024xf32>
    %136 = arith.select %134, %51, %135 : vector<16x1024xi1>, vector<16x1024xf32>
    %cst_84 = arith.constant dense<0xFF800000> : vector<1024xf32>
    %137 = vector.multi_reduction <maximumf>, %136, %cst_84 [0] : vector<16x1024xf32> to vector<1024xf32>
    %138 = vector.shape_cast %137 : vector<1024xf32> to vector<1x1024xf32>
    %c0_85 = arith.constant 0 : index
    %c5 = arith.constant 5 : index
    %c0_86 = arith.constant 0 : index
    %139 = vector.load %arg17[%c0_85, %c5, %c0_86] : memref<1x8x1024xf32, #tpu.memory_space<vmem>>, vector<1x1x1024xf32>
    %140 = vector.shape_cast %139 : vector<1x1x1024xf32> to vector<1x1024xf32>
    %141 = arith.maximumf %140, %138 : vector<1x1024xf32>
    %c0_87 = arith.constant 0 : index
    %c5_88 = arith.constant 5 : index
    %c0_89 = arith.constant 0 : index
    %142 = vector.load %arg17[%c0_87, %c5_88, %c0_89] : memref<1x8x1024xf32, #tpu.memory_space<vmem>>, vector<1x1x1024xf32>
    %143 = vector.shape_cast %142 : vector<1x1x1024xf32> to vector<1x1024xf32>
    %144 = vector.shape_cast %141 : vector<1x1024xf32> to vector<1x1x1024xf32>
    tpu.vector_store %arg17[%c0_87, %c5_88, %c0_89], %144 {strides = array<i32>} : memref<1x8x1024xf32, #tpu.memory_space<vmem>>, vector<1x1x1024xf32>,
    %145 = vector.extract_strided_slice %54 {offsets = [0, 6], sizes = [16, 1], strides = [1, 1]} : vector<16x8xf32> to vector<16x1xf32>
    %cst_90 = arith.constant 0.000000e+00 : f32
    %146 = vector.broadcast %cst_90 : f32 to vector<16x1xf32>
    %147 = arith.cmpf ogt, %145, %146 : vector<16x1xf32>
    %cst_91 = arith.constant 0.000000e+00 : f32
    %148 = vector.shape_cast %147 : vector<16x1xi1> to vector<16x1xi1>
    %149 = vector.broadcast %148 : vector<16x1xi1> to vector<16x1024xi1>
    %150 = vector.broadcast %cst_91 : f32 to vector<16x1024xf32>
    %151 = arith.select %149, %51, %150 : vector<16x1024xi1>, vector<16x1024xf32>
    %cst_92 = arith.constant dense<0xFF800000> : vector<1024xf32>
    %152 = vector.multi_reduction <maximumf>, %151, %cst_92 [0] : vector<16x1024xf32> to vector<1024xf32>
    %153 = vector.shape_cast %152 : vector<1024xf32> to vector<1x1024xf32>
    %c0_93 = arith.constant 0 : index
    %c6 = arith.constant 6 : index
    %c0_94 = arith.constant 0 : index
    %154 = vector.load %arg17[%c0_93, %c6, %c0_94] : memref<1x8x1024xf32, #tpu.memory_space<vmem>>, vector<1x1x1024xf32>
    %155 = vector.shape_cast %154 : vector<1x1x1024xf32> to vector<1x1024xf32>
    %156 = arith.maximumf %155, %153 : vector<1x1024xf32>
    %c0_95 = arith.constant 0 : index
    %c6_96 = arith.constant 6 : index
    %c0_97 = arith.constant 0 : index
    %157 = vector.load %arg17[%c0_95, %c6_96, %c0_97] : memref<1x8x1024xf32, #tpu.memory_space<vmem>>, vector<1x1x1024xf32>
    %158 = vector.shape_cast %157 : vector<1x1x1024xf32> to vector<1x1024xf32>
    %159 = vector.shape_cast %156 : vector<1x1024xf32> to vector<1x1x1024xf32>
    tpu.vector_store %arg17[%c0_95, %c6_96, %c0_97], %159 {strides = array<i32>} : memref<1x8x1024xf32, #tpu.memory_space<vmem>>, vector<1x1x1024xf32>,
    %160 = vector.extract_strided_slice %54 {offsets = [0, 7], sizes = [16, 1], strides = [1, 1]} : vector<16x8xf32> to vector<16x1xf32>
    %cst_98 = arith.constant 0.000000e+00 : f32
    %161 = vector.broadcast %cst_98 : f32 to vector<16x1xf32>
    %162 = arith.cmpf ogt, %160, %161 : vector<16x1xf32>
    %cst_99 = arith.constant 0.000000e+00 : f32
    %163 = vector.shape_cast %162 : vector<16x1xi1> to vector<16x1xi1>
    %164 = vector.broadcast %163 : vector<16x1xi1> to vector<16x1024xi1>
    %165 = vector.broadcast %cst_99 : f32 to vector<16x1024xf32>
    %166 = arith.select %164, %51, %165 : vector<16x1024xi1>, vector<16x1024xf32>
    %cst_100 = arith.constant dense<0xFF800000> : vector<1024xf32>
    %167 = vector.multi_reduction <maximumf>, %166, %cst_100 [0] : vector<16x1024xf32> to vector<1024xf32>
    %168 = vector.shape_cast %167 : vector<1024xf32> to vector<1x1024xf32>
    %c0_101 = arith.constant 0 : index
    %c7 = arith.constant 7 : index
    %c0_102 = arith.constant 0 : index
    %169 = vector.load %arg17[%c0_101, %c7, %c0_102] : memref<1x8x1024xf32, #tpu.memory_space<vmem>>, vector<1x1x1024xf32>
    %170 = vector.shape_cast %169 : vector<1x1x1024xf32> to vector<1x1024xf32>
    %171 = arith.maximumf %170, %168 : vector<1x1024xf32>
    %c0_103 = arith.constant 0 : index
    %c7_104 = arith.constant 7 : index
    %c0_105 = arith.constant 0 : index
    %172 = vector.load %arg17[%c0_103, %c7_104, %c0_105] : memref<1x8x1024xf32, #tpu.memory_space<vmem>>, vector<1x1x1024xf32>
    %173 = vector.shape_cast %172 : vector<1x1x1024xf32> to vector<1x1024xf32>
    %174 = vector.shape_cast %171 : vector<1x1024xf32> to vector<1x1x1024xf32>
    tpu.vector_store %arg17[%c0_103, %c7_104, %c0_105], %174 {strides = array<i32>} : memref<1x8x1024xf32, #tpu.memory_space<vmem>>, vector<1x1x1024xf32>,
    return
  }
  func.func @transform_0(%arg0: i32, %arg1: i32) -> (i32, i32) {
    %c2_i32 = arith.constant 2 : i32
    %0 = arith.muli %arg0, %c2_i32 : i32
    %1 = arith.addi %0, %arg1 : i32
    %c0_i32 = arith.constant 0 : i32
    %c0_i32_0 = arith.constant 0 : i32
    return %1, %c0_i32 : i32, i32
  }
  func.func @transform_1(%arg0: i32, %arg1: i32) -> (i32, i32) {
    %c2_i32 = arith.constant 2 : i32
    %0 = arith.muli %arg0, %c2_i32 : i32
    %1 = arith.addi %0, %arg1 : i32
    %c0_i32 = arith.constant 0 : i32
    %c0_i32_0 = arith.constant 0 : i32
    return %1, %c0_i32 : i32, i32
  }
  func.func @transform_2(%arg0: i32, %arg1: i32) -> (i32, i32) {
    %c0_i32 = arith.constant 0 : i32
    %c0_i32_0 = arith.constant 0 : i32
    %c0_i32_1 = arith.constant 0 : i32
    return %c0_i32, %c0_i32_0 : i32, i32
  }
  func.func @transform_3(%arg0: i32, %arg1: i32) -> (i32, i32) {
    %c0_i32 = arith.constant 0 : i32
    %c0_i32_0 = arith.constant 0 : i32
    %c0_i32_1 = arith.constant 0 : i32
    return %c0_i32, %c0_i32_0 : i32, i32
  }
  func.func @transform_4(%arg0: i32, %arg1: i32) -> (i32, i32) {
    %c0_i32 = arith.constant 0 : i32
    %c0_i32_0 = arith.constant 0 : i32
    %c0_i32_1 = arith.constant 0 : i32
    return %c0_i32, %c0_i32_0 : i32, i32
  }
  func.func @transform_5(%arg0: i32, %arg1: i32) -> (i32, i32) {
    %c0_i32 = arith.constant 0 : i32
    %c0_i32_0 = arith.constant 0 : i32
    %c0_i32_1 = arith.constant 0 : i32
    return %c0_i32, %c0_i32_0 : i32, i32
  }
  func.func @transform_6(%arg0: i32, %arg1: i32) -> (i32, i32) {
    %c0_i32 = arith.constant 0 : i32
    %c0_i32_0 = arith.constant 0 : i32
    %c0_i32_1 = arith.constant 0 : i32
    return %c0_i32, %c0_i32_0 : i32, i32
  }
  func.func @transform_7(%arg0: i32, %arg1: i32) -> (i32, i32) {
    %c0_i32 = arith.constant 0 : i32
    %c0_i32_0 = arith.constant 0 : i32
    %c0_i32_1 = arith.constant 0 : i32
    return %c0_i32, %c0_i32_0 : i32, i32
  }
  func.func @transform_8(%arg0: i32, %arg1: i32) -> (i32, i32) {
    %c0_i32 = arith.constant 0 : i32
    %c0_i32_0 = arith.constant 0 : i32
    %c0_i32_1 = arith.constant 0 : i32
    return %c0_i32, %c0_i32_0 : i32, i32
  }
  func.func @transform_9(%arg0: i32, %arg1: i32) -> (i32, i32) {
    %c0_i32 = arith.constant 0 : i32
    %c0_i32_0 = arith.constant 0 : i32
    %c0_i32_1 = arith.constant 0 : i32
    return %c0_i32, %c0_i32_0 : i32, i32
  }
  func.func @transform_10(%arg0: i32, %arg1: i32) -> (i32, i32) {
    %c0_i32 = arith.constant 0 : i32
    %c0_i32_0 = arith.constant 0 : i32
    %c0_i32_1 = arith.constant 0 : i32
    return %c0_i32, %c0_i32_0 : i32, i32
  }
  func.func @transform_11(%arg0: i32, %arg1: i32) -> (i32, i32) {
    %c0_i32 = arith.constant 0 : i32
    %c0_i32_0 = arith.constant 0 : i32
    %c0_i32_1 = arith.constant 0 : i32
    return %c0_i32, %c0_i32_0 : i32, i32
  }
  func.func @transform_12(%arg0: i32, %arg1: i32) -> (i32, i32) {
    %c0_i32 = arith.constant 0 : i32
    %c0_i32_0 = arith.constant 0 : i32
    %c0_i32_1 = arith.constant 0 : i32
    return %c0_i32, %c0_i32_0 : i32, i32
  }
  func.func @transform_13(%arg0: i32, %arg1: i32) -> (i32, i32) {
    %c0_i32 = arith.constant 0 : i32
    %c0_i32_0 = arith.constant 0 : i32
    %c0_i32_1 = arith.constant 0 : i32
    return %c0_i32, %c0_i32_0 : i32, i32
  }
  func.func @transform_14(%arg0: i32, %arg1: i32) -> (i32, i32) {
    %c2_i32 = arith.constant 2 : i32
    %0 = arith.muli %arg0, %c2_i32 : i32
    %1 = arith.addi %0, %arg1 : i32
    %c0_i32 = arith.constant 0 : i32
    %c0_i32_0 = arith.constant 0 : i32
    return %1, %c0_i32 : i32, i32
  }
  func.func @transform_15(%arg0: i32, %arg1: i32) -> (i32, i32, i32) {
    %c0_i32 = arith.constant 0 : i32
    %c0_i32_0 = arith.constant 0 : i32
    %c0_i32_1 = arith.constant 0 : i32
    return %arg0, %c0_i32, %c0_i32_0 : i32, i32, i32
  }
}

</mosaic_0001>

<llo_original>
// kernel: tpu_custom_call.1
$region0: #{tpu_custom_call.1}
  #allocation0 [shape = 'u32[]', space=smem, size = 0x4, offset = 0x4, fixed_abs, tag = 'smem constant byte address 0x4 - core index']
  #allocation1 [shape = 'u32[72,128]{1,0:T(1,128)}', space=vmem, size = 0x9000, scoped, tag = 'internal scratch']
  %s0 = inlined_call_operand.vmem [shape: f32[64,8], index: 0, kind: input, shape index: {}]
  %s1 = inlined_call_operand.vmem [shape: f32[64,8], index: 1, kind: input, shape index: {}]
  %s2 = inlined_call_operand.hbm [shape: bf16[8,64], index: 2, kind: input, shape index: {}]
  %s3 = inlined_call_operand.hbm [shape: f32[1,64], index: 3, kind: input, shape index: {}]
  %s4 = inlined_call_operand.hbm [shape: bf16[64,64], index: 4, kind: input, shape index: {}]
  %s5 = inlined_call_operand.hbm [shape: f32[1,64], index: 5, kind: input, shape index: {}]
  %s6 = inlined_call_operand.hbm [shape: bf16[64,128], index: 6, kind: input, shape index: {}]
  %s7 = inlined_call_operand.hbm [shape: f32[1,128], index: 7, kind: input, shape index: {}]
  %s8 = inlined_call_operand.hbm [shape: bf16[128,128], index: 8, kind: input, shape index: {}]
  %s9 = inlined_call_operand.hbm [shape: f32[1,128], index: 9, kind: input, shape index: {}]
  %s10 = inlined_call_operand.hbm [shape: bf16[128,1024], index: 10, kind: input, shape index: {}]
  %s11 = inlined_call_operand.hbm [shape: f32[1,1024], index: 11, kind: input, shape index: {}]
  %s12 = inlined_call_operand.hbm [shape: bf16[1024,1024], index: 12, kind: input, shape index: {}]
  %s13 = inlined_call_operand.hbm [shape: f32[1,1024], index: 13, kind: input, shape index: {}]
  %s14 = inlined_call_operand.hbm [shape: bf16[64,128], index: 14, kind: output, shape index: {0}]
  %s15 = inlined_call_operand.hbm [shape: f32[2,8,1024], index: 15, kind: output, shape index: {1}]
  %16 = xla_tuple %s14, %s15
  %s17 = sld [smem:[#allocation0]]
  $region149: #{tpu_custom_call.1} parent=0
    _
  %s19 = ssub.s32 1, %s17
  %s20 = scalar_select 0, %s19, %s17
  $region1: #{tpu_custom_call.1} parent=0
    #allocation2 [shape = 'u8[2048]{0}', space=vmem, size = 0x800, scoped, tag = 'input window, operand 2, single buffered']
    #allocation3 [shape = 's32[2]{0}', space=sflag, size = 0x8, scoped, tag = 'scoped memory for tpu_custom_call.1']
    #allocation4 [shape = 's32[2]{0}', space=sflag, size = 0x8, scoped, tag = 'scoped memory for tpu_custom_call.1']
    #allocation5 [shape = 'u8[512]{0}', space=vmem, size = 0x400, scoped, tag = 'input window, operand 3, single buffered']
    #allocation6 [shape = 's32[1]{0}', space=sflag, size = 0x4, scoped, tag = 'scoped memory for tpu_custom_call.1']
    #allocation7 [shape = 'u8[16384]{0}', space=vmem, size = 0x4000, scoped, tag = 'input window, operand 4, single buffered']
    #allocation8 [shape = 'u8[512]{0}', space=vmem, size = 0x400, scoped, tag = 'input window, operand 5, single buffered']
    #allocation9 [shape = 's32[1]{0}', space=sflag, size = 0x4, scoped, tag = 'scoped memory for tpu_custom_call.1']
    #allocation10 [shape = 'u8[16384]{0}', space=vmem, size = 0x4000, scoped, tag = 'input window, operand 6, single buffered']
    #allocation11 [shape = 'u8[512]{0}', space=vmem, size = 0x400, scoped, tag = 'input window, operand 7, single buffered']
    #allocation12 [shape = 's32[1]{0}', space=sflag, size = 0x4, scoped, tag = 'scoped memory for tpu_custom_call.1']
    #allocation13 [shape = 'u8[32768]{0}', space=vmem, size = 0x8000, scoped, tag = 'input window, operand 8, single buffered']
    #allocation14 [shape = 'u8[512]{0}', space=vmem, size = 0x400, scoped, tag = 'input window, operand 9, single buffered']
    #allocation15 [shape = 's32[1]{0}', space=sflag, size = 0x4, scoped, tag = 'scoped memory for tpu_custom_call.1']
    #allocation16 [shape = 'u8[262144]{0}', space=vmem, size = 0x40000, scoped, tag = 'input window, operand 10, single buffered']
    #allocation17 [shape = 'u8[4096]{0}', space=vmem, size = 0x1000, scoped, tag = 'input window, operand 11, single buffered']
    #allocation18 [shape = 's32[1]{0}', space=sflag, size = 0x4, scoped, tag = 'scoped memory for tpu_custom_call.1']
    #allocation19 [shape = 'u8[2097152]{0}', space=vmem, size = 0x200000, scoped, tag = 'input window, operand 12, single buffered']
    #allocation20 [shape = 'u8[4096]{0}', space=vmem, size = 0x1000, scoped, tag = 'input window, operand 13, single buffered']
    #allocation21 [shape = 's32[1]{0}', space=sflag, size = 0x4, scoped, tag = 'scoped memory for tpu_custom_call.1']
    #allocation22 [shape = 'u8[8192]{0}', space=vmem, size = 0x2000, scoped, tag = 'output window, operand 0']
    #allocation23 [shape = 'u8[65536]{0}', space=vmem, size = 0x10000, scoped, tag = 'output window, operand 1']
    #allocation24 [shape = 's32[2]{0}', space=sflag, size = 0x8, scoped, tag = 'scoped memory for tpu_custom_call.1']
    %21 = vsyncpa [#allocation3], 0
    %22 = vsyncpa [#allocation6], 0
    %23 = vsyncpa [#allocation9], 0
    %24 = vsyncpa [#allocation12], 0
    %25 = vsyncpa [#allocation15], 0
    %26 = vsyncpa [#allocation18], 0
    %27 = vsyncpa [#allocation21], 0
    %28 = vsyncpa [#allocation4], 0
    %s29 = scalar_lea.sflag [#allocation4], 1
    %30 = vsyncpa %s29, 0
    %31 = vsyncpa [#allocation24], 0
    %s32 = scalar_lea.sflag [#allocation24], 1
    %33 = vsyncpa %s32, 0
    loop: start=0, step=1, limit=6
    $region2: #{tpu_custom_call.1} parent=1 // loop_pre_header
      _
    $region3: #{tpu_custom_call.1} parent=1 // loop_header
      %s35 = sphi 0, %s39
      %p36 = scmp.ge.s32.totalorder %s35, 6
      %s42 = sphi 0, %s54
      %s43 = sphi 0, %s50
      %s44 = sphi 0, %s42
      %s45 = sphi 0, %s43
      %s46 = sphi 0, %s44
      %s47 = sphi 0, %s45
      %s61 = sphi 0, %s63
      %s64 = sphi 0, %s61
      %s65 = sphi 0, %s64
      %s81 = sphi 0, %s65
      %s91 = sphi 0, %s93
      %s94 = sphi 0, %s91
      %s95 = sphi 0, %s94
      %s111 = sphi 0, %s95
      %s115 = sphi 0, %s115
      %s117 = sphi 0, %s115
      %s118 = sphi 0, %s117
      %s132 = sphi 0, %s118
      %s136 = sphi 0, %s136
      %s138 = sphi 0, %s136
      %s139 = sphi 0, %s138
      %s153 = sphi 0, %s139
      %s157 = sphi 0, %s157
      %s159 = sphi 0, %s157
      %s160 = sphi 0, %s159
      %s174 = sphi 0, %s160
      %s178 = sphi 0, %s178
      %s180 = sphi 0, %s178
      %s181 = sphi 0, %s180
      %s195 = sphi 0, %s181
      %s199 = sphi 0, %s199
      %s201 = sphi 0, %s199
      %s202 = sphi 0, %s201
      %s216 = sphi 0, %s202
      %s220 = sphi 0, %s220
      %s222 = sphi 0, %s220
      %s223 = sphi 0, %s222
      %s237 = sphi 0, %s223
      %s241 = sphi 0, %s241
      %s243 = sphi 0, %s241
      %s244 = sphi 0, %s243
      %s258 = sphi 0, %s244
      %s262 = sphi 0, %s262
      %s264 = sphi 0, %s262
      %s265 = sphi 0, %s264
      %s279 = sphi 0, %s265
      %s283 = sphi 0, %s283
      %s285 = sphi 0, %s283
      %s286 = sphi 0, %s285
      %s300 = sphi 0, %s286
      %s304 = sphi 0, %s304
      %s306 = sphi 0, %s304
      %s307 = sphi 0, %s306
      %s321 = sphi 0, %s307
      %s325 = sphi 0, %s325
      %s327 = sphi 0, %s325
      %s328 = sphi 0, %s327
      %s342 = sphi 0, %s328
      %s346 = sphi 0, %s346
      %s348 = sphi 0, %s346
      %s349 = sphi 0, %s348
      %s363 = sphi 0, %s349
      %s373 = sphi 0, %s375
      %s376 = sphi 0, %s373
      %s377 = sphi 0, %s376
      %s393 = sphi 0, %s377
      %s399 = sphi 0, %s401
      %s402 = sphi 0, %s399
      %s403 = sphi 0, %s402
      %s419 = sphi 0, %s403
    $region4: #{tpu_custom_call.1} parent=1 // loop_header_branch
      %38 = sbr.rel (%p36) target = $region8
    $region5: #{tpu_custom_call.1} parent=1 // loop_body
      %s40 = ssub.s32 %s35, 1
      %s41 = ssub.s32 %s35, 2
      %s48 = sadd.s32 1, %s43
      %p49 = scmp.ge.s32.totalorder %s48, 2
      %s50 = scalar_select %p49, 0, %s48
      %s51 = sadd.s32 1, %s42
      %s52 = scalar_select %p49, %s51, %s42
      %p53 = scmp.ge.s32.totalorder %s52, 2
      %s54 = scalar_select %p53, 0, %s52
      %s55 = smul.u32 %s42, 2
      %s56 = sadd.s32 %s55, %s43
      %s57 = smul.u32 %s54, 2
      %s58 = sadd.s32 %s57, %s50
      %s59 = ssub.s32 %s56, %s58
      %p60 = scmp.eq.s32.totalorder %s59, 0
      %s62 = sadd.s32 %s61, 1
      %s63 = scalar_select %p60, %s61, %s62
      %p66 = pneg %p60
      %p67 = scmp.eq.s32.totalorder %s35, 3
      %p68 = por %p66, %p67
      %p69 = scmp.ne.s32.totalorder %s61, %s64
      %p70 = scmp.eq.s32.totalorder %s35, 0
      %p71 = por %p69, %p70
      %p72 = scmp.ne.s32.totalorder %s61, %s64
      %p73 = scmp.eq.s32.totalorder %s40, 3
      %p74 = por %p72, %p73
      %p75 = scmp.ne.s32.totalorder %s64, %s65
      %p76 = scmp.eq.s32.totalorder %s40, 0
      %p77 = por %p75, %p76
      %p78 = scmp.ne.s32.totalorder %s64, %s65
      %p79 = scmp.eq.s32.totalorder %s41, 3
      %p80 = por %p78, %p79
      %p82 = scmp.ne.s32.totalorder %s65, %s81
      %p83 = scmp.eq.s32.totalorder %s41, 0
      %p84 = por %p82, %p83
      %s85 = smul.u32 %s42, 2
      %s86 = sadd.s32 %s85, %s43
      %s87 = smul.u32 %s54, 2
      %s88 = sadd.s32 %s87, %s50
      %s89 = ssub.s32 %s86, %s88
      %p90 = scmp.eq.s32.totalorder %s89, 0
      %s92 = sadd.s32 %s91, 1
      %s93 = scalar_select %p90, %s91, %s92
      %p96 = pneg %p90
      %p97 = scmp.eq.s32.totalorder %s35, 3
      %p98 = por %p96, %p97
      %p99 = scmp.ne.s32.totalorder %s91, %s94
      %p100 = scmp.eq.s32.totalorder %s35, 0
      %p101 = por %p99, %p100
      %p102 = scmp.ne.s32.totalorder %s91, %s94
      %p103 = scmp.eq.s32.totalorder %s40, 3
      %p104 = por %p102, %p103
      %p105 = scmp.ne.s32.totalorder %s94, %s95
      %p106 = scmp.eq.s32.totalorder %s40, 0
      %p107 = por %p105, %p106
      %p108 = scmp.ne.s32.totalorder %s94, %s95
      %p109 = scmp.eq.s32.totalorder %s41, 3
      %p110 = por %p108, %p109
      %p112 = scmp.ne.s32.totalorder %s95, %s111
      %p113 = scmp.eq.s32.totalorder %s41, 0
      %p114 = por %p112, %p113
      %s116 = sadd.s32 %s115, 1
      %p119 = scmp.eq.s32.totalorder %s35, 3
      %p120 = scmp.ne.s32.totalorder %s115, %s117
      %p121 = scmp.eq.s32.totalorder %s35, 0
      %p122 = por %p120, %p121
      %p123 = scmp.ne.s32.totalorder %s115, %s117
      %p124 = scmp.eq.s32.totalorder %s40, 3
      %p125 = por %p123, %p124
      %p126 = scmp.ne.s32.totalorder %s117, %s118
      %p127 = scmp.eq.s32.totalorder %s40, 0
      %p128 = por %p126, %p127
      %p129 = scmp.ne.s32.totalorder %s117, %s118
      %p130 = scmp.eq.s32.totalorder %s41, 3
      %p131 = por %p129, %p130
      %p133 = scmp.ne.s32.totalorder %s118, %s132
      %p134 = scmp.eq.s32.totalorder %s41, 0
      %p135 = por %p133, %p134
      %s137 = sadd.s32 %s136, 1
      %p140 = scmp.eq.s32.totalorder %s35, 3
      %p141 = scmp.ne.s32.totalorder %s136, %s138
      %p142 = scmp.eq.s32.totalorder %s35, 0
      %p143 = por %p141, %p142
      %p144 = scmp.ne.s32.totalorder %s136, %s138
      %p145 = scmp.eq.s32.totalorder %s40, 3
      %p146 = por %p144, %p145
      %p147 = scmp.ne.s32.totalorder %s138, %s139
      %p148 = scmp.eq.s32.totalorder %s40, 0
      %p149 = por %p147, %p148
      %p150 = scmp.ne.s32.totalorder %s138, %s139
      %p151 = scmp.eq.s32.totalorder %s41, 3
      %p152 = por %p150, %p151
      %p154 = scmp.ne.s32.totalorder %s139, %s153
      %p155 = scmp.eq.s32.totalorder %s41, 0
      %p156 = por %p154, %p155
      %s158 = sadd.s32 %s157, 1
      %p161 = scmp.eq.s32.totalorder %s35, 3
      %p162 = scmp.ne.s32.totalorder %s157, %s159
      %p163 = scmp.eq.s32.totalorder %s35, 0
      %p164 = por %p162, %p163
      %p165 = scmp.ne.s32.totalorder %s157, %s159
      %p166 = scmp.eq.s32.totalorder %s40, 3
      %p167 = por %p165, %p166
      %p168 = scmp.ne.s32.totalorder %s159, %s160
      %p169 = scmp.eq.s32.totalorder %s40, 0
      %p170 = por %p168, %p169
      %p171 = scmp.ne.s32.totalorder %s159, %s160
      %p172 = scmp.eq.s32.totalorder %s41, 3
      %p173 = por %p171, %p172
      %p175 = scmp.ne.s32.totalorder %s160, %s174
      %p176 = scmp.eq.s32.totalorder %s41, 0
      %p177 = por %p175, %p176
      %s179 = sadd.s32 %s178, 1
      %p182 = scmp.eq.s32.totalorder %s35, 3
      %p183 = scmp.ne.s32.totalorder %s178, %s180
      %p184 = scmp.eq.s32.totalorder %s35, 0
      %p185 = por %p183, %p184
      %p186 = scmp.ne.s32.totalorder %s178, %s180
      %p187 = scmp.eq.s32.totalorder %s40, 3
      %p188 = por %p186, %p187
      %p189 = scmp.ne.s32.totalorder %s180, %s181
      %p190 = scmp.eq.s32.totalorder %s40, 0
      %p191 = por %p189, %p190
      %p192 = scmp.ne.s32.totalorder %s180, %s181
      %p193 = scmp.eq.s32.totalorder %s41, 3
      %p194 = por %p192, %p193
      %p196 = scmp.ne.s32.totalorder %s181, %s195
      %p197 = scmp.eq.s32.totalorder %s41, 0
      %p198 = por %p196, %p197
      %s200 = sadd.s32 %s199, 1
      %p203 = scmp.eq.s32.totalorder %s35, 3
      %p204 = scmp.ne.s32.totalorder %s199, %s201
      %p205 = scmp.eq.s32.totalorder %s35, 0
      %p206 = por %p204, %p205
      %p207 = scmp.ne.s32.totalorder %s199, %s201
      %p208 = scmp.eq.s32.totalorder %s40, 3
      %p209 = por %p207, %p208
      %p210 = scmp.ne.s32.totalorder %s201, %s202
      %p211 = scmp.eq.s32.totalorder %s40, 0
      %p212 = por %p210, %p211
      %p213 = scmp.ne.s32.totalorder %s201, %s202
      %p214 = scmp.eq.s32.totalorder %s41, 3
      %p215 = por %p213, %p214
      %p217 = scmp.ne.s32.totalorder %s202, %s216
      %p218 = scmp.eq.s32.totalorder %s41, 0
      %p219 = por %p217, %p218
      %s221 = sadd.s32 %s220, 1
      %p224 = scmp.eq.s32.totalorder %s35, 3
      %p225 = scmp.ne.s32.totalorder %s220, %s222
      %p226 = scmp.eq.s32.totalorder %s35, 0
      %p227 = por %p225, %p226
      %p228 = scmp.ne.s32.totalorder %s220, %s222
      %p229 = scmp.eq.s32.totalorder %s40, 3
      %p230 = por %p228, %p229
      %p231 = scmp.ne.s32.totalorder %s222, %s223
      %p232 = scmp.eq.s32.totalorder %s40, 0
      %p233 = por %p231, %p232
      %p234 = scmp.ne.s32.totalorder %s222, %s223
      %p235 = scmp.eq.s32.totalorder %s41, 3
      %p236 = por %p234, %p235
      %p238 = scmp.ne.s32.totalorder %s223, %s237
      %p239 = scmp.eq.s32.totalorder %s41, 0
      %p240 = por %p238, %p239
      %s242 = sadd.s32 %s241, 1
      %p245 = scmp.eq.s32.totalorder %s35, 3
      %p246 = scmp.ne.s32.totalorder %s241, %s243
      %p247 = scmp.eq.s32.totalorder %s35, 0
      %p248 = por %p246, %p247
      %p249 = scmp.ne.s32.totalorder %s241, %s243
      %p250 = scmp.eq.s32.totalorder %s40, 3
      %p251 = por %p249, %p250
      %p252 = scmp.ne.s32.totalorder %s243, %s244
      %p253 = scmp.eq.s32.totalorder %s40, 0
      %p254 = por %p252, %p253
      %p255 = scmp.ne.s32.totalorder %s243, %s244
      %p256 = scmp.eq.s32.totalorder %s41, 3
      %p257 = por %p255, %p256
      %p259 = scmp.ne.s32.totalorder %s244, %s258
      %p260 = scmp.eq.s32.totalorder %s41, 0
      %p261 = por %p259, %p260
      %s263 = sadd.s32 %s262, 1
      %p266 = scmp.eq.s32.totalorder %s35, 3
      %p267 = scmp.ne.s32.totalorder %s262, %s264
      %p268 = scmp.eq.s32.totalorder %s35, 0
      %p269 = por %p267, %p268
      %p270 = scmp.ne.s32.totalorder %s262, %s264
      %p271 = scmp.eq.s32.totalorder %s40, 3
      %p272 = por %p270, %p271
      %p273 = scmp.ne.s32.totalorder %s264, %s265
      %p274 = scmp.eq.s32.totalorder %s40, 0
      %p275 = por %p273, %p274
      %p276 = scmp.ne.s32.totalorder %s264, %s265
      %p277 = scmp.eq.s32.totalorder %s41, 3
      %p278 = por %p276, %p277
      %p280 = scmp.ne.s32.totalorder %s265, %s279
      %p281 = scmp.eq.s32.totalorder %s41, 0
      %p282 = por %p280, %p281
      %s284 = sadd.s32 %s283, 1
      %p287 = scmp.eq.s32.totalorder %s35, 3
      %p288 = scmp.ne.s32.totalorder %s283, %s285
      %p289 = scmp.eq.s32.totalorder %s35, 0
      %p290 = por %p288, %p289
      %p291 = scmp.ne.s32.totalorder %s283, %s285
      %p292 = scmp.eq.s32.totalorder %s40, 3
      %p293 = por %p291, %p292
      %p294 = scmp.ne.s32.totalorder %s285, %s286
      %p295 = scmp.eq.s32.totalorder %s40, 0
      %p296 = por %p294, %p295
      %p297 = scmp.ne.s32.totalorder %s285, %s286
      %p298 = scmp.eq.s32.totalorder %s41, 3
      %p299 = por %p297, %p298
      %p301 = scmp.ne.s32.totalorder %s286, %s300
      %p302 = scmp.eq.s32.totalorder %s41, 0
      %p303 = por %p301, %p302
      %s305 = sadd.s32 %s304, 1
      %p308 = scmp.eq.s32.totalorder %s35, 3
      %p309 = scmp.ne.s32.totalorder %s304, %s306
      %p310 = scmp.eq.s32.totalorder %s35, 0
      %p311 = por %p309, %p310
      %p312 = scmp.ne.s32.totalorder %s304, %s306
      %p313 = scmp.eq.s32.totalorder %s40, 3
      %p314 = por %p312, %p313
      %p315 = scmp.ne.s32.totalorder %s306, %s307
      %p316 = scmp.eq.s32.totalorder %s40, 0
      %p317 = por %p315, %p316
      %p318 = scmp.ne.s32.totalorder %s306, %s307
      %p319 = scmp.eq.s32.totalorder %s41, 3
      %p320 = por %p318, %p319
      %p322 = scmp.ne.s32.totalorder %s307, %s321
      %p323 = scmp.eq.s32.totalorder %s41, 0
      %p324 = por %p322, %p323
      %s326 = sadd.s32 %s325, 1
      %p329 = scmp.eq.s32.totalorder %s35, 3
      %p330 = scmp.ne.s32.totalorder %s325, %s327
      %p331 = scmp.eq.s32.totalorder %s35, 0
      %p332 = por %p330, %p331
      %p333 = scmp.ne.s32.totalorder %s325, %s327
      %p334 = scmp.eq.s32.totalorder %s40, 3
      %p335 = por %p333, %p334
      %p336 = scmp.ne.s32.totalorder %s327, %s328
      %p337 = scmp.eq.s32.totalorder %s40, 0
      %p338 = por %p336, %p337
      %p339 = scmp.ne.s32.totalorder %s327, %s328
      %p340 = scmp.eq.s32.totalorder %s41, 3
      %p341 = por %p339, %p340
      %p343 = scmp.ne.s32.totalorder %s328, %s342
      %p344 = scmp.eq.s32.totalorder %s41, 0
      %p345 = por %p343, %p344
      %s347 = sadd.s32 %s346, 1
      %p350 = scmp.eq.s32.totalorder %s35, 3
      %p351 = scmp.ne.s32.totalorder %s346, %s348
      %p352 = scmp.eq.s32.totalorder %s35, 0
      %p353 = por %p351, %p352
      %p354 = scmp.ne.s32.totalorder %s346, %s348
      %p355 = scmp.eq.s32.totalorder %s40, 3
      %p356 = por %p354, %p355
      %p357 = scmp.ne.s32.totalorder %s348, %s349
      %p358 = scmp.eq.s32.totalorder %s40, 0
      %p359 = por %p357, %p358
      %p360 = scmp.ne.s32.totalorder %s348, %s349
      %p361 = scmp.eq.s32.totalorder %s41, 3
      %p362 = por %p360, %p361
      %p364 = scmp.ne.s32.totalorder %s349, %s363
      %p365 = scmp.eq.s32.totalorder %s41, 0
      %p366 = por %p364, %p365
      %s367 = smul.u32 %s42, 2
      %s368 = sadd.s32 %s367, %s43
      %s369 = smul.u32 %s54, 2
      %s370 = sadd.s32 %s369, %s50
      %s371 = ssub.s32 %s368, %s370
      %p372 = scmp.eq.s32.totalorder %s371, 0
      %s374 = sadd.s32 %s373, 1
      %s375 = scalar_select %p372, %s373, %s374
      %p378 = pneg %p372
      %p379 = scmp.eq.s32.totalorder %s35, 3
      %p380 = por %p378, %p379
      %p381 = scmp.ne.s32.totalorder %s373, %s376
      %p382 = scmp.eq.s32.totalorder %s35, 0
      %p383 = por %p381, %p382
      %p384 = scmp.ne.s32.totalorder %s373, %s376
      %p385 = scmp.eq.s32.totalorder %s40, 3
      %p386 = por %p384, %p385
      %p387 = scmp.ne.s32.totalorder %s376, %s377
      %p388 = scmp.eq.s32.totalorder %s40, 0
      %p389 = por %p387, %p388
      %p390 = scmp.ne.s32.totalorder %s376, %s377
      %p391 = scmp.eq.s32.totalorder %s41, 3
      %p392 = por %p390, %p391
      %p394 = scmp.ne.s32.totalorder %s377, %s393
      %p395 = scmp.eq.s32.totalorder %s41, 0
      %p396 = por %p394, %p395
      %s397 = ssub.s32 %s42, %s54
      %p398 = scmp.eq.s32.totalorder %s397, 0
      %s400 = sadd.s32 %s399, 1
      %s401 = scalar_select %p398, %s399, %s400
      %p404 = pneg %p398
      %p405 = scmp.eq.s32.totalorder %s35, 3
      %p406 = por %p404, %p405
      %p407 = scmp.ne.s32.totalorder %s399, %s402
      %p408 = scmp.eq.s32.totalorder %s35, 0
      %p409 = por %p407, %p408
      %p410 = scmp.ne.s32.totalorder %s399, %s402
      %p411 = scmp.eq.s32.totalorder %s40, 3
      %p412 = por %p410, %p411
      %p413 = scmp.ne.s32.totalorder %s402, %s403
      %p414 = scmp.eq.s32.totalorder %s40, 0
      %p415 = por %p413, %p414
      %p416 = scmp.ne.s32.totalorder %s402, %s403
      %p417 = scmp.eq.s32.totalorder %s41, 3
      %p418 = por %p416, %p417
      %p420 = scmp.ne.s32.totalorder %s403, %s419
      %p421 = scmp.eq.s32.totalorder %s41, 0
      %p422 = por %p420, %p421
      %p423 = scmp.le.s32.totalorder 1, %s35
      %p424 = scmp.lt.s32.totalorder %s35, 5
      %p425 = pnand %p423, %p424
      %p426 = pneg %p425
      // Predicated region
      $region9: #{tpu_custom_call.1} parent=5 // pred_check
        _
      $region10: #{tpu_custom_call.1} parent=5 // pred_check_branch
        %428 = sbr.rel (%p425) target = $region12
      $region11: #{tpu_custom_call.1} parent=5 // pred_region
        %s429 = ssub.s32 %s35, 1
        // Predicated region
        $region13: #{tpu_custom_call.1} parent=11 // pred_check
          %p430 = pneg %p128
        $region14: #{tpu_custom_call.1} parent=11 // pred_check_branch
          %432 = sbr.rel (%p430) target = $region16
        $region15: #{tpu_custom_call.1} parent=11 // pred_region
          %434 = vsyncadd [#allocation3], 0
          %s436 = sshll.u32 %s2, 4
          %s437 = int_to_ptr.hbm [resolvable:$true] %s436
          %s438 = sshll.u32 [#allocation2], 4
          %s439 = int_to_ptr.vmem [resolvable:$true] %s438
          %441 = dma.hbm_to_vmem [thread:$0]  %s437, 64, %s439, [#allocation3]
        $region16: #{tpu_custom_call.1} parent=11 // pred_fallthru
          _
        // Predicated region
        $region17: #{tpu_custom_call.1} parent=11 // pred_check
          %p442 = pneg %p149
        $region18: #{tpu_custom_call.1} parent=11 // pred_check_branch
          %444 = sbr.rel (%p442) target = $region20
        $region19: #{tpu_custom_call.1} parent=11 // pred_region
          %446 = vsyncadd [#allocation6], 0
          %s448 = sshll.u32 %s3, 4
          %s449 = int_to_ptr.hbm [resolvable:$true] %s448
          %s450 = sshll.u32 [#allocation5], 4
          %s451 = int_to_ptr.vmem [resolvable:$true] %s450
          %453 = dma.hbm_to_vmem [thread:$0]  %s449, 16, %s451, [#allocation6]
        $region20: #{tpu_custom_call.1} parent=11 // pred_fallthru
          _
        // Predicated region
        $region21: #{tpu_custom_call.1} parent=11 // pred_check
          %p454 = pneg %p170
        $region22: #{tpu_custom_call.1} parent=11 // pred_check_branch
          %456 = sbr.rel (%p454) target = $region24
        $region23: #{tpu_custom_call.1} parent=11 // pred_region
          %458 = vsyncadd [#allocation6], 0
          %s459 = sshll.u32 %s4, 4
          %s460 = int_to_ptr.hbm [resolvable:$true] %s459
          %s461 = sshll.u32 [#allocation7], 4
          %s462 = int_to_ptr.vmem [resolvable:$true] %s461
          %467 = dma.hbm_to_vmem [thread:$0]  %s460, 512, %s462, [#allocation6], 64, 64, 4
        $region24: #{tpu_custom_call.1} parent=11 // pred_fallthru
          _
        // Predicated region
        $region25: #{tpu_custom_call.1} parent=11 // pred_check
          %p468 = pneg %p191
        $region26: #{tpu_custom_call.1} parent=11 // pred_check_branch
          %470 = sbr.rel (%p468) target = $region28
        $region27: #{tpu_custom_call.1} parent=11 // pred_region
          %472 = vsyncadd [#allocation9], 0
          %s474 = sshll.u32 %s5, 4
          %s475 = int_to_ptr.hbm [resolvable:$true] %s474
          %s476 = sshll.u32 [#allocation8], 4
          %s477 = int_to_ptr.vmem [resolvable:$true] %s476
          %479 = dma.hbm_to_vmem [thread:$0]  %s475, 16, %s477, [#allocation9]
        $region28: #{tpu_custom_call.1} parent=11 // pred_fallthru
          _
        // Predicated region
        $region29: #{tpu_custom_call.1} parent=11 // pred_check
          %p480 = pneg %p212
        $region30: #{tpu_custom_call.1} parent=11 // pred_check_branch
          %482 = sbr.rel (%p480) target = $region32
        $region31: #{tpu_custom_call.1} parent=11 // pred_region
          %484 = vsyncadd [#allocation9], 0
          %s485 = sshll.u32 %s6, 4
          %s486 = int_to_ptr.hbm [resolvable:$true] %s485
          %s487 = sshll.u32 [#allocation10], 4
          %s488 = int_to_ptr.vmem [resolvable:$true] %s487
          %493 = dma.hbm_to_vmem [thread:$0]  %s486, 512, %s488, [#allocation9], 64, 64, 4
        $region32: #{tpu_custom_call.1} parent=11 // pred_fallthru
          _
        // Predicated region
        $region33: #{tpu_custom_call.1} parent=11 // pred_check
          %p494 = pneg %p233
        $region34: #{tpu_custom_call.1} parent=11 // pred_check_branch
          %496 = sbr.rel (%p494) target = $region36
        $region35: #{tpu_custom_call.1} parent=11 // pred_region
          %498 = vsyncadd [#allocation12], 0
          %s500 = sshll.u32 %s7, 4
          %s501 = int_to_ptr.hbm [resolvable:$true] %s500
          %s502 = sshll.u32 [#allocation11], 4
          %s503 = int_to_ptr.vmem [resolvable:$true] %s502
          %505 = dma.hbm_to_vmem [thread:$0]  %s501, 16, %s503, [#allocation12]
        $region36: #{tpu_custom_call.1} parent=11 // pred_fallthru
          _
        // Predicated region
        $region37: #{tpu_custom_call.1} parent=11 // pred_check
          %p506 = pneg %p254
        $region38: #{tpu_custom_call.1} parent=11 // pred_check_branch
          %508 = sbr.rel (%p506) target = $region40
        $region39: #{tpu_custom_call.1} parent=11 // pred_region
          %510 = vsyncadd [#allocation12], 0
          %s511 = sshll.u32 %s8, 4
          %s512 = int_to_ptr.hbm [resolvable:$true] %s511
          %s513 = sshll.u32 [#allocation13], 4
          %s514 = int_to_ptr.vmem [resolvable:$true] %s513
          %519 = dma.hbm_to_vmem [thread:$0]  %s512, 1024, %s514, [#allocation12], 64, 64, 4
        $region40: #{tpu_custom_call.1} parent=11 // pred_fallthru
          _
        // Predicated region
        $region41: #{tpu_custom_call.1} parent=11 // pred_check
          %p520 = pneg %p275
        $region42: #{tpu_custom_call.1} parent=11 // pred_check_branch
          %522 = sbr.rel (%p520) target = $region44
        $region43: #{tpu_custom_call.1} parent=11 // pred_region
          %524 = vsyncadd [#allocation15], 0
          %s526 = sshll.u32 %s9, 4
          %s527 = int_to_ptr.hbm [resolvable:$true] %s526
          %s528 = sshll.u32 [#allocation14], 4
          %s529 = int_to_ptr.vmem [resolvable:$true] %s528
          %531 = dma.hbm_to_vmem [thread:$0]  %s527, 16, %s529, [#allocation15]
        $region44: #{tpu_custom_call.1} parent=11 // pred_fallthru
          _
        // Predicated region
        $region45: #{tpu_custom_call.1} parent=11 // pred_check
          %p532 = pneg %p296
        $region46: #{tpu_custom_call.1} parent=11 // pred_check_branch
          %534 = sbr.rel (%p532) target = $region48
        $region47: #{tpu_custom_call.1} parent=11 // pred_region
          %536 = vsyncadd [#allocation15], 0
          %s537 = sshll.u32 %s10, 4
          %s538 = int_to_ptr.hbm [resolvable:$true] %s537
          %s539 = sshll.u32 [#allocation16], 4
          %s540 = int_to_ptr.vmem [resolvable:$true] %s539
          %545 = dma.hbm_to_vmem [thread:$0]  %s538, 8192, %s540, [#allocation15], 512, 512, 32
        $region48: #{tpu_custom_call.1} parent=11 // pred_fallthru
          _
        // Predicated region
        $region49: #{tpu_custom_call.1} parent=11 // pred_check
          %p546 = pneg %p317
        $region50: #{tpu_custom_call.1} parent=11 // pred_check_branch
          %548 = sbr.rel (%p546) target = $region52
        $region51: #{tpu_custom_call.1} parent=11 // pred_region
          %550 = vsyncadd [#allocation18], 0
          %s552 = sshll.u32 %s11, 4
          %s553 = int_to_ptr.hbm [resolvable:$true] %s552
          %s554 = sshll.u32 [#allocation17], 4
          %s555 = int_to_ptr.vmem [resolvable:$true] %s554
          %557 = dma.hbm_to_vmem [thread:$0]  %s553, 128, %s555, [#allocation18]
        $region52: #{tpu_custom_call.1} parent=11 // pred_fallthru
          _
        // Predicated region
        $region53: #{tpu_custom_call.1} parent=11 // pred_check
          %p558 = pneg %p338
        $region54: #{tpu_custom_call.1} parent=11 // pred_check_branch
          %560 = sbr.rel (%p558) target = $region56
        $region55: #{tpu_custom_call.1} parent=11 // pred_region
          %562 = vsyncadd [#allocation18], 0
          %s563 = sshll.u32 %s12, 4
          %s564 = int_to_ptr.hbm [resolvable:$true] %s563
          %s565 = sshll.u32 [#allocation19], 4
          %s566 = int_to_ptr.vmem [resolvable:$true] %s565
          %571 = dma.hbm_to_vmem [thread:$0]  %s564, 65536, %s566, [#allocation18], 512, 512, 32
        $region56: #{tpu_custom_call.1} parent=11 // pred_fallthru
          _
        // Predicated region
        $region57: #{tpu_custom_call.1} parent=11 // pred_check
          %p572 = pneg %p359
        $region58: #{tpu_custom_call.1} parent=11 // pred_check_branch
          %574 = sbr.rel (%p572) target = $region60
        $region59: #{tpu_custom_call.1} parent=11 // pred_region
          %576 = vsyncadd [#allocation21], 0
          %s578 = sshll.u32 %s13, 4
          %s579 = int_to_ptr.hbm [resolvable:$true] %s578
          %s580 = sshll.u32 [#allocation20], 4
          %s581 = int_to_ptr.vmem [resolvable:$true] %s580
          %583 = dma.hbm_to_vmem [thread:$0]  %s579, 128, %s581, [#allocation21]
        $region60: #{tpu_custom_call.1} parent=11 // pred_fallthru
          _
      $region12: #{tpu_custom_call.1} parent=5 // pred_fallthru
        _
      %p584 = scmp.lt.s32.totalorder %s35, 4
      // Predicated region
      $region61: #{tpu_custom_call.1} parent=5 // pred_check
        %p585 = pneg %p584
      $region62: #{tpu_custom_call.1} parent=5 // pred_check_branch
        %587 = sbr.rel (%p585) target = $region64
      $region63: #{tpu_custom_call.1} parent=5 // pred_region
        // Predicated region
        $region65: #{tpu_custom_call.1} parent=63 // pred_check
          %p588 = pneg %p71
        $region66: #{tpu_custom_call.1} parent=63 // pred_check_branch
          %590 = sbr.rel (%p588) target = $region68
        $region67: #{tpu_custom_call.1} parent=63 // pred_region
          %s591 = smul.u32 %s42, 2
          %s592 = sadd.s32 %s591, %s43
          %s593 = smul.u32 2, %s592
          %p594 = scmp.lt.s32.totalorder %s593, 7
          %s595 = scalar_select %p594, %s593, 7
          %s596 = smul.addr %s595, 8
          %s597 = scalar_lea.vmem %s0, %s596
          %s598 = smul.u32 %s42, 2
          %s599 = sadd.s32 %s598, %s43
          %s600 = smul.u32 2, %s599
        $region68: #{tpu_custom_call.1} parent=63 // pred_fallthru
          _
        // Predicated region
        $region69: #{tpu_custom_call.1} parent=63 // pred_check
          %p601 = pneg %p101
        $region70: #{tpu_custom_call.1} parent=63 // pred_check_branch
          %603 = sbr.rel (%p601) target = $region72
        $region71: #{tpu_custom_call.1} parent=63 // pred_region
          %s604 = smul.u32 %s42, 2
          %s605 = sadd.s32 %s604, %s43
          %s606 = smul.u32 2, %s605
          %p607 = scmp.lt.s32.totalorder %s606, 7
          %s608 = scalar_select %p607, %s606, 7
          %s609 = smul.addr %s608, 8
          %s610 = scalar_lea.vmem %s1, %s609
          %s611 = smul.u32 %s42, 2
          %s612 = sadd.s32 %s611, %s43
          %s613 = smul.u32 2, %s612
        $region72: #{tpu_custom_call.1} parent=63 // pred_fallthru
          _
      $region64: #{tpu_custom_call.1} parent=5 // pred_fallthru
        _
      %p614 = scmp.le.s32.totalorder 1, %s35
      %p615 = scmp.lt.s32.totalorder %s35, 5
      %p616 = pnand %p614, %p615
      %p617 = pneg %p616
      // Predicated region
      $region73: #{tpu_custom_call.1} parent=5 // pred_check
        _
      $region74: #{tpu_custom_call.1} parent=5 // pred_check_branch
        %619 = sbr.rel (%p616) target = $region76
      $region75: #{tpu_custom_call.1} parent=5 // pred_region
        %s620 = ssub.s32 %s35, 1
        // Predicated region
        $region77: #{tpu_custom_call.1} parent=75 // pred_check
          %p621 = pneg %p128
        $region78: #{tpu_custom_call.1} parent=75 // pred_check_branch
          %623 = sbr.rel (%p621) target = $region80
        $region79: #{tpu_custom_call.1} parent=75 // pred_region
          %625 = dma.done [#allocation3], 64
        $region80: #{tpu_custom_call.1} parent=75 // pred_fallthru
          _
        // Predicated region
        $region81: #{tpu_custom_call.1} parent=75 // pred_check
          %p626 = pneg %p149
        $region82: #{tpu_custom_call.1} parent=75 // pred_check_branch
          %628 = sbr.rel (%p626) target = $region84
        $region83: #{tpu_custom_call.1} parent=75 // pred_region
          %630 = dma.done [#allocation6], 16
        $region84: #{tpu_custom_call.1} parent=75 // pred_fallthru
          _
        // Predicated region
        $region85: #{tpu_custom_call.1} parent=75 // pred_check
          %p631 = pneg %p170
        $region86: #{tpu_custom_call.1} parent=75 // pred_check_branch
          %633 = sbr.rel (%p631) target = $region88
        $region87: #{tpu_custom_call.1} parent=75 // pred_region
          %635 = dma.done [#allocation6], 512
        $region88: #{tpu_custom_call.1} parent=75 // pred_fallthru
          _
        // Predicated region
        $region89: #{tpu_custom_call.1} parent=75 // pred_check
          %p636 = pneg %p191
        $region90: #{tpu_custom_call.1} parent=75 // pred_check_branch
          %638 = sbr.rel (%p636) target = $region92
        $region91: #{tpu_custom_call.1} parent=75 // pred_region
          %640 = dma.done [#allocation9], 16
        $region92: #{tpu_custom_call.1} parent=75 // pred_fallthru
          _
        // Predicated region
        $region93: #{tpu_custom_call.1} parent=75 // pred_check
          %p641 = pneg %p212
        $region94: #{tpu_custom_call.1} parent=75 // pred_check_branch
          %643 = sbr.rel (%p641) target = $region96
        $region95: #{tpu_custom_call.1} parent=75 // pred_region
          %645 = dma.done [#allocation9], 512
        $region96: #{tpu_custom_call.1} parent=75 // pred_fallthru
          _
        // Predicated region
        $region97: #{tpu_custom_call.1} parent=75 // pred_check
          %p646 = pneg %p233
        $region98: #{tpu_custom_call.1} parent=75 // pred_check_branch
          %648 = sbr.rel (%p646) target = $region100
        $region99: #{tpu_custom_call.1} parent=75 // pred_region
          %650 = dma.done [#allocation12], 16
        $region100: #{tpu_custom_call.1} parent=75 // pred_fallthru
          _
        // Predicated region
        $region101: #{tpu_custom_call.1} parent=75 // pred_check
          %p651 = pneg %p254
        $region102: #{tpu_custom_call.1} parent=75 // pred_check_branch
          %653 = sbr.rel (%p651) target = $region104
        $region103: #{tpu_custom_call.1} parent=75 // pred_region
          %655 = dma.done [#allocation12], 1024
        $region104: #{tpu_custom_call.1} parent=75 // pred_fallthru
          _
        // Predicated region
        $region105: #{tpu_custom_call.1} parent=75 // pred_check
          %p656 = pneg %p275
        $region106: #{tpu_custom_call.1} parent=75 // pred_check_branch
          %658 = sbr.rel (%p656) target = $region108
        $region107: #{tpu_custom_call.1} parent=75 // pred_region
          %660 = dma.done [#allocation15], 16
        $region108: #{tpu_custom_call.1} parent=75 // pred_fallthru
          _
        // Predicated region
        $region109: #{tpu_custom_call.1} parent=75 // pred_check
          %p661 = pneg %p296
        $region110: #{tpu_custom_call.1} parent=75 // pred_check_branch
          %663 = sbr.rel (%p661) target = $region112
        $region111: #{tpu_custom_call.1} parent=75 // pred_region
          %665 = dma.done [#allocation15], 8192
        $region112: #{tpu_custom_call.1} parent=75 // pred_fallthru
          _
        // Predicated region
        $region113: #{tpu_custom_call.1} parent=75 // pred_check
          %p666 = pneg %p317
        $region114: #{tpu_custom_call.1} parent=75 // pred_check_branch
          %668 = sbr.rel (%p666) target = $region116
        $region115: #{tpu_custom_call.1} parent=75 // pred_region
          %670 = dma.done [#allocation18], 128
        $region116: #{tpu_custom_call.1} parent=75 // pred_fallthru
          _
        // Predicated region
        $region117: #{tpu_custom_call.1} parent=75 // pred_check
          %p671 = pneg %p338
        $region118: #{tpu_custom_call.1} parent=75 // pred_check_branch
          %673 = sbr.rel (%p671) target = $region120
        $region119: #{tpu_custom_call.1} parent=75 // pred_region
          %675 = dma.done [#allocation18], 65536
        $region120: #{tpu_custom_call.1} parent=75 // pred_fallthru
          _
        // Predicated region
        $region121: #{tpu_custom_call.1} parent=75 // pred_check
          %p676 = pneg %p359
        $region122: #{tpu_custom_call.1} parent=75 // pred_check_branch
          %678 = sbr.rel (%p676) target = $region124
        $region123: #{tpu_custom_call.1} parent=75 // pred_region
          %680 = dma.done [#allocation21], 128
        $region124: #{tpu_custom_call.1} parent=75 // pred_fallthru
          _
        %s681 = smul.u32 %s44, 2
        %s682 = sadd.s32 %s681, %s45
        %s683 = smul.u32 2, %s682
        %p684 = scmp.lt.s32.totalorder %s683, 7
        %s685 = scalar_select %p684, %s683, 7
        %s686 = smul.addr %s685, 8
        %s687 = scalar_lea.vmem %s0, %s686
        %p688 = pneg %p77
        %p689 = pneg %p74
        %s690 = smul.u32 %s44, 2
        %s691 = sadd.s32 %s690, %s45
        %s692 = smul.u32 2, %s691
        %p693 = scmp.lt.s32.totalorder %s692, 7
        %s694 = scalar_select %p693, %s692, 7
        %s695 = smul.addr %s694, 8
        %s696 = scalar_lea.vmem %s1, %s695
        %p697 = pneg %p107
        %p698 = pneg %p104
        %p699 = pneg %p128
        %p700 = pneg %p125
        %p701 = pneg %p149
        %p702 = pneg %p146
        %p703 = pneg %p170
        %p704 = pneg %p167
        %p705 = pneg %p191
        %p706 = pneg %p188
        %p707 = pneg %p212
        %p708 = pneg %p209
        %p709 = pneg %p233
        %p710 = pneg %p230
        %p711 = pneg %p254
        %p712 = pneg %p251
        %p713 = pneg %p275
        %p714 = pneg %p272
        %p715 = pneg %p296
        %p716 = pneg %p293
        %p717 = pneg %p317
        %p718 = pneg %p314
        %p719 = pneg %p338
        %p720 = pneg %p335
        %p721 = pneg %p359
        %p722 = pneg %p356
        %p723 = pneg %p389
        %p724 = pneg %p386
        %s725 = sand.u32 %s376, 1
        %s726 = scalar_lea.sflag [#allocation4], %s725
        %s727 = sand.u32 %s376, 1
        %s728 = smul.addr %s727, 8
        %s729 = scalar_lea.vmem [#allocation22], %s728
        %p730 = pneg %p415
        %p731 = pneg %p412
        %s732 = sand.u32 %s402, 1
        %s733 = scalar_lea.sflag [#allocation24], %s732
        %s734 = sand.u32 %s402, 1
        %s735 = smul.addr %s734, 64
        %s736 = scalar_lea.vmem [#allocation23], %s735
        %s737 = smul.u32 %s44, 2
        %s738 = sadd.s32 %s737, %s45
        %s739 = smul.u32 2, %s738
        %p740 = scmp.lt.s32.totalorder %s739, 7
        %s741 = scalar_select %p740, %s739, 7
        %s742 = smul.addr %s741, 8
        %s743 = scalar_lea.vmem %s0, %s742
        %s744 = smul.u32 %s44, 2
        %s745 = sadd.s32 %s744, %s45
        %s746 = smul.u32 2, %s745
        %s747 = smul.u32 %s44, 2
        %s748 = sadd.s32 %s747, %s45
        %s749 = smul.u32 2, %s748
        %p750 = scmp.lt.s32.totalorder %s749, 7
        %s751 = scalar_select %p750, %s749, 7
        %s752 = smul.addr %s751, 8
        %s753 = scalar_lea.vmem %s1, %s752
        %s754 = smul.u32 %s44, 2
        %s755 = sadd.s32 %s754, %s45
        %s756 = smul.u32 2, %s755
        %s757 = smul.u32 %s44, 2
        %s758 = sadd.s32 %s757, %s45
        %s759 = smul.u32 2, %s758
        %p761 = scmp.eq.s32.totalorder %s45, 0
        // Predicated region
        $region125: #{tpu_custom_call.1} parent=75 // pred_check
          %p762 = pneg %p761
        $region126: #{tpu_custom_call.1} parent=75 // pred_check_branch
          %764 = sbr.rel (%p762) target = $region128
        $region127: #{tpu_custom_call.1} parent=75 // pred_region
          %765 = vst [vmem:[%s736] sm:$0xff] 0.0
          %766 = vst [vmem:[%s736 + $0x8] sm:$0xff] 0.0
          %767 = vst [vmem:[%s736 + $0x10] sm:$0xff] 0.0
          %768 = vst [vmem:[%s736 + $0x18] sm:$0xff] 0.0
          %769 = vst [vmem:[%s736 + $0x20] sm:$0xff] 0.0
          %770 = vst [vmem:[%s736 + $0x28] sm:$0xff] 0.0
          %771 = vst [vmem:[%s736 + $0x30] sm:$0xff] 0.0
          %772 = vst [vmem:[%s736 + $0x38] sm:$0xff] 0.0
        $region128: #{tpu_custom_call.1} parent=75 // pred_fallthru
          _
        %v773 = vld [vmem:[%s743] sm:$0xff]
        %v774 = vld [vmem:[%s743 + $0x8] sm:$0xff]
        %v775 = vpack.c.bf16 %v774, %v773
        %v776 = vld [vmem:[#allocation2] sm:$0xf]
        %v777 = vld [vmem:[#allocation5] sm:$0x1]
        %v779 = vperm.slane %v777, 0
        %vm781 = vcmask 64512
        %v783 = vsel %vm781, %v775, 0
        %vm785 = vcmask 1043456
        %v787 = vsel %vm785, %v776, 0
        %789 = vmatpush.bf16.msra.mxu0 0
        %790 = vmatpush.bf16.msra.mxu0 0
        %791 = vmatpush.bf16.msra.mxu0 0
        %792 = vmatpush.bf16.msra.mxu0 0
        %793 = vmatpush.bf16.msra.mxu0 0
        %794 = vmatpush.bf16.msra.mxu0 0
        %795 = vmatpush.bf16.msra.mxu0 0
        %796 = vmatpush.bf16.msra.mxu0 %v787
        %797 = vmatmul.bf16.gmra.mxu0 %v783
        %v798 = vpop.f32.mrf.mxu0
        %v799 = vadd.f32 %v779, %v798
        %v800 = vpop.f32.mrf.mxu0
        %v801 = vadd.f32 %v779, %v800
        %802 = vdwg.mxu0
        %v803 = vmax.f32 %v799, 0.0
        %v804 = vmax.f32 %v801, 0.0
        %v805 = vpack.c.bf16 %v804, %v803
        %v806 = vld [vmem:[#allocation7] sm:$0xf]
        %v807 = vld [vmem:[#allocation7 + $0x4] sm:$0xf]
        %v808 = vld [vmem:[#allocation7 + $0x8] sm:$0xf]
        %v809 = vld [vmem:[#allocation7 + $0xc] sm:$0xf]
        %v810 = vld [vmem:[#allocation7 + $0x10] sm:$0xf]
        %v811 = vld [vmem:[#allocation7 + $0x14] sm:$0xf]
        %v812 = vld [vmem:[#allocation7 + $0x18] sm:$0xf]
        %v813 = vld [vmem:[#allocation7 + $0x1c] sm:$0xf]
        %v814 = vld [vmem:[#allocation8] sm:$0x1]
        %v816 = vperm.slane %v814, 0
        %v826 = vunpack.c.l.b16 %v806
        %v827 = vunpack.c.l.b16 %v807
        %v828 = vunpack.c.l.b16 %v808
        %v829 = vunpack.c.l.b16 %v809
        %v830 = vunpack.c.l.b16 %v810
        %v831 = vunpack.c.l.b16 %v811
        %v832 = vunpack.c.l.b16 %v812
        %v833 = vunpack.c.l.b16 %v813
        %v834 = vpack.c.b16 %v827, %v826
        %v835 = vpack.c.b16 %v829, %v828
        %v836 = vpack.c.b16 %v831, %v830
        %v837 = vpack.c.b16 %v833, %v832
        %vm842 = vcmask 523264
        %v844 = vsel %vm842, %v805, 0
        %846 = vmatpush.bf16.msra.mxu0 0
        %847 = vmatpush.bf16.msra.mxu0 0
        %848 = vmatpush.bf16.msra.mxu0 0
        %849 = vmatpush.bf16.msra.mxu0 0
        %850 = vmatpush.bf16.msra.mxu0 %v837
        %851 = vmatpush.bf16.msra.mxu0 %v836
        %852 = vmatpush.bf16.msra.mxu0 %v835
        %853 = vmatpush.bf16.msra.mxu0 %v834
        %854 = vmatmul.bf16.gmra.mxu0 %v844
        %v855 = vpop.f32.mrf.mxu0
        %v856 = vadd.f32 %v816, %v855
        %v857 = vpop.f32.mrf.mxu0
        %v858 = vadd.f32 %v816, %v857
        %859 = vdwg.mxu0
        %v860 = vmax.f32 %v856, 0.0
        %v861 = vmax.f32 %v858, 0.0
        %v862 = vpack.c.bf16 %v861, %v860
        %v863 = vld [vmem:[#allocation10] sm:$0xf]
        %v864 = vld [vmem:[#allocation10 + $0x4] sm:$0xf]
        %v865 = vld [vmem:[#allocation10 + $0x8] sm:$0xf]
        %v866 = vld [vmem:[#allocation10 + $0xc] sm:$0xf]
        %v867 = vld [vmem:[#allocation10 + $0x10] sm:$0xf]
        %v868 = vld [vmem:[#allocation10 + $0x14] sm:$0xf]
        %v869 = vld [vmem:[#allocation10 + $0x18] sm:$0xf]
        %v870 = vld [vmem:[#allocation10 + $0x1c] sm:$0xf]
        %v871 = vld [vmem:[#allocation11] sm:$0x1]
        %v873 = vperm.slane %v871, 0
        %v883 = vunpack.c.l.b16 %v863
        %v884 = vunpack.c.l.b16 %v864
        %v885 = vunpack.c.l.b16 %v865
        %v886 = vunpack.c.l.b16 %v866
        %v887 = vunpack.c.l.b16 %v867
        %v888 = vunpack.c.l.b16 %v868
        %v889 = vunpack.c.l.b16 %v869
        %v890 = vunpack.c.l.b16 %v870
        %v891 = vpack.c.b16 %v884, %v883
        %v892 = vpack.c.b16 %v886, %v885
        %v893 = vpack.c.b16 %v888, %v887
        %v894 = vpack.c.b16 %v890, %v889
        %v900 = vsel %vm842, %v862, 0
        %902 = vmatpush.bf16.msra.mxu0 0
        %903 = vmatpush.bf16.msra.mxu0 0
        %904 = vmatpush.bf16.msra.mxu0 0
        %905 = vmatpush.bf16.msra.mxu0 0
        %906 = vmatpush.bf16.msra.mxu0 %v894
        %907 = vmatpush.bf16.msra.mxu0 %v893
        %908 = vmatpush.bf16.msra.mxu0 %v892
        %909 = vmatpush.bf16.msra.mxu0 %v891
        %910 = vmatmul.bf16.gmra.mxu0 %v900
        %v911 = vpop.f32.mrf.mxu0
        %v912 = vadd.f32 %v873, %v911
        %v913 = vpop.f32.mrf.mxu0
        %v914 = vadd.f32 %v873, %v913
        %915 = vdwg.mxu0
        %v916 = vmax.f32 %v912, 0.0
        %v917 = vmax.f32 %v914, 0.0
        %v918 = vpack.c.bf16 %v917, %v916
        %v919 = vld [vmem:[#allocation13] sm:$0xf]
        %v920 = vld [vmem:[#allocation13 + $0x4] sm:$0xf]
        %v921 = vld [vmem:[#allocation13 + $0x8] sm:$0xf]
        %v922 = vld [vmem:[#allocation13 + $0xc] sm:$0xf]
        %v923 = vld [vmem:[#allocation13 + $0x10] sm:$0xf]
        %v924 = vld [vmem:[#allocation13 + $0x14] sm:$0xf]
        %v925 = vld [vmem:[#allocation13 + $0x18] sm:$0xf]
        %v926 = vld [vmem:[#allocation13 + $0x1c] sm:$0xf]
        %v927 = vld [vmem:[#allocation13 + $0x20] sm:$0xf]
        %v928 = vld [vmem:[#allocation13 + $0x24] sm:$0xf]
        %v929 = vld [vmem:[#allocation13 + $0x28] sm:$0xf]
        %v930 = vld [vmem:[#allocation13 + $0x2c] sm:$0xf]
        %v931 = vld [vmem:[#allocation13 + $0x30] sm:$0xf]
        %v932 = vld [vmem:[#allocation13 + $0x34] sm:$0xf]
        %v933 = vld [vmem:[#allocation13 + $0x38] sm:$0xf]
        %v934 = vld [vmem:[#allocation13 + $0x3c] sm:$0xf]
        %v935 = vld [vmem:[#allocation14] sm:$0x1]
        %v937 = vperm.slane %v935, 0
        %v955 = vunpack.c.l.b16 %v919
        %v956 = vunpack.c.l.b16 %v920
        %v957 = vunpack.c.l.b16 %v921
        %v958 = vunpack.c.l.b16 %v922
        %v959 = vunpack.c.l.b16 %v923
        %v960 = vunpack.c.l.b16 %v924
        %v961 = vunpack.c.l.b16 %v925
        %v962 = vunpack.c.l.b16 %v926
        %v963 = vunpack.c.l.b16 %v927
        %v964 = vunpack.c.l.b16 %v928
        %v965 = vunpack.c.l.b16 %v929
        %v966 = vunpack.c.l.b16 %v930
        %v967 = vunpack.c.l.b16 %v931
        %v968 = vunpack.c.l.b16 %v932
        %v969 = vunpack.c.l.b16 %v933
        %v970 = vunpack.c.l.b16 %v934
        %v971 = vpack.c.b16 %v956, %v955
        %v972 = vpack.c.b16 %v958, %v957
        %v973 = vpack.c.b16 %v960, %v959
        %v974 = vpack.c.b16 %v962, %v961
        %v975 = vpack.c.b16 %v964, %v963
        %v976 = vpack.c.b16 %v966, %v965
        %v977 = vpack.c.b16 %v968, %v967
        %v978 = vpack.c.b16 %v970, %v969
        %987 = vmatpush.bf16.msra.mxu0 %v978
        %988 = vmatpush.bf16.msra.mxu0 %v977
        %989 = vmatpush.bf16.msra.mxu0 %v976
        %990 = vmatpush.bf16.msra.mxu0 %v975
        %991 = vmatpush.bf16.msra.mxu0 %v974
        %992 = vmatpush.bf16.msra.mxu0 %v973
        %993 = vmatpush.bf16.msra.mxu0 %v972
        %994 = vmatpush.bf16.msra.mxu0 %v971
        %995 = vmatmul.bf16.gmra.mxu0 %v918
        %v996 = vpop.f32.mrf.mxu0
        %v997 = vadd.f32 %v937, %v996
        %v998 = vpop.f32.mrf.mxu0
        %v999 = vadd.f32 %v937, %v998
        %1000 = vdwg.mxu0
        %v1001 = vmax.f32 %v997, 0.0
        %v1002 = vmax.f32 %v999, 0.0
        %v1003 = vpack.c.bf16 %v1001, %v1001
        %v1004 = vpack.c.bf16 %v1002, %v1002
        %v1005 = vld [vmem:[#allocation16] sm:$0xff]
        %v1006 = vld [vmem:[#allocation16 + $0x8] sm:$0xff]
        %v1007 = vld [vmem:[#allocation16 + $0x10] sm:$0xff]
        %v1008 = vld [vmem:[#allocation16 + $0x18] sm:$0xff]
        %v1009 = vld [vmem:[#allocation16 + $0x20] sm:$0xff]
        %v1010 = vld [vmem:[#allocation16 + $0x28] sm:$0xff]
        %v1011 = vld [vmem:[#allocation16 + $0x30] sm:$0xff]
        %v1012 = vld [vmem:[#allocation16 + $0x38] sm:$0xff]
        %v1013 = vld [vmem:[#allocation16 + $0x40] sm:$0xff]
        %v1014 = vld [vmem:[#allocation16 + $0x48] sm:$0xff]
        %v1015 = vld [vmem:[#allocation16 + $0x50] sm:$0xff]
        %v1016 = vld [vmem:[#allocation16 + $0x58] sm:$0xff]
        %v1017 = vld [vmem:[#allocation16 + $0x60] sm:$0xff]
        %v1018 = vld [vmem:[#allocation16 + $0x68] sm:$0xff]
        %v1019 = vld [vmem:[#allocation16 + $0x70] sm:$0xff]
        %v1020 = vld [vmem:[#allocation16 + $0x78] sm:$0xff]
        %v1021 = vld [vmem:[#allocation16 + $0x80] sm:$0xff]
        %v1022 = vld [vmem:[#allocation16 + $0x88] sm:$0xff]
        %v1023 = vld [vmem:[#allocation16 + $0x90] sm:$0xff]
        %v1024 = vld [vmem:[#allocation16 + $0x98] sm:$0xff]
        %v1025 = vld [vmem:[#allocation16 + $0xa0] sm:$0xff]
        %v1026 = vld [vmem:[#allocation16 + $0xa8] sm:$0xff]
        %v1027 = vld [vmem:[#allocation16 + $0xb0] sm:$0xff]
        %v1028 = vld [vmem:[#allocation16 + $0xb8] sm:$0xff]
        %v1029 = vld [vmem:[#allocation16 + $0xc0] sm:$0xff]
        %v1030 = vld [vmem:[#allocation16 + $0xc8] sm:$0xff]
        %v1031 = vld [vmem:[#allocation16 + $0xd0] sm:$0xff]
        %v1032 = vld [vmem:[#allocation16 + $0xd8] sm:$0xff]
        %v1033 = vld [vmem:[#allocation16 + $0xe0] sm:$0xff]
        %v1034 = vld [vmem:[#allocation16 + $0xe8] sm:$0xff]
        %v1035 = vld [vmem:[#allocation16 + $0xf0] sm:$0xff]
        %v1036 = vld [vmem:[#allocation16 + $0xf8] sm:$0xff]
        %v1037 = vld [vmem:[#allocation16 + $0x100] sm:$0xff]
        %v1038 = vld [vmem:[#allocation16 + $0x108] sm:$0xff]
        %v1039 = vld [vmem:[#allocation16 + $0x110] sm:$0xff]
        %v1040 = vld [vmem:[#allocation16 + $0x118] sm:$0xff]
        %v1041 = vld [vmem:[#allocation16 + $0x120] sm:$0xff]
        %v1042 = vld [vmem:[#allocation16 + $0x128] sm:$0xff]
        %v1043 = vld [vmem:[#allocation16 + $0x130] sm:$0xff]
        %v1044 = vld [vmem:[#allocation16 + $0x138] sm:$0xff]
        %v1045 = vld [vmem:[#allocation16 + $0x140] sm:$0xff]
        %v1046 = vld [vmem:[#allocation16 + $0x148] sm:$0xff]
        %v1047 = vld [vmem:[#allocation16 + $0x150] sm:$0xff]
        %v1048 = vld [vmem:[#allocation16 + $0x158] sm:$0xff]
        %v1049 = vld [vmem:[#allocation16 + $0x160] sm:$0xff]
        %v1050 = vld [vmem:[#allocation16 + $0x168] sm:$0xff]
        %v1051 = vld [vmem:[#allocation16 + $0x170] sm:$0xff]
        %v1052 = vld [vmem:[#allocation16 + $0x178] sm:$0xff]
        %v1053 = vld [vmem:[#allocation16 + $0x180] sm:$0xff]
        %v1054 = vld [vmem:[#allocation16 + $0x188] sm:$0xff]
        %v1055 = vld [vmem:[#allocation16 + $0x190] sm:$0xff]
        %v1056 = vld [vmem:[#allocation16 + $0x198] sm:$0xff]
        %v1057 = vld [vmem:[#allocation16 + $0x1a0] sm:$0xff]
        %v1058 = vld [vmem:[#allocation16 + $0x1a8] sm:$0xff]
        %v1059 = vld [vmem:[#allocation16 + $0x1b0] sm:$0xff]
        %v1060 = vld [vmem:[#allocation16 + $0x1b8] sm:$0xff]
        %v1061 = vld [vmem:[#allocation16 + $0x1c0] sm:$0xff]
        %v1062 = vld [vmem:[#allocation16 + $0x1c8] sm:$0xff]
        %v1063 = vld [vmem:[#allocation16 + $0x1d0] sm:$0xff]
        %v1064 = vld [vmem:[#allocation16 + $0x1d8] sm:$0xff]
        %v1065 = vld [vmem:[#allocation16 + $0x1e0] sm:$0xff]
        %v1066 = vld [vmem:[#allocation16 + $0x1e8] sm:$0xff]
        %v1067 = vld [vmem:[#allocation16 + $0x1f0] sm:$0xff]
        %v1068 = vld [vmem:[#allocation16 + $0x1f8] sm:$0xff]
        %v1069 = vld [vmem:[#allocation17] sm:$0xff]
        %v1071 = vperm.slane %v1069, 0
        %v1072 = vperm.slane %v1069, 1
        %v1073 = vperm.slane %v1069, 2
        %v1074 = vperm.slane %v1069, 3
        %v1075 = vperm.slane %v1069, 4
        %v1076 = vperm.slane %v1069, 5
        %v1077 = vperm.slane %v1069, 6
        %v1078 = vperm.slane %v1069, 7
        %v1089 = vunpack.c.l.b16 %v1003
        %v1090 = vunpack.c.l.b16 %v1004
        %v1091 = vpack.c.b16 %v1090, %v1089
        %v1157 = vunpack.c.l.b16 %v1005
        %v1158 = vunpack.c.h.b16 %v1005
        %v1159 = vunpack.c.l.b16 %v1006
        %v1160 = vunpack.c.h.b16 %v1006
        %v1161 = vunpack.c.l.b16 %v1007
        %v1162 = vunpack.c.h.b16 %v1007
        %v1163 = vunpack.c.l.b16 %v1008
        %v1164 = vunpack.c.h.b16 %v1008
        %v1165 = vunpack.c.l.b16 %v1009
        %v1166 = vunpack.c.h.b16 %v1009
        %v1167 = vunpack.c.l.b16 %v1010
        %v1168 = vunpack.c.h.b16 %v1010
        %v1169 = vunpack.c.l.b16 %v1011
        %v1170 = vunpack.c.h.b16 %v1011
        %v1171 = vunpack.c.l.b16 %v1012
        %v1172 = vunpack.c.h.b16 %v1012
        %v1173 = vunpack.c.l.b16 %v1013
        %v1174 = vunpack.c.h.b16 %v1013
        %v1175 = vunpack.c.l.b16 %v1014
        %v1176 = vunpack.c.h.b16 %v1014
        %v1177 = vunpack.c.l.b16 %v1015
        %v1178 = vunpack.c.h.b16 %v1015
        %v1179 = vunpack.c.l.b16 %v1016
        %v1180 = vunpack.c.h.b16 %v1016
        %v1181 = vunpack.c.l.b16 %v1017
        %v1182 = vunpack.c.h.b16 %v1017
        %v1183 = vunpack.c.l.b16 %v1018
        %v1184 = vunpack.c.h.b16 %v1018
        %v1185 = vunpack.c.l.b16 %v1019
        %v1186 = vunpack.c.h.b16 %v1019
        %v1187 = vunpack.c.l.b16 %v1020
        %v1188 = vunpack.c.h.b16 %v1020
        %v1189 = vunpack.c.l.b16 %v1021
        %v1190 = vunpack.c.h.b16 %v1021
        %v1191 = vunpack.c.l.b16 %v1022
        %v1192 = vunpack.c.h.b16 %v1022
        %v1193 = vunpack.c.l.b16 %v1023
        %v1194 = vunpack.c.h.b16 %v1023
        %v1195 = vunpack.c.l.b16 %v1024
        %v1196 = vunpack.c.h.b16 %v1024
        %v1197 = vunpack.c.l.b16 %v1025
        %v1198 = vunpack.c.h.b16 %v1025
        %v1199 = vunpack.c.l.b16 %v1026
        %v1200 = vunpack.c.h.b16 %v1026
        %v1201 = vunpack.c.l.b16 %v1027
        %v1202 = vunpack.c.h.b16 %v1027
        %v1203 = vunpack.c.l.b16 %v1028
        %v1204 = vunpack.c.h.b16 %v1028
        %v1205 = vunpack.c.l.b16 %v1029
        %v1206 = vunpack.c.h.b16 %v1029
        %v1207 = vunpack.c.l.b16 %v1030
        %v1208 = vunpack.c.h.b16 %v1030
        %v1209 = vunpack.c.l.b16 %v1031
        %v1210 = vunpack.c.h.b16 %v1031
        %v1211 = vunpack.c.l.b16 %v1032
        %v1212 = vunpack.c.h.b16 %v1032
        %v1213 = vunpack.c.l.b16 %v1033
        %v1214 = vunpack.c.h.b16 %v1033
        %v1215 = vunpack.c.l.b16 %v1034
        %v1216 = vunpack.c.h.b16 %v1034
        %v1217 = vunpack.c.l.b16 %v1035
        %v1218 = vunpack.c.h.b16 %v1035
        %v1219 = vunpack.c.l.b16 %v1036
        %v1220 = vunpack.c.h.b16 %v1036
        %v1221 = vunpack.c.l.b16 %v1037
        %v1222 = vunpack.c.h.b16 %v1037
        %v1223 = vunpack.c.l.b16 %v1038
        %v1224 = vunpack.c.h.b16 %v1038
        %v1225 = vunpack.c.l.b16 %v1039
        %v1226 = vunpack.c.h.b16 %v1039
        %v1227 = vunpack.c.l.b16 %v1040
        %v1228 = vunpack.c.h.b16 %v1040
        %v1229 = vunpack.c.l.b16 %v1041
        %v1230 = vunpack.c.h.b16 %v1041
        %v1231 = vunpack.c.l.b16 %v1042
        %v1232 = vunpack.c.h.b16 %v1042
        %v1233 = vunpack.c.l.b16 %v1043
        %v1234 = vunpack.c.h.b16 %v1043
        %v1235 = vunpack.c.l.b16 %v1044
        %v1236 = vunpack.c.h.b16 %v1044
        %v1237 = vunpack.c.l.b16 %v1045
        %v1238 = vunpack.c.h.b16 %v1045
        %v1239 = vunpack.c.l.b16 %v1046
        %v1240 = vunpack.c.h.b16 %v1046
        %v1241 = vunpack.c.l.b16 %v1047
        %v1242 = vunpack.c.h.b16 %v1047
        %v1243 = vunpack.c.l.b16 %v1048
        %v1244 = vunpack.c.h.b16 %v1048
        %v1245 = vunpack.c.l.b16 %v1049
        %v1246 = vunpack.c.h.b16 %v1049
        %v1247 = vunpack.c.l.b16 %v1050
        %v1248 = vunpack.c.h.b16 %v1050
        %v1249 = vunpack.c.l.b16 %v1051
        %v1250 = vunpack.c.h.b16 %v1051
        %v1251 = vunpack.c.l.b16 %v1052
        %v1252 = vunpack.c.h.b16 %v1052
        %v1253 = vunpack.c.l.b16 %v1053
        %v1254 = vunpack.c.h.b16 %v1053
        %v1255 = vunpack.c.l.b16 %v1054
        %v1256 = vunpack.c.h.b16 %v1054
        %v1257 = vunpack.c.l.b16 %v1055
        %v1258 = vunpack.c.h.b16 %v1055
        %v1259 = vunpack.c.l.b16 %v1056
        %v1260 = vunpack.c.h.b16 %v1056
        %v1261 = vunpack.c.l.b16 %v1057
        %v1262 = vunpack.c.h.b16 %v1057
        %v1263 = vunpack.c.l.b16 %v1058
        %v1264 = vunpack.c.h.b16 %v1058
        %v1265 = vunpack.c.l.b16 %v1059
        %v1266 = vunpack.c.h.b16 %v1059
        %v1267 = vunpack.c.l.b16 %v1060
        %v1268 = vunpack.c.h.b16 %v1060
        %v1269 = vunpack.c.l.b16 %v1061
        %v1270 = vunpack.c.h.b16 %v1061
        %v1271 = vunpack.c.l.b16 %v1062
        %v1272 = vunpack.c.h.b16 %v1062
        %v1273 = vunpack.c.l.b16 %v1063
        %v1274 = vunpack.c.h.b16 %v1063
        %v1275 = vunpack.c.l.b16 %v1064
        %v1276 = vunpack.c.h.b16 %v1064
        %v1277 = vunpack.c.l.b16 %v1065
        %v1278 = vunpack.c.h.b16 %v1065
        %v1279 = vunpack.c.l.b16 %v1066
        %v1280 = vunpack.c.h.b16 %v1066
        %v1281 = vunpack.c.l.b16 %v1067
        %v1282 = vunpack.c.h.b16 %v1067
        %v1283 = vunpack.c.l.b16 %v1068
        %v1284 = vunpack.c.h.b16 %v1068
        %v1285 = vpack.c.b16 %v1165, %v1157
        %v1286 = vpack.c.b16 %v1166, %v1158
        %v1287 = vpack.c.b16 %v1167, %v1159
        %v1288 = vpack.c.b16 %v1168, %v1160
        %v1289 = vpack.c.b16 %v1169, %v1161
        %v1290 = vpack.c.b16 %v1170, %v1162
        %v1291 = vpack.c.b16 %v1171, %v1163
        %v1292 = vpack.c.b16 %v1172, %v1164
        %v1293 = vpack.c.b16 %v1181, %v1173
        %v1294 = vpack.c.b16 %v1182, %v1174
        %v1295 = vpack.c.b16 %v1183, %v1175
        %v1296 = vpack.c.b16 %v1184, %v1176
        %v1297 = vpack.c.b16 %v1185, %v1177
        %v1298 = vpack.c.b16 %v1186, %v1178
        %v1299 = vpack.c.b16 %v1187, %v1179
        %v1300 = vpack.c.b16 %v1188, %v1180
        %v1301 = vpack.c.b16 %v1197, %v1189
        %v1302 = vpack.c.b16 %v1198, %v1190
        %v1303 = vpack.c.b16 %v1199, %v1191
        %v1304 = vpack.c.b16 %v1200, %v1192
        %v1305 = vpack.c.b16 %v1201, %v1193
        %v1306 = vpack.c.b16 %v1202, %v1194
        %v1307 = vpack.c.b16 %v1203, %v1195
        %v1308 = vpack.c.b16 %v1204, %v1196
        %v1309 = vpack.c.b16 %v1213, %v1205
        %v1310 = vpack.c.b16 %v1214, %v1206
        %v1311 = vpack.c.b16 %v1215, %v1207
        %v1312 = vpack.c.b16 %v1216, %v1208
        %v1313 = vpack.c.b16 %v1217, %v1209
        %v1314 = vpack.c.b16 %v1218, %v1210
        %v1315 = vpack.c.b16 %v1219, %v1211
        %v1316 = vpack.c.b16 %v1220, %v1212
        %v1317 = vpack.c.b16 %v1229, %v1221
        %v1318 = vpack.c.b16 %v1230, %v1222
        %v1319 = vpack.c.b16 %v1231, %v1223
        %v1320 = vpack.c.b16 %v1232, %v1224
        %v1321 = vpack.c.b16 %v1233, %v1225
        %v1322 = vpack.c.b16 %v1234, %v1226
        %v1323 = vpack.c.b16 %v1235, %v1227
        %v1324 = vpack.c.b16 %v1236, %v1228
        %v1325 = vpack.c.b16 %v1245, %v1237
        %v1326 = vpack.c.b16 %v1246, %v1238
        %v1327 = vpack.c.b16 %v1247, %v1239
        %v1328 = vpack.c.b16 %v1248, %v1240
        %v1329 = vpack.c.b16 %v1249, %v1241
        %v1330 = vpack.c.b16 %v1250, %v1242
        %v1331 = vpack.c.b16 %v1251, %v1243
        %v1332 = vpack.c.b16 %v1252, %v1244
        %v1333 = vpack.c.b16 %v1261, %v1253
        %v1334 = vpack.c.b16 %v1262, %v1254
        %v1335 = vpack.c.b16 %v1263, %v1255
        %v1336 = vpack.c.b16 %v1264, %v1256
        %v1337 = vpack.c.b16 %v1265, %v1257
        %v1338 = vpack.c.b16 %v1266, %v1258
        %v1339 = vpack.c.b16 %v1267, %v1259
        %v1340 = vpack.c.b16 %v1268, %v1260
        %v1341 = vpack.c.b16 %v1277, %v1269
        %v1342 = vpack.c.b16 %v1278, %v1270
        %v1343 = vpack.c.b16 %v1279, %v1271
        %v1344 = vpack.c.b16 %v1280, %v1272
        %v1345 = vpack.c.b16 %v1281, %v1273
        %v1346 = vpack.c.b16 %v1282, %v1274
        %v1347 = vpack.c.b16 %v1283, %v1275
        %v1348 = vpack.c.b16 %v1284, %v1276
        %1413 = vmatpush.bf16.msra.mxu0 %v1341
        %1414 = vmatpush.bf16.msra.mxu0 %v1333
        %1415 = vmatpush.bf16.msra.mxu0 %v1325
        %1416 = vmatpush.bf16.msra.mxu0 %v1317
        %1417 = vmatpush.bf16.msra.mxu0 %v1309
        %1418 = vmatpush.bf16.msra.mxu0 %v1301
        %1419 = vmatpush.bf16.msra.mxu0 %v1293
        %1420 = vmatpush.bf16.msra.mxu0 %v1285
        %1421 = vmatmul.bf16.gmra.mxu0 %v1091
        %v1422 = vpop.f32.mrf.mxu0
        %v1423 = vadd.f32 %v1071, %v1422
        %v1424 = vpop.f32.mrf.mxu0
        %v1425 = vadd.f32 %v1071, %v1424
        %1426 = vdwg.mxu0
        %1427 = vmatpush.bf16.msra.mxu0 %v1342
        %1428 = vmatpush.bf16.msra.mxu0 %v1334
        %1429 = vmatpush.bf16.msra.mxu0 %v1326
        %1430 = vmatpush.bf16.msra.mxu0 %v1318
        %1431 = vmatpush.bf16.msra.mxu0 %v1310
        %1432 = vmatpush.bf16.msra.mxu0 %v1302
        %1433 = vmatpush.bf16.msra.mxu0 %v1294
        %1434 = vmatpush.bf16.msra.mxu0 %v1286
        %1435 = vmatmul.bf16.gmra.mxu0 %v1091
        %v1436 = vpop.f32.mrf.mxu0
        %v1437 = vadd.f32 %v1072, %v1436
        %v1438 = vpop.f32.mrf.mxu0
        %v1439 = vadd.f32 %v1072, %v1438
        %1440 = vdwg.mxu0
        %1441 = vmatpush.bf16.msra.mxu0 %v1343
        %1442 = vmatpush.bf16.msra.mxu0 %v1335
        %1443 = vmatpush.bf16.msra.mxu0 %v1327
        %1444 = vmatpush.bf16.msra.mxu0 %v1319
        %1445 = vmatpush.bf16.msra.mxu0 %v1311
        %1446 = vmatpush.bf16.msra.mxu0 %v1303
        %1447 = vmatpush.bf16.msra.mxu0 %v1295
        %1448 = vmatpush.bf16.msra.mxu0 %v1287
        %1449 = vmatmul.bf16.gmra.mxu0 %v1091
        %v1450 = vpop.f32.mrf.mxu0
        %v1451 = vadd.f32 %v1073, %v1450
        %v1452 = vpop.f32.mrf.mxu0
        %v1453 = vadd.f32 %v1073, %v1452
        %1454 = vdwg.mxu0
        %1455 = vmatpush.bf16.msra.mxu0 %v1344
        %1456 = vmatpush.bf16.msra.mxu0 %v1336
        %1457 = vmatpush.bf16.msra.mxu0 %v1328
        %1458 = vmatpush.bf16.msra.mxu0 %v1320
        %1459 = vmatpush.bf16.msra.mxu0 %v1312
        %1460 = vmatpush.bf16.msra.mxu0 %v1304
        %1461 = vmatpush.bf16.msra.mxu0 %v1296
        %1462 = vmatpush.bf16.msra.mxu0 %v1288
        %1463 = vmatmul.bf16.gmra.mxu0 %v1091
        %v1464 = vpop.f32.mrf.mxu0
        %v1465 = vadd.f32 %v1074, %v1464
        %v1466 = vpop.f32.mrf.mxu0
        %v1467 = vadd.f32 %v1074, %v1466
        %1468 = vdwg.mxu0
        %1469 = vmatpush.bf16.msra.mxu0 %v1345
        %1470 = vmatpush.bf16.msra.mxu0 %v1337
        %1471 = vmatpush.bf16.msra.mxu0 %v1329
        %1472 = vmatpush.bf16.msra.mxu0 %v1321
        %1473 = vmatpush.bf16.msra.mxu0 %v1313
        %1474 = vmatpush.bf16.msra.mxu0 %v1305
        %1475 = vmatpush.bf16.msra.mxu0 %v1297
        %1476 = vmatpush.bf16.msra.mxu0 %v1289
        %1477 = vmatmul.bf16.gmra.mxu0 %v1091
        %v1478 = vpop.f32.mrf.mxu0
        %v1479 = vadd.f32 %v1075, %v1478
        %v1480 = vpop.f32.mrf.mxu0
        %v1481 = vadd.f32 %v1075, %v1480
        %1482 = vdwg.mxu0
        %1483 = vmatpush.bf16.msra.mxu0 %v1346
        %1484 = vmatpush.bf16.msra.mxu0 %v1338
        %1485 = vmatpush.bf16.msra.mxu0 %v1330
        %1486 = vmatpush.bf16.msra.mxu0 %v1322
        %1487 = vmatpush.bf16.msra.mxu0 %v1314
        %1488 = vmatpush.bf16.msra.mxu0 %v1306
        %1489 = vmatpush.bf16.msra.mxu0 %v1298
        %1490 = vmatpush.bf16.msra.mxu0 %v1290
        %1491 = vmatmul.bf16.gmra.mxu0 %v1091
        %v1492 = vpop.f32.mrf.mxu0
        %v1493 = vadd.f32 %v1076, %v1492
        %v1494 = vpop.f32.mrf.mxu0
        %v1495 = vadd.f32 %v1076, %v1494
        %1496 = vdwg.mxu0
        %1497 = vmatpush.bf16.msra.mxu0 %v1347
        %1498 = vmatpush.bf16.msra.mxu0 %v1339
        %1499 = vmatpush.bf16.msra.mxu0 %v1331
        %1500 = vmatpush.bf16.msra.mxu0 %v1323
        %1501 = vmatpush.bf16.msra.mxu0 %v1315
        %1502 = vmatpush.bf16.msra.mxu0 %v1307
        %1503 = vmatpush.bf16.msra.mxu0 %v1299
        %1504 = vmatpush.bf16.msra.mxu0 %v1291
        %1505 = vmatmul.bf16.gmra.mxu0 %v1091
        %v1506 = vpop.f32.mrf.mxu0
        %v1507 = vadd.f32 %v1077, %v1506
        %v1508 = vpop.f32.mrf.mxu0
        %v1509 = vadd.f32 %v1077, %v1508
        %1510 = vdwg.mxu0
        %1511 = vmatpush.bf16.msra.mxu0 %v1348
        %1512 = vmatpush.bf16.msra.mxu0 %v1340
        %1513 = vmatpush.bf16.msra.mxu0 %v1332
        %1514 = vmatpush.bf16.msra.mxu0 %v1324
        %1515 = vmatpush.bf16.msra.mxu0 %v1316
        %1516 = vmatpush.bf16.msra.mxu0 %v1308
        %1517 = vmatpush.bf16.msra.mxu0 %v1300
        %1518 = vmatpush.bf16.msra.mxu0 %v1292
        %1519 = vmatmul.bf16.gmra.mxu0 %v1091
        %v1520 = vpop.f32.mrf.mxu0
        %v1521 = vadd.f32 %v1078, %v1520
        %v1522 = vpop.f32.mrf.mxu0
        %v1523 = vadd.f32 %v1078, %v1522
        %1524 = vdwg.mxu0
        %v1525 = vmax.f32 %v1423, 0.0
        %v1526 = vmax.f32 %v1437, 0.0
        %v1527 = vmax.f32 %v1451, 0.0
        %v1528 = vmax.f32 %v1465, 0.0
        %v1529 = vmax.f32 %v1479, 0.0
        %v1530 = vmax.f32 %v1493, 0.0
        %v1531 = vmax.f32 %v1507, 0.0
        %v1532 = vmax.f32 %v1521, 0.0
        %v1533 = vmax.f32 %v1425, 0.0
        %v1534 = vmax.f32 %v1439, 0.0
        %v1535 = vmax.f32 %v1453, 0.0
        %v1536 = vmax.f32 %v1467, 0.0
        %v1537 = vmax.f32 %v1481, 0.0
        %v1538 = vmax.f32 %v1495, 0.0
        %v1539 = vmax.f32 %v1509, 0.0
        %v1540 = vmax.f32 %v1523, 0.0
        %v1541 = vpack.c.bf16 %v1533, %v1525
        %v1542 = vpack.c.bf16 %v1534, %v1526
        %v1543 = vpack.c.bf16 %v1535, %v1527
        %v1544 = vpack.c.bf16 %v1536, %v1528
        %v1545 = vpack.c.bf16 %v1537, %v1529
        %v1546 = vpack.c.bf16 %v1538, %v1530
        %v1547 = vpack.c.bf16 %v1539, %v1531
        %v1548 = vpack.c.bf16 %v1540, %v1532
        %v1549 = vld [vmem:[#allocation19] sm:$0xff]
        %v1550 = vld [vmem:[#allocation19 + $0x8] sm:$0xff]
        %v1551 = vld [vmem:[#allocation19 + $0x10] sm:$0xff]
        %v1552 = vld [vmem:[#allocation19 + $0x18] sm:$0xff]
        %v1553 = vld [vmem:[#allocation19 + $0x20] sm:$0xff]
        %v1554 = vld [vmem:[#allocation19 + $0x28] sm:$0xff]
        %v1555 = vld [vmem:[#allocation19 + $0x30] sm:$0xff]
        %v1556 = vld [vmem:[#allocation19 + $0x38] sm:$0xff]
        %v1557 = vld [vmem:[#allocation19 + $0x40] sm:$0xff]
        %v1558 = vld [vmem:[#allocation19 + $0x48] sm:$0xff]
        %v1559 = vld [vmem:[#allocation19 + $0x50] sm:$0xff]
        %v1560 = vld [vmem:[#allocation19 + $0x58] sm:$0xff]
        %v1561 = vld [vmem:[#allocation19 + $0x60] sm:$0xff]
        %v1562 = vld [vmem:[#allocation19 + $0x68] sm:$0xff]
        %v1563 = vld [vmem:[#allocation19 + $0x70] sm:$0xff]
        %v1564 = vld [vmem:[#allocation19 + $0x78] sm:$0xff]
        %v1565 = vld [vmem:[#allocation19 + $0x80] sm:$0xff]
        %v1566 = vld [vmem:[#allocation19 + $0x88] sm:$0xff]
        %v1567 = vld [vmem:[#allocation19 + $0x90] sm:$0xff]
        %v1568 = vld [vmem:[#allocation19 + $0x98] sm:$0xff]
        %v1569 = vld [vmem:[#allocation19 + $0xa0] sm:$0xff]
        %v1570 = vld [vmem:[#allocation19 + $0xa8] sm:$0xff]
        %v1571 = vld [vmem:[#allocation19 + $0xb0] sm:$0xff]
        %v1572 = vld [vmem:[#allocation19 + $0xb8] sm:$0xff]
        %v1573 = vld [vmem:[#allocation19 + $0xc0] sm:$0xff]
        %v1574 = vld [vmem:[#allocation19 + $0xc8] sm:$0xff]
        %v1575 = vld [vmem:[#allocation19 + $0xd0] sm:$0xff]
        %v1576 = vld [vmem:[#allocation19 + $0xd8] sm:$0xff]
        %v1577 = vld [vmem:[#allocation19 + $0xe0] sm:$0xff]
        %v1578 = vld [vmem:[#allocation19 + $0xe8] sm:$0xff]
        %v1579 = vld [vmem:[#allocation19 + $0xf0] sm:$0xff]
        %v1580 = vld [vmem:[#allocation19 + $0xf8] sm:$0xff]
        %v1581 = vld [vmem:[#allocation19 + $0x100] sm:$0xff]
        %v1582 = vld [vmem:[#allocation19 + $0x108] sm:$0xff]
        %v1583 = vld [vmem:[#allocation19 + $0x110] sm:$0xff]
        %v1584 = vld [vmem:[#allocation19 + $0x118] sm:$0xff]
        %v1585 = vld [vmem:[#allocation19 + $0x120] sm:$0xff]
        %v1586 = vld [vmem:[#allocation19 + $0x128] sm:$0xff]
        %v1587 = vld [vmem:[#allocation19 + $0x130] sm:$0xff]
        %v1588 = vld [vmem:[#allocation19 + $0x138] sm:$0xff]
        %v1589 = vld [vmem:[#allocation19 + $0x140] sm:$0xff]
        %v1590 = vld [vmem:[#allocation19 + $0x148] sm:$0xff]
        %v1591 = vld [vmem:[#allocation19 + $0x150] sm:$0xff]
        %v1592 = vld [vmem:[#allocation19 + $0x158] sm:$0xff]
        %v1593 = vld [vmem:[#allocation19 + $0x160] sm:$0xff]
        %v1594 = vld [vmem:[#allocation19 + $0x168] sm:$0xff]
        %v1595 = vld [vmem:[#allocation19 + $0x170] sm:$0xff]
        %v1596 = vld [vmem:[#allocation19 + $0x178] sm:$0xff]
        %v1597 = vld [vmem:[#allocation19 + $0x180] sm:$0xff]
        %v1598 = vld [vmem:[#allocation19 + $0x188] sm:$0xff]
        %v1599 = vld [vmem:[#allocation19 + $0x190] sm:$0xff]
        %v1600 = vld [vmem:[#allocation19 + $0x198] sm:$0xff]
        %v1601 = vld [vmem:[#allocation19 + $0x1a0] sm:$0xff]
        %v1602 = vld [vmem:[#allocation19 + $0x1a8] sm:$0xff]
        %v1603 = vld [vmem:[#allocation19 + $0x1b0] sm:$0xff]
        %v1604 = vld [vmem:[#allocation19 + $0x1b8] sm:$0xff]
        %v1605 = vld [vmem:[#allocation19 + $0x1c0] sm:$0xff]
        %v1606 = vld [vmem:[#allocation19 + $0x1c8] sm:$0xff]
        %v1607 = vld [vmem:[#allocation19 + $0x1d0] sm:$0xff]
        %v1608 = vld [vmem:[#allocation19 + $0x1d8] sm:$0xff]
        %v1609 = vld [vmem:[#allocation19 + $0x1e0] sm:$0xff]
        %v1610 = vld [vmem:[#allocation19 + $0x1e8] sm:$0xff]
        %v1611 = vld [vmem:[#allocation19 + $0x1f0] sm:$0xff]
        %v1612 = vld [vmem:[#allocation19 + $0x1f8] sm:$0xff]
        %v1613 = vld [vmem:[#allocation19 + $0x200] sm:$0xff]
        %v1614 = vld [vmem:[#allocation19 + $0x208] sm:$0xff]
        %v1615 = vld [vmem:[#allocation19 + $0x210] sm:$0xff]
        %v1616 = vld [vmem:[#allocation19 + $0x218] sm:$0xff]
        %v1617 = vld [vmem:[#allocation19 + $0x220] sm:$0xff]
        %v1618 = vld [vmem:[#allocation19 + $0x228] sm:$0xff]
        %v1619 = vld [vmem:[#allocation19 + $0x230] sm:$0xff]
        %v1620 = vld [vmem:[#allocation19 + $0x238] sm:$0xff]
        %v1621 = vld [vmem:[#allocation19 + $0x240] sm:$0xff]
        %v1622 = vld [vmem:[#allocation19 + $0x248] sm:$0xff]
        %v1623 = vld [vmem:[#allocation19 + $0x250] sm:$0xff]
        %v1624 = vld [vmem:[#allocation19 + $0x258] sm:$0xff]
        %v1625 = vld [vmem:[#allocation19 + $0x260] sm:$0xff]
        %v1626 = vld [vmem:[#allocation19 + $0x268] sm:$0xff]
        %v1627 = vld [vmem:[#allocation19 + $0x270] sm:$0xff]
        %v1628 = vld [vmem:[#allocation19 + $0x278] sm:$0xff]
        %v1629 = vld [vmem:[#allocation19 + $0x280] sm:$0xff]
        %v1630 = vld [vmem:[#allocation19 + $0x288] sm:$0xff]
        %v1631 = vld [vmem:[#allocation19 + $0x290] sm:$0xff]
        %v1632 = vld [vmem:[#allocation19 + $0x298] sm:$0xff]
        %v1633 = vld [vmem:[#allocation19 + $0x2a0] sm:$0xff]
        %v1634 = vld [vmem:[#allocation19 + $0x2a8] sm:$0xff]
        %v1635 = vld [vmem:[#allocation19 + $0x2b0] sm:$0xff]
        %v1636 = vld [vmem:[#allocation19 + $0x2b8] sm:$0xff]
        %v1637 = vld [vmem:[#allocation19 + $0x2c0] sm:$0xff]
        %v1638 = vld [vmem:[#allocation19 + $0x2c8] sm:$0xff]
        %v1639 = vld [vmem:[#allocation19 + $0x2d0] sm:$0xff]
        %v1640 = vld [vmem:[#allocation19 + $0x2d8] sm:$0xff]
        %v1641 = vld [vmem:[#allocation19 + $0x2e0] sm:$0xff]
        %v1642 = vld [vmem:[#allocation19 + $0x2e8] sm:$0xff]
        %v1643 = vld [vmem:[#allocation19 + $0x2f0] sm:$0xff]
        %v1644 = vld [vmem:[#allocation19 + $0x2f8] sm:$0xff]
        %v1645 = vld [vmem:[#allocation19 + $0x300] sm:$0xff]
        %v1646 = vld [vmem:[#allocation19 + $0x308] sm:$0xff]
        %v1647 = vld [vmem:[#allocation19 + $0x310] sm:$0xff]
        %v1648 = vld [vmem:[#allocation19 + $0x318] sm:$0xff]
        %v1649 = vld [vmem:[#allocation19 + $0x320] sm:$0xff]
        %v1650 = vld [vmem:[#allocation19 + $0x328] sm:$0xff]
        %v1651 = vld [vmem:[#allocation19 + $0x330] sm:$0xff]
        %v1652 = vld [vmem:[#allocation19 + $0x338] sm:$0xff]
        %v1653 = vld [vmem:[#allocation19 + $0x340] sm:$0xff]
        %v1654 = vld [vmem:[#allocation19 + $0x348] sm:$0xff]
        %v1655 = vld [vmem:[#allocation19 + $0x350] sm:$0xff]
        %v1656 = vld [vmem:[#allocation19 + $0x358] sm:$0xff]
        %v1657 = vld [vmem:[#allocation19 + $0x360] sm:$0xff]
        %v1658 = vld [vmem:[#allocation19 + $0x368] sm:$0xff]
        %v1659 = vld [vmem:[#allocation19 + $0x370] sm:$0xff]
        %v1660 = vld [vmem:[#allocation19 + $0x378] sm:$0xff]
        %v1661 = vld [vmem:[#allocation19 + $0x380] sm:$0xff]
        %v1662 = vld [vmem:[#allocation19 + $0x388] sm:$0xff]
        %v1663 = vld [vmem:[#allocation19 + $0x390] sm:$0xff]
        %v1664 = vld [vmem:[#allocation19 + $0x398] sm:$0xff]
        %v1665 = vld [vmem:[#allocation19 + $0x3a0] sm:$0xff]
        %v1666 = vld [vmem:[#allocation19 + $0x3a8] sm:$0xff]
        %v1667 = vld [vmem:[#allocation19 + $0x3b0] sm:$0xff]
        %v1668 = vld [vmem:[#allocation19 + $0x3b8] sm:$0xff]
        %v1669 = vld [vmem:[#allocation19 + $0x3c0] sm:$0xff]
        %v1670 = vld [vmem:[#allocation19 + $0x3c8] sm:$0xff]
        %v1671 = vld [vmem:[#allocation19 + $0x3d0] sm:$0xff]
        %v1672 = vld [vmem:[#allocation19 + $0x3d8] sm:$0xff]
        %v1673 = vld [vmem:[#allocation19 + $0x3e0] sm:$0xff]
        %v1674 = vld [vmem:[#allocation19 + $0x3e8] sm:$0xff]
        %v1675 = vld [vmem:[#allocation19 + $0x3f0] sm:$0xff]
        %v1676 = vld [vmem:[#allocation19 + $0x3f8] sm:$0xff]
        %v1677 = vld [vmem:[#allocation19 + $0x400] sm:$0xff]
        %v1678 = vld [vmem:[#allocation19 + $0x408] sm:$0xff]
        %v1679 = vld [vmem:[#allocation19 + $0x410] sm:$0xff]
        %v1680 = vld [vmem:[#allocation19 + $0x418] sm:$0xff]
        %v1681 = vld [vmem:[#allocation19 + $0x420] sm:$0xff]
        %v1682 = vld [vmem:[#allocation19 + $0x428] sm:$0xff]
        %v1683 = vld [vmem:[#allocation19 + $0x430] sm:$0xff]
        %v1684 = vld [vmem:[#allocation19 + $0x438] sm:$0xff]
        %v1685 = vld [vmem:[#allocation19 + $0x440] sm:$0xff]
        %v1686 = vld [vmem:[#allocation19 + $0x448] sm:$0xff]
        %v1687 = vld [vmem:[#allocation19 + $0x450] sm:$0xff]
        %v1688 = vld [vmem:[#allocation19 + $0x458] sm:$0xff]
        %v1689 = vld [vmem:[#allocation19 + $0x460] sm:$0xff]
        %v1690 = vld [vmem:[#allocation19 + $0x468] sm:$0xff]
        %v1691 = vld [vmem:[#allocation19 + $0x470] sm:$0xff]
        %v1692 = vld [vmem:[#allocation19 + $0x478] sm:$0xff]
        %v1693 = vld [vmem:[#allocation19 + $0x480] sm:$0xff]
        %v1694 = vld [vmem:[#allocation19 + $0x488] sm:$0xff]
        %v1695 = vld [vmem:[#allocation19 + $0x490] sm:$0xff]
        %v1696 = vld [vmem:[#allocation19 + $0x498] sm:$0xff]
        %v1697 = vld [vmem:[#allocation19 + $0x4a0] sm:$0xff]
        %v1698 = vld [vmem:[#allocation19 + $0x4a8] sm:$0xff]
        %v1699 = vld [vmem:[#allocation19 + $0x4b0] sm:$0xff]
        %v1700 = vld [vmem:[#allocation19 + $0x4b8] sm:$0xff]
        %v1701 = vld [vmem:[#allocation19 + $0x4c0] sm:$0xff]
        %v1702 = vld [vmem:[#allocation19 + $0x4c8] sm:$0xff]
        %v1703 = vld [vmem:[#allocation19 + $0x4d0] sm:$0xff]
        %v1704 = vld [vmem:[#allocation19 + $0x4d8] sm:$0xff]
        %v1705 = vld [vmem:[#allocation19 + $0x4e0] sm:$0xff]
        %v1706 = vld [vmem:[#allocation19 + $0x4e8] sm:$0xff]
        %v1707 = vld [vmem:[#allocation19 + $0x4f0] sm:$0xff]
        %v1708 = vld [vmem:[#allocation19 + $0x4f8] sm:$0xff]
        %v1709 = vld [vmem:[#allocation19 + $0x500] sm:$0xff]
        %v1710 = vld [vmem:[#allocation19 + $0x508] sm:$0xff]
        %v1711 = vld [vmem:[#allocation19 + $0x510] sm:$0xff]
        %v1712 = vld [vmem:[#allocation19 + $0x518] sm:$0xff]
        %v1713 = vld [vmem:[#allocation19 + $0x520] sm:$0xff]
        %v1714 = vld [vmem:[#allocation19 + $0x528] sm:$0xff]
        %v1715 = vld [vmem:[#allocation19 + $0x530] sm:$0xff]
        %v1716 = vld [vmem:[#allocation19 + $0x538] sm:$0xff]
        %v1717 = vld [vmem:[#allocation19 + $0x540] sm:$0xff]
        %v1718 = vld [vmem:[#allocation19 + $0x548] sm:$0xff]
        %v1719 = vld [vmem:[#allocation19 + $0x550] sm:$0xff]
        %v1720 = vld [vmem:[#allocation19 + $0x558] sm:$0xff]
        %v1721 = vld [vmem:[#allocation19 + $0x560] sm:$0xff]
        %v1722 = vld [vmem:[#allocation19 + $0x568] sm:$0xff]
        %v1723 = vld [vmem:[#allocation19 + $0x570] sm:$0xff]
        %v1724 = vld [vmem:[#allocation19 + $0x578] sm:$0xff]
        %v1725 = vld [vmem:[#allocation19 + $0x580] sm:$0xff]
        %v1726 = vld [vmem:[#allocation19 + $0x588] sm:$0xff]
        %v1727 = vld [vmem:[#allocation19 + $0x590] sm:$0xff]
        %v1728 = vld [vmem:[#allocation19 + $0x598] sm:$0xff]
        %v1729 = vld [vmem:[#allocation19 + $0x5a0] sm:$0xff]
        %v1730 = vld [vmem:[#allocation19 + $0x5a8] sm:$0xff]
        %v1731 = vld [vmem:[#allocation19 + $0x5b0] sm:$0xff]
        %v1732 = vld [vmem:[#allocation19 + $0x5b8] sm:$0xff]
        %v1733 = vld [vmem:[#allocation19 + $0x5c0] sm:$0xff]
        %v1734 = vld [vmem:[#allocation19 + $0x5c8] sm:$0xff]
        %v1735 = vld [vmem:[#allocation19 + $0x5d0] sm:$0xff]
        %v1736 = vld [vmem:[#allocation19 + $0x5d8] sm:$0xff]
        %v1737 = vld [vmem:[#allocation19 + $0x5e0] sm:$0xff]
        %v1738 = vld [vmem:[#allocation19 + $0x5e8] sm:$0xff]
        %v1739 = vld [vmem:[#allocation19 + $0x5f0] sm:$0xff]
        %v1740 = vld [vmem:[#allocation19 + $0x5f8] sm:$0xff]
        %v1741 = vld [vmem:[#allocation19 + $0x600] sm:$0xff]
        %v1742 = vld [vmem:[#allocation19 + $0x608] sm:$0xff]
        %v1743 = vld [vmem:[#allocation19 + $0x610] sm:$0xff]
        %v1744 = vld [vmem:[#allocation19 + $0x618] sm:$0xff]
        %v1745 = vld [vmem:[#allocation19 + $0x620] sm:$0xff]
        %v1746 = vld [vmem:[#allocation19 + $0x628] sm:$0xff]
        %v1747 = vld [vmem:[#allocation19 + $0x630] sm:$0xff]
        %v1748 = vld [vmem:[#allocation19 + $0x638] sm:$0xff]
        %v1749 = vld [vmem:[#allocation19 + $0x640] sm:$0xff]
        %v1750 = vld [vmem:[#allocation19 + $0x648] sm:$0xff]
        %v1751 = vld [vmem:[#allocation19 + $0x650] sm:$0xff]
        %v1752 = vld [vmem:[#allocation19 + $0x658] sm:$0xff]
        %v1753 = vld [vmem:[#allocation19 + $0x660] sm:$0xff]
        %v1754 = vld [vmem:[#allocation19 + $0x668] sm:$0xff]
        %v1755 = vld [vmem:[#allocation19 + $0x670] sm:$0xff]
        %v1756 = vld [vmem:[#allocation19 + $0x678] sm:$0xff]
        %v1757 = vld [vmem:[#allocation19 + $0x680] sm:$0xff]
        %v1758 = vld [vmem:[#allocation19 + $0x688] sm:$0xff]
        %v1759 = vld [vmem:[#allocation19 + $0x690] sm:$0xff]
        %v1760 = vld [vmem:[#allocation19 + $0x698] sm:$0xff]
        %v1761 = vld [vmem:[#allocation19 + $0x6a0] sm:$0xff]
        %v1762 = vld [vmem:[#allocation19 + $0x6a8] sm:$0xff]
        %v1763 = vld [vmem:[#allocation19 + $0x6b0] sm:$0xff]
        %v1764 = vld [vmem:[#allocation19 + $0x6b8] sm:$0xff]
        %v1765 = vld [vmem:[#allocation19 + $0x6c0] sm:$0xff]
        %v1766 = vld [vmem:[#allocation19 + $0x6c8] sm:$0xff]
        %v1767 = vld [vmem:[#allocation19 + $0x6d0] sm:$0xff]
        %v1768 = vld [vmem:[#allocation19 + $0x6d8] sm:$0xff]
        %v1769 = vld [vmem:[#allocation19 + $0x6e0] sm:$0xff]
        %v1770 = vld [vmem:[#allocation19 + $0x6e8] sm:$0xff]
        %v1771 = vld [vmem:[#allocation19 + $0x6f0] sm:$0xff]
        %v1772 = vld [vmem:[#allocation19 + $0x6f8] sm:$0xff]
        %v1773 = vld [vmem:[#allocation19 + $0x700] sm:$0xff]
        %v1774 = vld [vmem:[#allocation19 + $0x708] sm:$0xff]
        %v1775 = vld [vmem:[#allocation19 + $0x710] sm:$0xff]
        %v1776 = vld [vmem:[#allocation19 + $0x718] sm:$0xff]
        %v1777 = vld [vmem:[#allocation19 + $0x720] sm:$0xff]
        %v1778 = vld [vmem:[#allocation19 + $0x728] sm:$0xff]
        %v1779 = vld [vmem:[#allocation19 + $0x730] sm:$0xff]
        %v1780 = vld [vmem:[#allocation19 + $0x738] sm:$0xff]
        %v1781 = vld [vmem:[#allocation19 + $0x740] sm:$0xff]
        %v1782 = vld [vmem:[#allocation19 + $0x748] sm:$0xff]
        %v1783 = vld [vmem:[#allocation19 + $0x750] sm:$0xff]
        %v1784 = vld [vmem:[#allocation19 + $0x758] sm:$0xff]
        %v1785 = vld [vmem:[#allocation19 + $0x760] sm:$0xff]
        %v1786 = vld [vmem:[#allocation19 + $0x768] sm:$0xff]
        %v1787 = vld [vmem:[#allocation19 + $0x770] sm:$0xff]
        %v1788 = vld [vmem:[#allocation19 + $0x778] sm:$0xff]
        %v1789 = vld [vmem:[#allocation19 + $0x780] sm:$0xff]
        %v1790 = vld [vmem:[#allocation19 + $0x788] sm:$0xff]
        %v1791 = vld [vmem:[#allocation19 + $0x790] sm:$0xff]
        %v1792 = vld [vmem:[#allocation19 + $0x798] sm:$0xff]
        %v1793 = vld [vmem:[#allocation19 + $0x7a0] sm:$0xff]
        %v1794 = vld [vmem:[#allocation19 + $0x7a8] sm:$0xff]
        %v1795 = vld [vmem:[#allocation19 + $0x7b0] sm:$0xff]
        %v1796 = vld [vmem:[#allocation19 + $0x7b8] sm:$0xff]
        %v1797 = vld [vmem:[#allocation19 + $0x7c0] sm:$0xff]
        %v1798 = vld [vmem:[#allocation19 + $0x7c8] sm:$0xff]
        %v1799 = vld [vmem:[#allocation19 + $0x7d0] sm:$0xff]
        %v1800 = vld [vmem:[#allocation19 + $0x7d8] sm:$0xff]
        %v1801 = vld [vmem:[#allocation19 + $0x7e0] sm:$0xff]
        %v1802 = vld [vmem:[#allocation19 + $0x7e8] sm:$0xff]
        %v1803 = vld [vmem:[#allocation19 + $0x7f0] sm:$0xff]
        %v1804 = vld [vmem:[#allocation19 + $0x7f8] sm:$0xff]
        %v1805 = vld [vmem:[#allocation19 + $0x800] sm:$0xff]
        %v1806 = vld [vmem:[#allocation19 + $0x808] sm:$0xff]
        %v1807 = vld [vmem:[#allocation19 + $0x810] sm:$0xff]
        %v1808 = vld [vmem:[#allocation19 + $0x818] sm:$0xff]
        %v1809 = vld [vmem:[#allocation19 + $0x820] sm:$0xff]
        %v1810 = vld [vmem:[#allocation19 + $0x828] sm:$0xff]
        %v1811 = vld [vmem:[#allocation19 + $0x830] sm:$0xff]
        %v1812 = vld [vmem:[#allocation19 + $0x838] sm:$0xff]
        %v1813 = vld [vmem:[#allocation19 + $0x840] sm:$0xff]
        %v1814 = vld [vmem:[#allocation19 + $0x848] sm:$0xff]
        %v1815 = vld [vmem:[#allocation19 + $0x850] sm:$0xff]
        %v1816 = vld [vmem:[#allocation19 + $0x858] sm:$0xff]
        %v1817 = vld [vmem:[#allocation19 + $0x860] sm:$0xff]
        %v1818 = vld [vmem:[#allocation19 + $0x868] sm:$0xff]
        %v1819 = vld [vmem:[#allocation19 + $0x870] sm:$0xff]
        %v1820 = vld [vmem:[#allocation19 + $0x878] sm:$0xff]
        %v1821 = vld [vmem:[#allocation19 + $0x880] sm:$0xff]
        %v1822 = vld [vmem:[#allocation19 + $0x888] sm:$0xff]
        %v1823 = vld [vmem:[#allocation19 + $0x890] sm:$0xff]
        %v1824 = vld [vmem:[#allocation19 + $0x898] sm:$0xff]
        %v1825 = vld [vmem:[#allocation19 + $0x8a0] sm:$0xff]
        %v1826 = vld [vmem:[#allocation19 + $0x8a8] sm:$0xff]
        %v1827 = vld [vmem:[#allocation19 + $0x8b0] sm:$0xff]
        %v1828 = vld [vmem:[#allocation19 + $0x8b8] sm:$0xff]
        %v1829 = vld [vmem:[#allocation19 + $0x8c0] sm:$0xff]
        %v1830 = vld [vmem:[#allocation19 + $0x8c8] sm:$0xff]
        %v1831 = vld [vmem:[#allocation19 + $0x8d0] sm:$0xff]
        %v1832 = vld [vmem:[#allocation19 + $0x8d8] sm:$0xff]
        %v1833 = vld [vmem:[#allocation19 + $0x8e0] sm:$0xff]
        %v1834 = vld [vmem:[#allocation19 + $0x8e8] sm:$0xff]
        %v1835 = vld [vmem:[#allocation19 + $0x8f0] sm:$0xff]
        %v1836 = vld [vmem:[#allocation19 + $0x8f8] sm:$0xff]
        %v1837 = vld [vmem:[#allocation19 + $0x900] sm:$0xff]
        %v1838 = vld [vmem:[#allocation19 + $0x908] sm:$0xff]
        %v1839 = vld [vmem:[#allocation19 + $0x910] sm:$0xff]
        %v1840 = vld [vmem:[#allocation19 + $0x918] sm:$0xff]
        %v1841 = vld [vmem:[#allocation19 + $0x920] sm:$0xff]
        %v1842 = vld [vmem:[#allocation19 + $0x928] sm:$0xff]
        %v1843 = vld [vmem:[#allocation19 + $0x930] sm:$0xff]
        %v1844 = vld [vmem:[#allocation19 + $0x938] sm:$0xff]
        %v1845 = vld [vmem:[#allocation19 + $0x940] sm:$0xff]
        %v1846 = vld [vmem:[#allocation19 + $0x948] sm:$0xff]
        %v1847 = vld [vmem:[#allocation19 + $0x950] sm:$0xff]
        %v1848 = vld [vmem:[#allocation19 + $0x958] sm:$0xff]
        %v1849 = vld [vmem:[#allocation19 + $0x960] sm:$0xff]
        %v1850 = vld [vmem:[#allocation19 + $0x968] sm:$0xff]
        %v1851 = vld [vmem:[#allocation19 + $0x970] sm:$0xff]
        %v1852 = vld [vmem:[#allocation19 + $0x978] sm:$0xff]
        %v1853 = vld [vmem:[#allocation19 + $0x980] sm:$0xff]
        %v1854 = vld [vmem:[#allocation19 + $0x988] sm:$0xff]
        %v1855 = vld [vmem:[#allocation19 + $0x990] sm:$0xff]
        %v1856 = vld [vmem:[#allocation19 + $0x998] sm:$0xff]
        %v1857 = vld [vmem:[#allocation19 + $0x9a0] sm:$0xff]
        %v1858 = vld [vmem:[#allocation19 + $0x9a8] sm:$0xff]
        %v1859 = vld [vmem:[#allocation19 + $0x9b0] sm:$0xff]
        %v1860 = vld [vmem:[#allocation19 + $0x9b8] sm:$0xff]
        %v1861 = vld [vmem:[#allocation19 + $0x9c0] sm:$0xff]
        %v1862 = vld [vmem:[#allocation19 + $0x9c8] sm:$0xff]
        %v1863 = vld [vmem:[#allocation19 + $0x9d0] sm:$0xff]
        %v1864 = vld [vmem:[#allocation19 + $0x9d8] sm:$0xff]
        %v1865 = vld [vmem:[#allocation19 + $0x9e0] sm:$0xff]
        %v1866 = vld [vmem:[#allocation19 + $0x9e8] sm:$0xff]
        %v1867 = vld [vmem:[#allocation19 + $0x9f0] sm:$0xff]
        %v1868 = vld [vmem:[#allocation19 + $0x9f8] sm:$0xff]
        %v1869 = vld [vmem:[#allocation19 + $0xa00] sm:$0xff]
        %v1870 = vld [vmem:[#allocation19 + $0xa08] sm:$0xff]
        %v1871 = vld [vmem:[#allocation19 + $0xa10] sm:$0xff]
        %v1872 = vld [vmem:[#allocation19 + $0xa18] sm:$0xff]
        %v1873 = vld [vmem:[#allocation19 + $0xa20] sm:$0xff]
        %v1874 = vld [vmem:[#allocation19 + $0xa28] sm:$0xff]
        %v1875 = vld [vmem:[#allocation19 + $0xa30] sm:$0xff]
        %v1876 = vld [vmem:[#allocation19 + $0xa38] sm:$0xff]
        %v1877 = vld [vmem:[#allocation19 + $0xa40] sm:$0xff]
        %v1878 = vld [vmem:[#allocation19 + $0xa48] sm:$0xff]
        %v1879 = vld [vmem:[#allocation19 + $0xa50] sm:$0xff]
        %v1880 = vld [vmem:[#allocation19 + $0xa58] sm:$0xff]
        %v1881 = vld [vmem:[#allocation19 + $0xa60] sm:$0xff]
        %v1882 = vld [vmem:[#allocation19 + $0xa68] sm:$0xff]
        %v1883 = vld [vmem:[#allocation19 + $0xa70] sm:$0xff]
        %v1884 = vld [vmem:[#allocation19 + $0xa78] sm:$0xff]
        %v1885 = vld [vmem:[#allocation19 + $0xa80] sm:$0xff]
        %v1886 = vld [vmem:[#allocation19 + $0xa88] sm:$0xff]
        %v1887 = vld [vmem:[#allocation19 + $0xa90] sm:$0xff]
        %v1888 = vld [vmem:[#allocation19 + $0xa98] sm:$0xff]
        %v1889 = vld [vmem:[#allocation19 + $0xaa0] sm:$0xff]
        %v1890 = vld [vmem:[#allocation19 + $0xaa8] sm:$0xff]
        %v1891 = vld [vmem:[#allocation19 + $0xab0] sm:$0xff]
        %v1892 = vld [vmem:[#allocation19 + $0xab8] sm:$0xff]
        %v1893 = vld [vmem:[#allocation19 + $0xac0] sm:$0xff]
        %v1894 = vld [vmem:[#allocation19 + $0xac8] sm:$0xff]
        %v1895 = vld [vmem:[#allocation19 + $0xad0] sm:$0xff]
        %v1896 = vld [vmem:[#allocation19 + $0xad8] sm:$0xff]
        %v1897 = vld [vmem:[#allocation19 + $0xae0] sm:$0xff]
        %v1898 = vld [vmem:[#allocation19 + $0xae8] sm:$0xff]
        %v1899 = vld [vmem:[#allocation19 + $0xaf0] sm:$0xff]
        %v1900 = vld [vmem:[#allocation19 + $0xaf8] sm:$0xff]
        %v1901 = vld [vmem:[#allocation19 + $0xb00] sm:$0xff]
        %v1902 = vld [vmem:[#allocation19 + $0xb08] sm:$0xff]
        %v1903 = vld [vmem:[#allocation19 + $0xb10] sm:$0xff]
        %v1904 = vld [vmem:[#allocation19 + $0xb18] sm:$0xff]
        %v1905 = vld [vmem:[#allocation19 + $0xb20] sm:$0xff]
        %v1906 = vld [vmem:[#allocation19 + $0xb28] sm:$0xff]
        %v1907 = vld [vmem:[#allocation19 + $0xb30] sm:$0xff]
        %v1908 = vld [vmem:[#allocation19 + $0xb38] sm:$0xff]
        %v1909 = vld [vmem:[#allocation19 + $0xb40] sm:$0xff]
        %v1910 = vld [vmem:[#allocation19 + $0xb48] sm:$0xff]
        %v1911 = vld [vmem:[#allocation19 + $0xb50] sm:$0xff]
        %v1912 = vld [vmem:[#allocation19 + $0xb58] sm:$0xff]
        %v1913 = vld [vmem:[#allocation19 + $0xb60] sm:$0xff]
        %v1914 = vld [vmem:[#allocation19 + $0xb68] sm:$0xff]
        %v1915 = vld [vmem:[#allocation19 + $0xb70] sm:$0xff]
        %v1916 = vld [vmem:[#allocation19 + $0xb78] sm:$0xff]
        %v1917 = vld [vmem:[#allocation19 + $0xb80] sm:$0xff]
        %v1918 = vld [vmem:[#allocation19 + $0xb88] sm:$0xff]
        %v1919 = vld [vmem:[#allocation19 + $0xb90] sm:$0xff]
        %v1920 = vld [vmem:[#allocation19 + $0xb98] sm:$0xff]
        %v1921 = vld [vmem:[#allocation19 + $0xba0] sm:$0xff]
        %v1922 = vld [vmem:[#allocation19 + $0xba8] sm:$0xff]
        %v1923 = vld [vmem:[#allocation19 + $0xbb0] sm:$0xff]
        %v1924 = vld [vmem:[#allocation19 + $0xbb8] sm:$0xff]
        %v1925 = vld [vmem:[#allocation19 + $0xbc0] sm:$0xff]
        %v1926 = vld [vmem:[#allocation19 + $0xbc8] sm:$0xff]
        %v1927 = vld [vmem:[#allocation19 + $0xbd0] sm:$0xff]
        %v1928 = vld [vmem:[#allocation19 + $0xbd8] sm:$0xff]
        %v1929 = vld [vmem:[#allocation19 + $0xbe0] sm:$0xff]
        %v1930 = vld [vmem:[#allocation19 + $0xbe8] sm:$0xff]
        %v1931 = vld [vmem:[#allocation19 + $0xbf0] sm:$0xff]
        %v1932 = vld [vmem:[#allocation19 + $0xbf8] sm:$0xff]
        %v1933 = vld [vmem:[#allocation19 + $0xc00] sm:$0xff]
        %v1934 = vld [vmem:[#allocation19 + $0xc08] sm:$0xff]
        %v1935 = vld [vmem:[#allocation19 + $0xc10] sm:$0xff]
        %v1936 = vld [vmem:[#allocation19 + $0xc18] sm:$0xff]
        %v1937 = vld [vmem:[#allocation19 + $0xc20] sm:$0xff]
        %v1938 = vld [vmem:[#allocation19 + $0xc28] sm:$0xff]
        %v1939 = vld [vmem:[#allocation19 + $0xc30] sm:$0xff]
        %v1940 = vld [vmem:[#allocation19 + $0xc38] sm:$0xff]
        %v1941 = vld [vmem:[#allocation19 + $0xc40] sm:$0xff]
        %v1942 = vld [vmem:[#allocation19 + $0xc48] sm:$0xff]
        %v1943 = vld [vmem:[#allocation19 + $0xc50] sm:$0xff]
        %v1944 = vld [vmem:[#allocation19 + $0xc58] sm:$0xff]
        %v1945 = vld [vmem:[#allocation19 + $0xc60] sm:$0xff]
        %v1946 = vld [vmem:[#allocation19 + $0xc68] sm:$0xff]
        %v1947 = vld [vmem:[#allocation19 + $0xc70] sm:$0xff]
        %v1948 = vld [vmem:[#allocation19 + $0xc78] sm:$0xff]
        %v1949 = vld [vmem:[#allocation19 + $0xc80] sm:$0xff]
        %v1950 = vld [vmem:[#allocation19 + $0xc88] sm:$0xff]
        %v1951 = vld [vmem:[#allocation19 + $0xc90] sm:$0xff]
        %v1952 = vld [vmem:[#allocation19 + $0xc98] sm:$0xff]
        %v1953 = vld [vmem:[#allocation19 + $0xca0] sm:$0xff]
        %v1954 = vld [vmem:[#allocation19 + $0xca8] sm:$0xff]
        %v1955 = vld [vmem:[#allocation19 + $0xcb0] sm:$0xff]
        %v1956 = vld [vmem:[#allocation19 + $0xcb8] sm:$0xff]
        %v1957 = vld [vmem:[#allocation19 + $0xcc0] sm:$0xff]
        %v1958 = vld [vmem:[#allocation19 + $0xcc8] sm:$0xff]
        %v1959 = vld [vmem:[#allocation19 + $0xcd0] sm:$0xff]
        %v1960 = vld [vmem:[#allocation19 + $0xcd8] sm:$0xff]
        %v1961 = vld [vmem:[#allocation19 + $0xce0] sm:$0xff]
        %v1962 = vld [vmem:[#allocation19 + $0xce8] sm:$0xff]
        %v1963 = vld [vmem:[#allocation19 + $0xcf0] sm:$0xff]
        %v1964 = vld [vmem:[#allocation19 + $0xcf8] sm:$0xff]
        %v1965 = vld [vmem:[#allocation19 + $0xd00] sm:$0xff]
        %v1966 = vld [vmem:[#allocation19 + $0xd08] sm:$0xff]
        %v1967 = vld [vmem:[#allocation19 + $0xd10] sm:$0xff]
        %v1968 = vld [vmem:[#allocation19 + $0xd18] sm:$0xff]
        %v1969 = vld [vmem:[#allocation19 + $0xd20] sm:$0xff]
        %v1970 = vld [vmem:[#allocation19 + $0xd28] sm:$0xff]
        %v1971 = vld [vmem:[#allocation19 + $0xd30] sm:$0xff]
        %v1972 = vld [vmem:[#allocation19 + $0xd38] sm:$0xff]
        %v1973 = vld [vmem:[#allocation19 + $0xd40] sm:$0xff]
        %v1974 = vld [vmem:[#allocation19 + $0xd48] sm:$0xff]
        %v1975 = vld [vmem:[#allocation19 + $0xd50] sm:$0xff]
        %v1976 = vld [vmem:[#allocation19 + $0xd58] sm:$0xff]
        %v1977 = vld [vmem:[#allocation19 + $0xd60] sm:$0xff]
        %v1978 = vld [vmem:[#allocation19 + $0xd68] sm:$0xff]
        %v1979 = vld [vmem:[#allocation19 + $0xd70] sm:$0xff]
        %v1980 = vld [vmem:[#allocation19 + $0xd78] sm:$0xff]
        %v1981 = vld [vmem:[#allocation19 + $0xd80] sm:$0xff]
        %v1982 = vld [vmem:[#allocation19 + $0xd88] sm:$0xff]
        %v1983 = vld [vmem:[#allocation19 + $0xd90] sm:$0xff]
        %v1984 = vld [vmem:[#allocation19 + $0xd98] sm:$0xff]
        %v1985 = vld [vmem:[#allocation19 + $0xda0] sm:$0xff]
        %v1986 = vld [vmem:[#allocation19 + $0xda8] sm:$0xff]
        %v1987 = vld [vmem:[#allocation19 + $0xdb0] sm:$0xff]
        %v1988 = vld [vmem:[#allocation19 + $0xdb8] sm:$0xff]
        %v1989 = vld [vmem:[#allocation19 + $0xdc0] sm:$0xff]
        %v1990 = vld [vmem:[#allocation19 + $0xdc8] sm:$0xff]
        %v1991 = vld [vmem:[#allocation19 + $0xdd0] sm:$0xff]
        %v1992 = vld [vmem:[#allocation19 + $0xdd8] sm:$0xff]
        %v1993 = vld [vmem:[#allocation19 + $0xde0] sm:$0xff]
        %v1994 = vld [vmem:[#allocation19 + $0xde8] sm:$0xff]
        %v1995 = vld [vmem:[#allocation19 + $0xdf0] sm:$0xff]
        %v1996 = vld [vmem:[#allocation19 + $0xdf8] sm:$0xff]
        %v1997 = vld [vmem:[#allocation19 + $0xe00] sm:$0xff]
        %v1998 = vld [vmem:[#allocation19 + $0xe08] sm:$0xff]
        %v1999 = vld [vmem:[#allocation19 + $0xe10] sm:$0xff]
        %v2000 = vld [vmem:[#allocation19 + $0xe18] sm:$0xff]
        %v2001 = vld [vmem:[#allocation19 + $0xe20] sm:$0xff]
        %v2002 = vld [vmem:[#allocation19 + $0xe28] sm:$0xff]
        %v2003 = vld [vmem:[#allocation19 + $0xe30] sm:$0xff]
        %v2004 = vld [vmem:[#allocation19 + $0xe38] sm:$0xff]
        %v2005 = vld [vmem:[#allocation19 + $0xe40] sm:$0xff]
        %v2006 = vld [vmem:[#allocation19 + $0xe48] sm:$0xff]
        %v2007 = vld [vmem:[#allocation19 + $0xe50] sm:$0xff]
        %v2008 = vld [vmem:[#allocation19 + $0xe58] sm:$0xff]
        %v2009 = vld [vmem:[#allocation19 + $0xe60] sm:$0xff]
        %v2010 = vld [vmem:[#allocation19 + $0xe68] sm:$0xff]
        %v2011 = vld [vmem:[#allocation19 + $0xe70] sm:$0xff]
        %v2012 = vld [vmem:[#allocation19 + $0xe78] sm:$0xff]
        %v2013 = vld [vmem:[#allocation19 + $0xe80] sm:$0xff]
        %v2014 = vld [vmem:[#allocation19 + $0xe88] sm:$0xff]
        %v2015 = vld [vmem:[#allocation19 + $0xe90] sm:$0xff]
        %v2016 = vld [vmem:[#allocation19 + $0xe98] sm:$0xff]
        %v2017 = vld [vmem:[#allocation19 + $0xea0] sm:$0xff]
        %v2018 = vld [vmem:[#allocation19 + $0xea8] sm:$0xff]
        %v2019 = vld [vmem:[#allocation19 + $0xeb0] sm:$0xff]
        %v2020 = vld [vmem:[#allocation19 + $0xeb8] sm:$0xff]
        %v2021 = vld [vmem:[#allocation19 + $0xec0] sm:$0xff]
        %v2022 = vld [vmem:[#allocation19 + $0xec8] sm:$0xff]
        %v2023 = vld [vmem:[#allocation19 + $0xed0] sm:$0xff]
        %v2024 = vld [vmem:[#allocation19 + $0xed8] sm:$0xff]
        %v2025 = vld [vmem:[#allocation19 + $0xee0] sm:$0xff]
        %v2026 = vld [vmem:[#allocation19 + $0xee8] sm:$0xff]
        %v2027 = vld [vmem:[#allocation19 + $0xef0] sm:$0xff]
        %v2028 = vld [vmem:[#allocation19 + $0xef8] sm:$0xff]
        %v2029 = vld [vmem:[#allocation19 + $0xf00] sm:$0xff]
        %v2030 = vld [vmem:[#allocation19 + $0xf08] sm:$0xff]
        %v2031 = vld [vmem:[#allocation19 + $0xf10] sm:$0xff]
        %v2032 = vld [vmem:[#allocation19 + $0xf18] sm:$0xff]
        %v2033 = vld [vmem:[#allocation19 + $0xf20] sm:$0xff]
        %v2034 = vld [vmem:[#allocation19 + $0xf28] sm:$0xff]
        %v2035 = vld [vmem:[#allocation19 + $0xf30] sm:$0xff]
        %v2036 = vld [vmem:[#allocation19 + $0xf38] sm:$0xff]
        %v2037 = vld [vmem:[#allocation19 + $0xf40] sm:$0xff]
        %v2038 = vld [vmem:[#allocation19 + $0xf48] sm:$0xff]
        %v2039 = vld [vmem:[#allocation19 + $0xf50] sm:$0xff]
        %v2040 = vld [vmem:[#allocation19 + $0xf58] sm:$0xff]
        %v2041 = vld [vmem:[#allocation19 + $0xf60] sm:$0xff]
        %v2042 = vld [vmem:[#allocation19 + $0xf68] sm:$0xff]
        %v2043 = vld [vmem:[#allocation19 + $0xf70] sm:$0xff]
        %v2044 = vld [vmem:[#allocation19 + $0xf78] sm:$0xff]
        %v2045 = vld [vmem:[#allocation19 + $0xf80] sm:$0xff]
        %v2046 = vld [vmem:[#allocation19 + $0xf88] sm:$0xff]
        %v2047 = vld [vmem:[#allocation19 + $0xf90] sm:$0xff]
        %v2048 = vld [vmem:[#allocation19 + $0xf98] sm:$0xff]
        %v2049 = vld [vmem:[#allocation19 + $0xfa0] sm:$0xff]
        %v2050 = vld [vmem:[#allocation19 + $0xfa8] sm:$0xff]
        %v2051 = vld [vmem:[#allocation19 + $0xfb0] sm:$0xff]
        %v2052 = vld [vmem:[#allocation19 + $0xfb8] sm:$0xff]
        %v2053 = vld [vmem:[#allocation19 + $0xfc0] sm:$0xff]
        %v2054 = vld [vmem:[#allocation19 + $0xfc8] sm:$0xff]
        %v2055 = vld [vmem:[#allocation19 + $0xfd0] sm:$0xff]
        %v2056 = vld [vmem:[#allocation19 + $0xfd8] sm:$0xff]
        %v2057 = vld [vmem:[#allocation19 + $0xfe0] sm:$0xff]
        %v2058 = vld [vmem:[#allocation19 + $0xfe8] sm:$0xff]
        %v2059 = vld [vmem:[#allocation19 + $0xff0] sm:$0xff]
        %v2060 = vld [vmem:[#allocation19 + $0xff8] sm:$0xff]
        %v2061 = vld [vmem:[#allocation20] sm:$0xff]
        %v2063 = vperm.slane %v2061, 0
        %v2064 = vperm.slane %v2061, 1
        %v2065 = vperm.slane %v2061, 2
        %v2066 = vperm.slane %v2061, 3
        %v2067 = vperm.slane %v2061, 4
        %v2068 = vperm.slane %v2061, 5
        %v2069 = vperm.slane %v2061, 6
        %v2070 = vperm.slane %v2061, 7
        %v2591 = vunpack.c.l.b16 %v1549
        %v2592 = vunpack.c.h.b16 %v1549
        %v2593 = vunpack.c.l.b16 %v1550
        %v2594 = vunpack.c.h.b16 %v1550
        %v2595 = vunpack.c.l.b16 %v1551
        %v2596 = vunpack.c.h.b16 %v1551
        %v2597 = vunpack.c.l.b16 %v1552
        %v2598 = vunpack.c.h.b16 %v1552
        %v2599 = vunpack.c.l.b16 %v1553
        %v2600 = vunpack.c.h.b16 %v1553
        %v2601 = vunpack.c.l.b16 %v1554
        %v2602 = vunpack.c.h.b16 %v1554
        %v2603 = vunpack.c.l.b16 %v1555
        %v2604 = vunpack.c.h.b16 %v1555
        %v2605 = vunpack.c.l.b16 %v1556
        %v2606 = vunpack.c.h.b16 %v1556
        %v2607 = vunpack.c.l.b16 %v1557
        %v2608 = vunpack.c.h.b16 %v1557
        %v2609 = vunpack.c.l.b16 %v1558
        %v2610 = vunpack.c.h.b16 %v1558
        %v2611 = vunpack.c.l.b16 %v1559
        %v2612 = vunpack.c.h.b16 %v1559
        %v2613 = vunpack.c.l.b16 %v1560
        %v2614 = vunpack.c.h.b16 %v1560
        %v2615 = vunpack.c.l.b16 %v1561
        %v2616 = vunpack.c.h.b16 %v1561
        %v2617 = vunpack.c.l.b16 %v1562
        %v2618 = vunpack.c.h.b16 %v1562
        %v2619 = vunpack.c.l.b16 %v1563
        %v2620 = vunpack.c.h.b16 %v1563
        %v2621 = vunpack.c.l.b16 %v1564
        %v2622 = vunpack.c.h.b16 %v1564
        %v2623 = vunpack.c.l.b16 %v1565
        %v2624 = vunpack.c.h.b16 %v1565
        %v2625 = vunpack.c.l.b16 %v1566
        %v2626 = vunpack.c.h.b16 %v1566
        %v2627 = vunpack.c.l.b16 %v1567
        %v2628 = vunpack.c.h.b16 %v1567
        %v2629 = vunpack.c.l.b16 %v1568
        %v2630 = vunpack.c.h.b16 %v1568
        %v2631 = vunpack.c.l.b16 %v1569
        %v2632 = vunpack.c.h.b16 %v1569
        %v2633 = vunpack.c.l.b16 %v1570
        %v2634 = vunpack.c.h.b16 %v1570
        %v2635 = vunpack.c.l.b16 %v1571
        %v2636 = vunpack.c.h.b16 %v1571
        %v2637 = vunpack.c.l.b16 %v1572
        %v2638 = vunpack.c.h.b16 %v1572
        %v2639 = vunpack.c.l.b16 %v1573
        %v2640 = vunpack.c.h.b16 %v1573
        %v2641 = vunpack.c.l.b16 %v1574
        %v2642 = vunpack.c.h.b16 %v1574
        %v2643 = vunpack.c.l.b16 %v1575
        %v2644 = vunpack.c.h.b16 %v1575
        %v2645 = vunpack.c.l.b16 %v1576
        %v2646 = vunpack.c.h.b16 %v1576
        %v2647 = vunpack.c.l.b16 %v1577
        %v2648 = vunpack.c.h.b16 %v1577
        %v2649 = vunpack.c.l.b16 %v1578
        %v2650 = vunpack.c.h.b16 %v1578
        %v2651 = vunpack.c.l.b16 %v1579
        %v2652 = vunpack.c.h.b16 %v1579
        %v2653 = vunpack.c.l.b16 %v1580
        %v2654 = vunpack.c.h.b16 %v1580
        %v2655 = vunpack.c.l.b16 %v1581
        %v2656 = vunpack.c.h.b16 %v1581
        %v2657 = vunpack.c.l.b16 %v1582
        %v2658 = vunpack.c.h.b16 %v1582
        %v2659 = vunpack.c.l.b16 %v1583
        %v2660 = vunpack.c.h.b16 %v1583
        %v2661 = vunpack.c.l.b16 %v1584
        %v2662 = vunpack.c.h.b16 %v1584
        %v2663 = vunpack.c.l.b16 %v1585
        %v2664 = vunpack.c.h.b16 %v1585
        %v2665 = vunpack.c.l.b16 %v1586
        %v2666 = vunpack.c.h.b16 %v1586
        %v2667 = vunpack.c.l.b16 %v1587
        %v2668 = vunpack.c.h.b16 %v1587
        %v2669 = vunpack.c.l.b16 %v1588
        %v2670 = vunpack.c.h.b16 %v1588
        %v2671 = vunpack.c.l.b16 %v1589
        %v2672 = vunpack.c.h.b16 %v1589
        %v2673 = vunpack.c.l.b16 %v1590
        %v2674 = vunpack.c.h.b16 %v1590
        %v2675 = vunpack.c.l.b16 %v1591
        %v2676 = vunpack.c.h.b16 %v1591
        %v2677 = vunpack.c.l.b16 %v1592
        %v2678 = vunpack.c.h.b16 %v1592
        %v2679 = vunpack.c.l.b16 %v1593
        %v2680 = vunpack.c.h.b16 %v1593
        %v2681 = vunpack.c.l.b16 %v1594
        %v2682 = vunpack.c.h.b16 %v1594
        %v2683 = vunpack.c.l.b16 %v1595
        %v2684 = vunpack.c.h.b16 %v1595
        %v2685 = vunpack.c.l.b16 %v1596
        %v2686 = vunpack.c.h.b16 %v1596
        %v2687 = vunpack.c.l.b16 %v1597
        %v2688 = vunpack.c.h.b16 %v1597
        %v2689 = vunpack.c.l.b16 %v1598
        %v2690 = vunpack.c.h.b16 %v1598
        %v2691 = vunpack.c.l.b16 %v1599
        %v2692 = vunpack.c.h.b16 %v1599
        %v2693 = vunpack.c.l.b16 %v1600
        %v2694 = vunpack.c.h.b16 %v1600
        %v2695 = vunpack.c.l.b16 %v1601
        %v2696 = vunpack.c.h.b16 %v1601
        %v2697 = vunpack.c.l.b16 %v1602
        %v2698 = vunpack.c.h.b16 %v1602
        %v2699 = vunpack.c.l.b16 %v1603
        %v2700 = vunpack.c.h.b16 %v1603
        %v2701 = vunpack.c.l.b16 %v1604
        %v2702 = vunpack.c.h.b16 %v1604
        %v2703 = vunpack.c.l.b16 %v1605
        %v2704 = vunpack.c.h.b16 %v1605
        %v2705 = vunpack.c.l.b16 %v1606
        %v2706 = vunpack.c.h.b16 %v1606
        %v2707 = vunpack.c.l.b16 %v1607
        %v2708 = vunpack.c.h.b16 %v1607
        %v2709 = vunpack.c.l.b16 %v1608
        %v2710 = vunpack.c.h.b16 %v1608
        %v2711 = vunpack.c.l.b16 %v1609
        %v2712 = vunpack.c.h.b16 %v1609
        %v2713 = vunpack.c.l.b16 %v1610
        %v2714 = vunpack.c.h.b16 %v1610
        %v2715 = vunpack.c.l.b16 %v1611
        %v2716 = vunpack.c.h.b16 %v1611
        %v2717 = vunpack.c.l.b16 %v1612
        %v2718 = vunpack.c.h.b16 %v1612
        %v2719 = vunpack.c.l.b16 %v1613
        %v2720 = vunpack.c.h.b16 %v1613
        %v2721 = vunpack.c.l.b16 %v1614
        %v2722 = vunpack.c.h.b16 %v1614
        %v2723 = vunpack.c.l.b16 %v1615
        %v2724 = vunpack.c.h.b16 %v1615
        %v2725 = vunpack.c.l.b16 %v1616
        %v2726 = vunpack.c.h.b16 %v1616
        %v2727 = vunpack.c.l.b16 %v1617
        %v2728 = vunpack.c.h.b16 %v1617
        %v2729 = vunpack.c.l.b16 %v1618
        %v2730 = vunpack.c.h.b16 %v1618
        %v2731 = vunpack.c.l.b16 %v1619
        %v2732 = vunpack.c.h.b16 %v1619
        %v2733 = vunpack.c.l.b16 %v1620
        %v2734 = vunpack.c.h.b16 %v1620
        %v2735 = vunpack.c.l.b16 %v1621
        %v2736 = vunpack.c.h.b16 %v1621
        %v2737 = vunpack.c.l.b16 %v1622
        %v2738 = vunpack.c.h.b16 %v1622
        %v2739 = vunpack.c.l.b16 %v1623
        %v2740 = vunpack.c.h.b16 %v1623
        %v2741 = vunpack.c.l.b16 %v1624
        %v2742 = vunpack.c.h.b16 %v1624
        %v2743 = vunpack.c.l.b16 %v1625
        %v2744 = vunpack.c.h.b16 %v1625
        %v2745 = vunpack.c.l.b16 %v1626
        %v2746 = vunpack.c.h.b16 %v1626
        %v2747 = vunpack.c.l.b16 %v1627
        %v2748 = vunpack.c.h.b16 %v1627
        %v2749 = vunpack.c.l.b16 %v1628
        %v2750 = vunpack.c.h.b16 %v1628
        %v2751 = vunpack.c.l.b16 %v1629
        %v2752 = vunpack.c.h.b16 %v1629
        %v2753 = vunpack.c.l.b16 %v1630
        %v2754 = vunpack.c.h.b16 %v1630
        %v2755 = vunpack.c.l.b16 %v1631
        %v2756 = vunpack.c.h.b16 %v1631
        %v2757 = vunpack.c.l.b16 %v1632
        %v2758 = vunpack.c.h.b16 %v1632
        %v2759 = vunpack.c.l.b16 %v1633
        %v2760 = vunpack.c.h.b16 %v1633
        %v2761 = vunpack.c.l.b16 %v1634
        %v2762 = vunpack.c.h.b16 %v1634
        %v2763 = vunpack.c.l.b16 %v1635
        %v2764 = vunpack.c.h.b16 %v1635
        %v2765 = vunpack.c.l.b16 %v1636
        %v2766 = vunpack.c.h.b16 %v1636
        %v2767 = vunpack.c.l.b16 %v1637
        %v2768 = vunpack.c.h.b16 %v1637
        %v2769 = vunpack.c.l.b16 %v1638
        %v2770 = vunpack.c.h.b16 %v1638
        %v2771 = vunpack.c.l.b16 %v1639
        %v2772 = vunpack.c.h.b16 %v1639
        %v2773 = vunpack.c.l.b16 %v1640
        %v2774 = vunpack.c.h.b16 %v1640
        %v2775 = vunpack.c.l.b16 %v1641
        %v2776 = vunpack.c.h.b16 %v1641
        %v2777 = vunpack.c.l.b16 %v1642
        %v2778 = vunpack.c.h.b16 %v1642
        %v2779 = vunpack.c.l.b16 %v1643
        %v2780 = vunpack.c.h.b16 %v1643
        %v2781 = vunpack.c.l.b16 %v1644
        %v2782 = vunpack.c.h.b16 %v1644
        %v2783 = vunpack.c.l.b16 %v1645
        %v2784 = vunpack.c.h.b16 %v1645
        %v2785 = vunpack.c.l.b16 %v1646
        %v2786 = vunpack.c.h.b16 %v1646
        %v2787 = vunpack.c.l.b16 %v1647
        %v2788 = vunpack.c.h.b16 %v1647
        %v2789 = vunpack.c.l.b16 %v1648
        %v2790 = vunpack.c.h.b16 %v1648
        %v2791 = vunpack.c.l.b16 %v1649
        %v2792 = vunpack.c.h.b16 %v1649
        %v2793 = vunpack.c.l.b16 %v1650
        %v2794 = vunpack.c.h.b16 %v1650
        %v2795 = vunpack.c.l.b16 %v1651
        %v2796 = vunpack.c.h.b16 %v1651
        %v2797 = vunpack.c.l.b16 %v1652
        %v2798 = vunpack.c.h.b16 %v1652
        %v2799 = vunpack.c.l.b16 %v1653
        %v2800 = vunpack.c.h.b16 %v1653
        %v2801 = vunpack.c.l.b16 %v1654
        %v2802 = vunpack.c.h.b16 %v1654
        %v2803 = vunpack.c.l.b16 %v1655
        %v2804 = vunpack.c.h.b16 %v1655
        %v2805 = vunpack.c.l.b16 %v1656
        %v2806 = vunpack.c.h.b16 %v1656
        %v2807 = vunpack.c.l.b16 %v1657
        %v2808 = vunpack.c.h.b16 %v1657
        %v2809 = vunpack.c.l.b16 %v1658
        %v2810 = vunpack.c.h.b16 %v1658
        %v2811 = vunpack.c.l.b16 %v1659
        %v2812 = vunpack.c.h.b16 %v1659
        %v2813 = vunpack.c.l.b16 %v1660
        %v2814 = vunpack.c.h.b16 %v1660
        %v2815 = vunpack.c.l.b16 %v1661
        %v2816 = vunpack.c.h.b16 %v1661
        %v2817 = vunpack.c.l.b16 %v1662
        %v2818 = vunpack.c.h.b16 %v1662
        %v2819 = vunpack.c.l.b16 %v1663
        %v2820 = vunpack.c.h.b16 %v1663
        %v2821 = vunpack.c.l.b16 %v1664
        %v2822 = vunpack.c.h.b16 %v1664
        %v2823 = vunpack.c.l.b16 %v1665
        %v2824 = vunpack.c.h.b16 %v1665
        %v2825 = vunpack.c.l.b16 %v1666
        %v2826 = vunpack.c.h.b16 %v1666
        %v2827 = vunpack.c.l.b16 %v1667
        %v2828 = vunpack.c.h.b16 %v1667
        %v2829 = vunpack.c.l.b16 %v1668
        %v2830 = vunpack.c.h.b16 %v1668
        %v2831 = vunpack.c.l.b16 %v1669
        %v2832 = vunpack.c.h.b16 %v1669
        %v2833 = vunpack.c.l.b16 %v1670
        %v2834 = vunpack.c.h.b16 %v1670
        %v2835 = vunpack.c.l.b16 %v1671
        %v2836 = vunpack.c.h.b16 %v1671
        %v2837 = vunpack.c.l.b16 %v1672
        %v2838 = vunpack.c.h.b16 %v1672
        %v2839 = vunpack.c.l.b16 %v1673
        %v2840 = vunpack.c.h.b16 %v1673
        %v2841 = vunpack.c.l.b16 %v1674
        %v2842 = vunpack.c.h.b16 %v1674
        %v2843 = vunpack.c.l.b16 %v1675
        %v2844 = vunpack.c.h.b16 %v1675
        %v2845 = vunpack.c.l.b16 %v1676
        %v2846 = vunpack.c.h.b16 %v1676
        %v2847 = vunpack.c.l.b16 %v1677
        %v2848 = vunpack.c.h.b16 %v1677
        %v2849 = vunpack.c.l.b16 %v1678
        %v2850 = vunpack.c.h.b16 %v1678
        %v2851 = vunpack.c.l.b16 %v1679
        %v2852 = vunpack.c.h.b16 %v1679
        %v2853 = vunpack.c.l.b16 %v1680
        %v2854 = vunpack.c.h.b16 %v1680
        %v2855 = vunpack.c.l.b16 %v1681
        %v2856 = vunpack.c.h.b16 %v1681
        %v2857 = vunpack.c.l.b16 %v1682
        %v2858 = vunpack.c.h.b16 %v1682
        %v2859 = vunpack.c.l.b16 %v1683
        %v2860 = vunpack.c.h.b16 %v1683
        %v2861 = vunpack.c.l.b16 %v1684
        %v2862 = vunpack.c.h.b16 %v1684
        %v2863 = vunpack.c.l.b16 %v1685
        %v2864 = vunpack.c.h.b16 %v1685
        %v2865 = vunpack.c.l.b16 %v1686
        %v2866 = vunpack.c.h.b16 %v1686
        %v2867 = vunpack.c.l.b16 %v1687
        %v2868 = vunpack.c.h.b16 %v1687
        %v2869 = vunpack.c.l.b16 %v1688
        %v2870 = vunpack.c.h.b16 %v1688
        %v2871 = vunpack.c.l.b16 %v1689
        %v2872 = vunpack.c.h.b16 %v1689
        %v2873 = vunpack.c.l.b16 %v1690
        %v2874 = vunpack.c.h.b16 %v1690
        %v2875 = vunpack.c.l.b16 %v1691
        %v2876 = vunpack.c.h.b16 %v1691
        %v2877 = vunpack.c.l.b16 %v1692
        %v2878 = vunpack.c.h.b16 %v1692
        %v2879 = vunpack.c.l.b16 %v1693
        %v2880 = vunpack.c.h.b16 %v1693
        %v2881 = vunpack.c.l.b16 %v1694
        %v2882 = vunpack.c.h.b16 %v1694
        %v2883 = vunpack.c.l.b16 %v1695
        %v2884 = vunpack.c.h.b16 %v1695
        %v2885 = vunpack.c.l.b16 %v1696
        %v2886 = vunpack.c.h.b16 %v1696
        %v2887 = vunpack.c.l.b16 %v1697
        %v2888 = vunpack.c.h.b16 %v1697
        %v2889 = vunpack.c.l.b16 %v1698
        %v2890 = vunpack.c.h.b16 %v1698
        %v2891 = vunpack.c.l.b16 %v1699
        %v2892 = vunpack.c.h.b16 %v1699
        %v2893 = vunpack.c.l.b16 %v1700
        %v2894 = vunpack.c.h.b16 %v1700
        %v2895 = vunpack.c.l.b16 %v1701
        %v2896 = vunpack.c.h.b16 %v1701
        %v2897 = vunpack.c.l.b16 %v1702
        %v2898 = vunpack.c.h.b16 %v1702
        %v2899 = vunpack.c.l.b16 %v1703
        %v2900 = vunpack.c.h.b16 %v1703
        %v2901 = vunpack.c.l.b16 %v1704
        %v2902 = vunpack.c.h.b16 %v1704
        %v2903 = vunpack.c.l.b16 %v1705
        %v2904 = vunpack.c.h.b16 %v1705
        %v2905 = vunpack.c.l.b16 %v1706
        %v2906 = vunpack.c.h.b16 %v1706
        %v2907 = vunpack.c.l.b16 %v1707
        %v2908 = vunpack.c.h.b16 %v1707
        %v2909 = vunpack.c.l.b16 %v1708
        %v2910 = vunpack.c.h.b16 %v1708
        %v2911 = vunpack.c.l.b16 %v1709
        %v2912 = vunpack.c.h.b16 %v1709
        %v2913 = vunpack.c.l.b16 %v1710
        %v2914 = vunpack.c.h.b16 %v1710
        %v2915 = vunpack.c.l.b16 %v1711
        %v2916 = vunpack.c.h.b16 %v1711
        %v2917 = vunpack.c.l.b16 %v1712
        %v2918 = vunpack.c.h.b16 %v1712
        %v2919 = vunpack.c.l.b16 %v1713
        %v2920 = vunpack.c.h.b16 %v1713
        %v2921 = vunpack.c.l.b16 %v1714
        %v2922 = vunpack.c.h.b16 %v1714
        %v2923 = vunpack.c.l.b16 %v1715
        %v2924 = vunpack.c.h.b16 %v1715
        %v2925 = vunpack.c.l.b16 %v1716
        %v2926 = vunpack.c.h.b16 %v1716
        %v2927 = vunpack.c.l.b16 %v1717
        %v2928 = vunpack.c.h.b16 %v1717
        %v2929 = vunpack.c.l.b16 %v1718
        %v2930 = vunpack.c.h.b16 %v1718
        %v2931 = vunpack.c.l.b16 %v1719
        %v2932 = vunpack.c.h.b16 %v1719
        %v2933 = vunpack.c.l.b16 %v1720
        %v2934 = vunpack.c.h.b16 %v1720
        %v2935 = vunpack.c.l.b16 %v1721
        %v2936 = vunpack.c.h.b16 %v1721
        %v2937 = vunpack.c.l.b16 %v1722
        %v2938 = vunpack.c.h.b16 %v1722
        %v2939 = vunpack.c.l.b16 %v1723
        %v2940 = vunpack.c.h.b16 %v1723
        %v2941 = vunpack.c.l.b16 %v1724
        %v2942 = vunpack.c.h.b16 %v1724
        %v2943 = vunpack.c.l.b16 %v1725
        %v2944 = vunpack.c.h.b16 %v1725
        %v2945 = vunpack.c.l.b16 %v1726
        %v2946 = vunpack.c.h.b16 %v1726
        %v2947 = vunpack.c.l.b16 %v1727
        %v2948 = vunpack.c.h.b16 %v1727
        %v2949 = vunpack.c.l.b16 %v1728
        %v2950 = vunpack.c.h.b16 %v1728
        %v2951 = vunpack.c.l.b16 %v1729
        %v2952 = vunpack.c.h.b16 %v1729
        %v2953 = vunpack.c.l.b16 %v1730
        %v2954 = vunpack.c.h.b16 %v1730
        %v2955 = vunpack.c.l.b16 %v1731
        %v2956 = vunpack.c.h.b16 %v1731
        %v2957 = vunpack.c.l.b16 %v1732
        %v2958 = vunpack.c.h.b16 %v1732
        %v2959 = vunpack.c.l.b16 %v1733
        %v2960 = vunpack.c.h.b16 %v1733
        %v2961 = vunpack.c.l.b16 %v1734
        %v2962 = vunpack.c.h.b16 %v1734
        %v2963 = vunpack.c.l.b16 %v1735
        %v2964 = vunpack.c.h.b16 %v1735
        %v2965 = vunpack.c.l.b16 %v1736
        %v2966 = vunpack.c.h.b16 %v1736
        %v2967 = vunpack.c.l.b16 %v1737
        %v2968 = vunpack.c.h.b16 %v1737
        %v2969 = vunpack.c.l.b16 %v1738
        %v2970 = vunpack.c.h.b16 %v1738
        %v2971 = vunpack.c.l.b16 %v1739
        %v2972 = vunpack.c.h.b16 %v1739
        %v2973 = vunpack.c.l.b16 %v1740
        %v2974 = vunpack.c.h.b16 %v1740
        %v2975 = vunpack.c.l.b16 %v1741
        %v2976 = vunpack.c.h.b16 %v1741
        %v2977 = vunpack.c.l.b16 %v1742
        %v2978 = vunpack.c.h.b16 %v1742
        %v2979 = vunpack.c.l.b16 %v1743
        %v2980 = vunpack.c.h.b16 %v1743
        %v2981 = vunpack.c.l.b16 %v1744
        %v2982 = vunpack.c.h.b16 %v1744
        %v2983 = vunpack.c.l.b16 %v1745
        %v2984 = vunpack.c.h.b16 %v1745
        %v2985 = vunpack.c.l.b16 %v1746
        %v2986 = vunpack.c.h.b16 %v1746
        %v2987 = vunpack.c.l.b16 %v1747
        %v2988 = vunpack.c.h.b16 %v1747
        %v2989 = vunpack.c.l.b16 %v1748
        %v2990 = vunpack.c.h.b16 %v1748
        %v2991 = vunpack.c.l.b16 %v1749
        %v2992 = vunpack.c.h.b16 %v1749
        %v2993 = vunpack.c.l.b16 %v1750
        %v2994 = vunpack.c.h.b16 %v1750
        %v2995 = vunpack.c.l.b16 %v1751
        %v2996 = vunpack.c.h.b16 %v1751
        %v2997 = vunpack.c.l.b16 %v1752
        %v2998 = vunpack.c.h.b16 %v1752
        %v2999 = vunpack.c.l.b16 %v1753
        %v3000 = vunpack.c.h.b16 %v1753
        %v3001 = vunpack.c.l.b16 %v1754
        %v3002 = vunpack.c.h.b16 %v1754
        %v3003 = vunpack.c.l.b16 %v1755
        %v3004 = vunpack.c.h.b16 %v1755
        %v3005 = vunpack.c.l.b16 %v1756
        %v3006 = vunpack.c.h.b16 %v1756
        %v3007 = vunpack.c.l.b16 %v1757
        %v3008 = vunpack.c.h.b16 %v1757
        %v3009 = vunpack.c.l.b16 %v1758
        %v3010 = vunpack.c.h.b16 %v1758
        %v3011 = vunpack.c.l.b16 %v1759
        %v3012 = vunpack.c.h.b16 %v1759
        %v3013 = vunpack.c.l.b16 %v1760
        %v3014 = vunpack.c.h.b16 %v1760
        %v3015 = vunpack.c.l.b16 %v1761
        %v3016 = vunpack.c.h.b16 %v1761
        %v3017 = vunpack.c.l.b16 %v1762
        %v3018 = vunpack.c.h.b16 %v1762
        %v3019 = vunpack.c.l.b16 %v1763
        %v3020 = vunpack.c.h.b16 %v1763
        %v3021 = vunpack.c.l.b16 %v1764
        %v3022 = vunpack.c.h.b16 %v1764
        %v3023 = vunpack.c.l.b16 %v1765
        %v3024 = vunpack.c.h.b16 %v1765
        %v3025 = vunpack.c.l.b16 %v1766
        %v3026 = vunpack.c.h.b16 %v1766
        %v3027 = vunpack.c.l.b16 %v1767
        %v3028 = vunpack.c.h.b16 %v1767
        %v3029 = vunpack.c.l.b16 %v1768
        %v3030 = vunpack.c.h.b16 %v1768
        %v3031 = vunpack.c.l.b16 %v1769
        %v3032 = vunpack.c.h.b16 %v1769
        %v3033 = vunpack.c.l.b16 %v1770
        %v3034 = vunpack.c.h.b16 %v1770
        %v3035 = vunpack.c.l.b16 %v1771
        %v3036 = vunpack.c.h.b16 %v1771
        %v3037 = vunpack.c.l.b16 %v1772
        %v3038 = vunpack.c.h.b16 %v1772
        %v3039 = vunpack.c.l.b16 %v1773
        %v3040 = vunpack.c.h.b16 %v1773
        %v3041 = vunpack.c.l.b16 %v1774
        %v3042 = vunpack.c.h.b16 %v1774
        %v3043 = vunpack.c.l.b16 %v1775
        %v3044 = vunpack.c.h.b16 %v1775
        %v3045 = vunpack.c.l.b16 %v1776
        %v3046 = vunpack.c.h.b16 %v1776
        %v3047 = vunpack.c.l.b16 %v1777
        %v3048 = vunpack.c.h.b16 %v1777
        %v3049 = vunpack.c.l.b16 %v1778
        %v3050 = vunpack.c.h.b16 %v1778
        %v3051 = vunpack.c.l.b16 %v1779
        %v3052 = vunpack.c.h.b16 %v1779
        %v3053 = vunpack.c.l.b16 %v1780
        %v3054 = vunpack.c.h.b16 %v1780
        %v3055 = vunpack.c.l.b16 %v1781
        %v3056 = vunpack.c.h.b16 %v1781
        %v3057 = vunpack.c.l.b16 %v1782
        %v3058 = vunpack.c.h.b16 %v1782
        %v3059 = vunpack.c.l.b16 %v1783
        %v3060 = vunpack.c.h.b16 %v1783
        %v3061 = vunpack.c.l.b16 %v1784
        %v3062 = vunpack.c.h.b16 %v1784
        %v3063 = vunpack.c.l.b16 %v1785
        %v3064 = vunpack.c.h.b16 %v1785
        %v3065 = vunpack.c.l.b16 %v1786
        %v3066 = vunpack.c.h.b16 %v1786
        %v3067 = vunpack.c.l.b16 %v1787
        %v3068 = vunpack.c.h.b16 %v1787
        %v3069 = vunpack.c.l.b16 %v1788
        %v3070 = vunpack.c.h.b16 %v1788
        %v3071 = vunpack.c.l.b16 %v1789
        %v3072 = vunpack.c.h.b16 %v1789
        %v3073 = vunpack.c.l.b16 %v1790
        %v3074 = vunpack.c.h.b16 %v1790
        %v3075 = vunpack.c.l.b16 %v1791
        %v3076 = vunpack.c.h.b16 %v1791
        %v3077 = vunpack.c.l.b16 %v1792
        %v3078 = vunpack.c.h.b16 %v1792
        %v3079 = vunpack.c.l.b16 %v1793
        %v3080 = vunpack.c.h.b16 %v1793
        %v3081 = vunpack.c.l.b16 %v1794
        %v3082 = vunpack.c.h.b16 %v1794
        %v3083 = vunpack.c.l.b16 %v1795
        %v3084 = vunpack.c.h.b16 %v1795
        %v3085 = vunpack.c.l.b16 %v1796
        %v3086 = vunpack.c.h.b16 %v1796
        %v3087 = vunpack.c.l.b16 %v1797
        %v3088 = vunpack.c.h.b16 %v1797
        %v3089 = vunpack.c.l.b16 %v1798
        %v3090 = vunpack.c.h.b16 %v1798
        %v3091 = vunpack.c.l.b16 %v1799
        %v3092 = vunpack.c.h.b16 %v1799
        %v3093 = vunpack.c.l.b16 %v1800
        %v3094 = vunpack.c.h.b16 %v1800
        %v3095 = vunpack.c.l.b16 %v1801
        %v3096 = vunpack.c.h.b16 %v1801
        %v3097 = vunpack.c.l.b16 %v1802
        %v3098 = vunpack.c.h.b16 %v1802
        %v3099 = vunpack.c.l.b16 %v1803
        %v3100 = vunpack.c.h.b16 %v1803
        %v3101 = vunpack.c.l.b16 %v1804
        %v3102 = vunpack.c.h.b16 %v1804
        %v3103 = vunpack.c.l.b16 %v1805
        %v3104 = vunpack.c.h.b16 %v1805
        %v3105 = vunpack.c.l.b16 %v1806
        %v3106 = vunpack.c.h.b16 %v1806
        %v3107 = vunpack.c.l.b16 %v1807
        %v3108 = vunpack.c.h.b16 %v1807
        %v3109 = vunpack.c.l.b16 %v1808
        %v3110 = vunpack.c.h.b16 %v1808
        %v3111 = vunpack.c.l.b16 %v1809
        %v3112 = vunpack.c.h.b16 %v1809
        %v3113 = vunpack.c.l.b16 %v1810
        %v3114 = vunpack.c.h.b16 %v1810
        %v3115 = vunpack.c.l.b16 %v1811
        %v3116 = vunpack.c.h.b16 %v1811
        %v3117 = vunpack.c.l.b16 %v1812
        %v3118 = vunpack.c.h.b16 %v1812
        %v3119 = vunpack.c.l.b16 %v1813
        %v3120 = vunpack.c.h.b16 %v1813
        %v3121 = vunpack.c.l.b16 %v1814
        %v3122 = vunpack.c.h.b16 %v1814
        %v3123 = vunpack.c.l.b16 %v1815
        %v3124 = vunpack.c.h.b16 %v1815
        %v3125 = vunpack.c.l.b16 %v1816
        %v3126 = vunpack.c.h.b16 %v1816
        %v3127 = vunpack.c.l.b16 %v1817
        %v3128 = vunpack.c.h.b16 %v1817
        %v3129 = vunpack.c.l.b16 %v1818
        %v3130 = vunpack.c.h.b16 %v1818
        %v3131 = vunpack.c.l.b16 %v1819
        %v3132 = vunpack.c.h.b16 %v1819
        %v3133 = vunpack.c.l.b16 %v1820
        %v3134 = vunpack.c.h.b16 %v1820
        %v3135 = vunpack.c.l.b16 %v1821
        %v3136 = vunpack.c.h.b16 %v1821
        %v3137 = vunpack.c.l.b16 %v1822
        %v3138 = vunpack.c.h.b16 %v1822
        %v3139 = vunpack.c.l.b16 %v1823
        %v3140 = vunpack.c.h.b16 %v1823
        %v3141 = vunpack.c.l.b16 %v1824
        %v3142 = vunpack.c.h.b16 %v1824
        %v3143 = vunpack.c.l.b16 %v1825
        %v3144 = vunpack.c.h.b16 %v1825
        %v3145 = vunpack.c.l.b16 %v1826
        %v3146 = vunpack.c.h.b16 %v1826
        %v3147 = vunpack.c.l.b16 %v1827
        %v3148 = vunpack.c.h.b16 %v1827
        %v3149 = vunpack.c.l.b16 %v1828
        %v3150 = vunpack.c.h.b16 %v1828
        %v3151 = vunpack.c.l.b16 %v1829
        %v3152 = vunpack.c.h.b16 %v1829
        %v3153 = vunpack.c.l.b16 %v1830
        %v3154 = vunpack.c.h.b16 %v1830
        %v3155 = vunpack.c.l.b16 %v1831
        %v3156 = vunpack.c.h.b16 %v1831
        %v3157 = vunpack.c.l.b16 %v1832
        %v3158 = vunpack.c.h.b16 %v1832
        %v3159 = vunpack.c.l.b16 %v1833
        %v3160 = vunpack.c.h.b16 %v1833
        %v3161 = vunpack.c.l.b16 %v1834
        %v3162 = vunpack.c.h.b16 %v1834
        %v3163 = vunpack.c.l.b16 %v1835
        %v3164 = vunpack.c.h.b16 %v1835
        %v3165 = vunpack.c.l.b16 %v1836
        %v3166 = vunpack.c.h.b16 %v1836
        %v3167 = vunpack.c.l.b16 %v1837
        %v3168 = vunpack.c.h.b16 %v1837
        %v3169 = vunpack.c.l.b16 %v1838
        %v3170 = vunpack.c.h.b16 %v1838
        %v3171 = vunpack.c.l.b16 %v1839
        %v3172 = vunpack.c.h.b16 %v1839
        %v3173 = vunpack.c.l.b16 %v1840
        %v3174 = vunpack.c.h.b16 %v1840
        %v3175 = vunpack.c.l.b16 %v1841
        %v3176 = vunpack.c.h.b16 %v1841
        %v3177 = vunpack.c.l.b16 %v1842
        %v3178 = vunpack.c.h.b16 %v1842
        %v3179 = vunpack.c.l.b16 %v1843
        %v3180 = vunpack.c.h.b16 %v1843
        %v3181 = vunpack.c.l.b16 %v1844
        %v3182 = vunpack.c.h.b16 %v1844
        %v3183 = vunpack.c.l.b16 %v1845
        %v3184 = vunpack.c.h.b16 %v1845
        %v3185 = vunpack.c.l.b16 %v1846
        %v3186 = vunpack.c.h.b16 %v1846
        %v3187 = vunpack.c.l.b16 %v1847
        %v3188 = vunpack.c.h.b16 %v1847
        %v3189 = vunpack.c.l.b16 %v1848
        %v3190 = vunpack.c.h.b16 %v1848
        %v3191 = vunpack.c.l.b16 %v1849
        %v3192 = vunpack.c.h.b16 %v1849
        %v3193 = vunpack.c.l.b16 %v1850
        %v3194 = vunpack.c.h.b16 %v1850
        %v3195 = vunpack.c.l.b16 %v1851
        %v3196 = vunpack.c.h.b16 %v1851
        %v3197 = vunpack.c.l.b16 %v1852
        %v3198 = vunpack.c.h.b16 %v1852
        %v3199 = vunpack.c.l.b16 %v1853
        %v3200 = vunpack.c.h.b16 %v1853
        %v3201 = vunpack.c.l.b16 %v1854
        %v3202 = vunpack.c.h.b16 %v1854
        %v3203 = vunpack.c.l.b16 %v1855
        %v3204 = vunpack.c.h.b16 %v1855
        %v3205 = vunpack.c.l.b16 %v1856
        %v3206 = vunpack.c.h.b16 %v1856
        %v3207 = vunpack.c.l.b16 %v1857
        %v3208 = vunpack.c.h.b16 %v1857
        %v3209 = vunpack.c.l.b16 %v1858
        %v3210 = vunpack.c.h.b16 %v1858
        %v3211 = vunpack.c.l.b16 %v1859
        %v3212 = vunpack.c.h.b16 %v1859
        %v3213 = vunpack.c.l.b16 %v1860
        %v3214 = vunpack.c.h.b16 %v1860
        %v3215 = vunpack.c.l.b16 %v1861
        %v3216 = vunpack.c.h.b16 %v1861
        %v3217 = vunpack.c.l.b16 %v1862
        %v3218 = vunpack.c.h.b16 %v1862
        %v3219 = vunpack.c.l.b16 %v1863
        %v3220 = vunpack.c.h.b16 %v1863
        %v3221 = vunpack.c.l.b16 %v1864
        %v3222 = vunpack.c.h.b16 %v1864
        %v3223 = vunpack.c.l.b16 %v1865
        %v3224 = vunpack.c.h.b16 %v1865
        %v3225 = vunpack.c.l.b16 %v1866
        %v3226 = vunpack.c.h.b16 %v1866
        %v3227 = vunpack.c.l.b16 %v1867
        %v3228 = vunpack.c.h.b16 %v1867
        %v3229 = vunpack.c.l.b16 %v1868
        %v3230 = vunpack.c.h.b16 %v1868
        %v3231 = vunpack.c.l.b16 %v1869
        %v3232 = vunpack.c.h.b16 %v1869
        %v3233 = vunpack.c.l.b16 %v1870
        %v3234 = vunpack.c.h.b16 %v1870
        %v3235 = vunpack.c.l.b16 %v1871
        %v3236 = vunpack.c.h.b16 %v1871
        %v3237 = vunpack.c.l.b16 %v1872
        %v3238 = vunpack.c.h.b16 %v1872
        %v3239 = vunpack.c.l.b16 %v1873
        %v3240 = vunpack.c.h.b16 %v1873
        %v3241 = vunpack.c.l.b16 %v1874
        %v3242 = vunpack.c.h.b16 %v1874
        %v3243 = vunpack.c.l.b16 %v1875
        %v3244 = vunpack.c.h.b16 %v1875
        %v3245 = vunpack.c.l.b16 %v1876
        %v3246 = vunpack.c.h.b16 %v1876
        %v3247 = vunpack.c.l.b16 %v1877
        %v3248 = vunpack.c.h.b16 %v1877
        %v3249 = vunpack.c.l.b16 %v1878
        %v3250 = vunpack.c.h.b16 %v1878
        %v3251 = vunpack.c.l.b16 %v1879
        %v3252 = vunpack.c.h.b16 %v1879
        %v3253 = vunpack.c.l.b16 %v1880
        %v3254 = vunpack.c.h.b16 %v1880
        %v3255 = vunpack.c.l.b16 %v1881
        %v3256 = vunpack.c.h.b16 %v1881
        %v3257 = vunpack.c.l.b16 %v1882
        %v3258 = vunpack.c.h.b16 %v1882
        %v3259 = vunpack.c.l.b16 %v1883
        %v3260 = vunpack.c.h.b16 %v1883
        %v3261 = vunpack.c.l.b16 %v1884
        %v3262 = vunpack.c.h.b16 %v1884
        %v3263 = vunpack.c.l.b16 %v1885
        %v3264 = vunpack.c.h.b16 %v1885
        %v3265 = vunpack.c.l.b16 %v1886
        %v3266 = vunpack.c.h.b16 %v1886
        %v3267 = vunpack.c.l.b16 %v1887
        %v3268 = vunpack.c.h.b16 %v1887
        %v3269 = vunpack.c.l.b16 %v1888
        %v3270 = vunpack.c.h.b16 %v1888
        %v3271 = vunpack.c.l.b16 %v1889
        %v3272 = vunpack.c.h.b16 %v1889
        %v3273 = vunpack.c.l.b16 %v1890
        %v3274 = vunpack.c.h.b16 %v1890
        %v3275 = vunpack.c.l.b16 %v1891
        %v3276 = vunpack.c.h.b16 %v1891
        %v3277 = vunpack.c.l.b16 %v1892
        %v3278 = vunpack.c.h.b16 %v1892
        %v3279 = vunpack.c.l.b16 %v1893
        %v3280 = vunpack.c.h.b16 %v1893
        %v3281 = vunpack.c.l.b16 %v1894
        %v3282 = vunpack.c.h.b16 %v1894
        %v3283 = vunpack.c.l.b16 %v1895
        %v3284 = vunpack.c.h.b16 %v1895
        %v3285 = vunpack.c.l.b16 %v1896
        %v3286 = vunpack.c.h.b16 %v1896
        %v3287 = vunpack.c.l.b16 %v1897
        %v3288 = vunpack.c.h.b16 %v1897
        %v3289 = vunpack.c.l.b16 %v1898
        %v3290 = vunpack.c.h.b16 %v1898
        %v3291 = vunpack.c.l.b16 %v1899
        %v3292 = vunpack.c.h.b16 %v1899
        %v3293 = vunpack.c.l.b16 %v1900
        %v3294 = vunpack.c.h.b16 %v1900
        %v3295 = vunpack.c.l.b16 %v1901
        %v3296 = vunpack.c.h.b16 %v1901
        %v3297 = vunpack.c.l.b16 %v1902
        %v3298 = vunpack.c.h.b16 %v1902
        %v3299 = vunpack.c.l.b16 %v1903
        %v3300 = vunpack.c.h.b16 %v1903
        %v3301 = vunpack.c.l.b16 %v1904
        %v3302 = vunpack.c.h.b16 %v1904
        %v3303 = vunpack.c.l.b16 %v1905
        %v3304 = vunpack.c.h.b16 %v1905
        %v3305 = vunpack.c.l.b16 %v1906
        %v3306 = vunpack.c.h.b16 %v1906
        %v3307 = vunpack.c.l.b16 %v1907
        %v3308 = vunpack.c.h.b16 %v1907
        %v3309 = vunpack.c.l.b16 %v1908
        %v3310 = vunpack.c.h.b16 %v1908
        %v3311 = vunpack.c.l.b16 %v1909
        %v3312 = vunpack.c.h.b16 %v1909
        %v3313 = vunpack.c.l.b16 %v1910
        %v3314 = vunpack.c.h.b16 %v1910
        %v3315 = vunpack.c.l.b16 %v1911
        %v3316 = vunpack.c.h.b16 %v1911
        %v3317 = vunpack.c.l.b16 %v1912
        %v3318 = vunpack.c.h.b16 %v1912
        %v3319 = vunpack.c.l.b16 %v1913
        %v3320 = vunpack.c.h.b16 %v1913
        %v3321 = vunpack.c.l.b16 %v1914
        %v3322 = vunpack.c.h.b16 %v1914
        %v3323 = vunpack.c.l.b16 %v1915
        %v3324 = vunpack.c.h.b16 %v1915
        %v3325 = vunpack.c.l.b16 %v1916
        %v3326 = vunpack.c.h.b16 %v1916
        %v3327 = vunpack.c.l.b16 %v1917
        %v3328 = vunpack.c.h.b16 %v1917
        %v3329 = vunpack.c.l.b16 %v1918
        %v3330 = vunpack.c.h.b16 %v1918
        %v3331 = vunpack.c.l.b16 %v1919
        %v3332 = vunpack.c.h.b16 %v1919
        %v3333 = vunpack.c.l.b16 %v1920
        %v3334 = vunpack.c.h.b16 %v1920
        %v3335 = vunpack.c.l.b16 %v1921
        %v3336 = vunpack.c.h.b16 %v1921
        %v3337 = vunpack.c.l.b16 %v1922
        %v3338 = vunpack.c.h.b16 %v1922
        %v3339 = vunpack.c.l.b16 %v1923
        %v3340 = vunpack.c.h.b16 %v1923
        %v3341 = vunpack.c.l.b16 %v1924
        %v3342 = vunpack.c.h.b16 %v1924
        %v3343 = vunpack.c.l.b16 %v1925
        %v3344 = vunpack.c.h.b16 %v1925
        %v3345 = vunpack.c.l.b16 %v1926
        %v3346 = vunpack.c.h.b16 %v1926
        %v3347 = vunpack.c.l.b16 %v1927
        %v3348 = vunpack.c.h.b16 %v1927
        %v3349 = vunpack.c.l.b16 %v1928
        %v3350 = vunpack.c.h.b16 %v1928
        %v3351 = vunpack.c.l.b16 %v1929
        %v3352 = vunpack.c.h.b16 %v1929
        %v3353 = vunpack.c.l.b16 %v1930
        %v3354 = vunpack.c.h.b16 %v1930
        %v3355 = vunpack.c.l.b16 %v1931
        %v3356 = vunpack.c.h.b16 %v1931
        %v3357 = vunpack.c.l.b16 %v1932
        %v3358 = vunpack.c.h.b16 %v1932
        %v3359 = vunpack.c.l.b16 %v1933
        %v3360 = vunpack.c.h.b16 %v1933
        %v3361 = vunpack.c.l.b16 %v1934
        %v3362 = vunpack.c.h.b16 %v1934
        %v3363 = vunpack.c.l.b16 %v1935
        %v3364 = vunpack.c.h.b16 %v1935
        %v3365 = vunpack.c.l.b16 %v1936
        %v3366 = vunpack.c.h.b16 %v1936
        %v3367 = vunpack.c.l.b16 %v1937
        %v3368 = vunpack.c.h.b16 %v1937
        %v3369 = vunpack.c.l.b16 %v1938
        %v3370 = vunpack.c.h.b16 %v1938
        %v3371 = vunpack.c.l.b16 %v1939
        %v3372 = vunpack.c.h.b16 %v1939
        %v3373 = vunpack.c.l.b16 %v1940
        %v3374 = vunpack.c.h.b16 %v1940
        %v3375 = vunpack.c.l.b16 %v1941
        %v3376 = vunpack.c.h.b16 %v1941
        %v3377 = vunpack.c.l.b16 %v1942
        %v3378 = vunpack.c.h.b16 %v1942
        %v3379 = vunpack.c.l.b16 %v1943
        %v3380 = vunpack.c.h.b16 %v1943
        %v3381 = vunpack.c.l.b16 %v1944
        %v3382 = vunpack.c.h.b16 %v1944
        %v3383 = vunpack.c.l.b16 %v1945
        %v3384 = vunpack.c.h.b16 %v1945
        %v3385 = vunpack.c.l.b16 %v1946
        %v3386 = vunpack.c.h.b16 %v1946
        %v3387 = vunpack.c.l.b16 %v1947
        %v3388 = vunpack.c.h.b16 %v1947
        %v3389 = vunpack.c.l.b16 %v1948
        %v3390 = vunpack.c.h.b16 %v1948
        %v3391 = vunpack.c.l.b16 %v1949
        %v3392 = vunpack.c.h.b16 %v1949
        %v3393 = vunpack.c.l.b16 %v1950
        %v3394 = vunpack.c.h.b16 %v1950
        %v3395 = vunpack.c.l.b16 %v1951
        %v3396 = vunpack.c.h.b16 %v1951
        %v3397 = vunpack.c.l.b16 %v1952
        %v3398 = vunpack.c.h.b16 %v1952
        %v3399 = vunpack.c.l.b16 %v1953
        %v3400 = vunpack.c.h.b16 %v1953
        %v3401 = vunpack.c.l.b16 %v1954
        %v3402 = vunpack.c.h.b16 %v1954
        %v3403 = vunpack.c.l.b16 %v1955
        %v3404 = vunpack.c.h.b16 %v1955
        %v3405 = vunpack.c.l.b16 %v1956
        %v3406 = vunpack.c.h.b16 %v1956
        %v3407 = vunpack.c.l.b16 %v1957
        %v3408 = vunpack.c.h.b16 %v1957
        %v3409 = vunpack.c.l.b16 %v1958
        %v3410 = vunpack.c.h.b16 %v1958
        %v3411 = vunpack.c.l.b16 %v1959
        %v3412 = vunpack.c.h.b16 %v1959
        %v3413 = vunpack.c.l.b16 %v1960
        %v3414 = vunpack.c.h.b16 %v1960
        %v3415 = vunpack.c.l.b16 %v1961
        %v3416 = vunpack.c.h.b16 %v1961
        %v3417 = vunpack.c.l.b16 %v1962
        %v3418 = vunpack.c.h.b16 %v1962
        %v3419 = vunpack.c.l.b16 %v1963
        %v3420 = vunpack.c.h.b16 %v1963
        %v3421 = vunpack.c.l.b16 %v1964
        %v3422 = vunpack.c.h.b16 %v1964
        %v3423 = vunpack.c.l.b16 %v1965
        %v3424 = vunpack.c.h.b16 %v1965
        %v3425 = vunpack.c.l.b16 %v1966
        %v3426 = vunpack.c.h.b16 %v1966
        %v3427 = vunpack.c.l.b16 %v1967
        %v3428 = vunpack.c.h.b16 %v1967
        %v3429 = vunpack.c.l.b16 %v1968
        %v3430 = vunpack.c.h.b16 %v1968
        %v3431 = vunpack.c.l.b16 %v1969
        %v3432 = vunpack.c.h.b16 %v1969
        %v3433 = vunpack.c.l.b16 %v1970
        %v3434 = vunpack.c.h.b16 %v1970
        %v3435 = vunpack.c.l.b16 %v1971
        %v3436 = vunpack.c.h.b16 %v1971
        %v3437 = vunpack.c.l.b16 %v1972
        %v3438 = vunpack.c.h.b16 %v1972
        %v3439 = vunpack.c.l.b16 %v1973
        %v3440 = vunpack.c.h.b16 %v1973
        %v3441 = vunpack.c.l.b16 %v1974
        %v3442 = vunpack.c.h.b16 %v1974
        %v3443 = vunpack.c.l.b16 %v1975
        %v3444 = vunpack.c.h.b16 %v1975
        %v3445 = vunpack.c.l.b16 %v1976
        %v3446 = vunpack.c.h.b16 %v1976
        %v3447 = vunpack.c.l.b16 %v1977
        %v3448 = vunpack.c.h.b16 %v1977
        %v3449 = vunpack.c.l.b16 %v1978
        %v3450 = vunpack.c.h.b16 %v1978
        %v3451 = vunpack.c.l.b16 %v1979
        %v3452 = vunpack.c.h.b16 %v1979
        %v3453 = vunpack.c.l.b16 %v1980
        %v3454 = vunpack.c.h.b16 %v1980
        %v3455 = vunpack.c.l.b16 %v1981
        %v3456 = vunpack.c.h.b16 %v1981
        %v3457 = vunpack.c.l.b16 %v1982
        %v3458 = vunpack.c.h.b16 %v1982
        %v3459 = vunpack.c.l.b16 %v1983
        %v3460 = vunpack.c.h.b16 %v1983
        %v3461 = vunpack.c.l.b16 %v1984
        %v3462 = vunpack.c.h.b16 %v1984
        %v3463 = vunpack.c.l.b16 %v1985
        %v3464 = vunpack.c.h.b16 %v1985
        %v3465 = vunpack.c.l.b16 %v1986
        %v3466 = vunpack.c.h.b16 %v1986
        %v3467 = vunpack.c.l.b16 %v1987
        %v3468 = vunpack.c.h.b16 %v1987
        %v3469 = vunpack.c.l.b16 %v1988
        %v3470 = vunpack.c.h.b16 %v1988
        %v3471 = vunpack.c.l.b16 %v1989
        %v3472 = vunpack.c.h.b16 %v1989
        %v3473 = vunpack.c.l.b16 %v1990
        %v3474 = vunpack.c.h.b16 %v1990
        %v3475 = vunpack.c.l.b16 %v1991
        %v3476 = vunpack.c.h.b16 %v1991
        %v3477 = vunpack.c.l.b16 %v1992
        %v3478 = vunpack.c.h.b16 %v1992
        %v3479 = vunpack.c.l.b16 %v1993
        %v3480 = vunpack.c.h.b16 %v1993
        %v3481 = vunpack.c.l.b16 %v1994
        %v3482 = vunpack.c.h.b16 %v1994
        %v3483 = vunpack.c.l.b16 %v1995
        %v3484 = vunpack.c.h.b16 %v1995
        %v3485 = vunpack.c.l.b16 %v1996
        %v3486 = vunpack.c.h.b16 %v1996
        %v3487 = vunpack.c.l.b16 %v1997
        %v3488 = vunpack.c.h.b16 %v1997
        %v3489 = vunpack.c.l.b16 %v1998
        %v3490 = vunpack.c.h.b16 %v1998
        %v3491 = vunpack.c.l.b16 %v1999
        %v3492 = vunpack.c.h.b16 %v1999
        %v3493 = vunpack.c.l.b16 %v2000
        %v3494 = vunpack.c.h.b16 %v2000
        %v3495 = vunpack.c.l.b16 %v2001
        %v3496 = vunpack.c.h.b16 %v2001
        %v3497 = vunpack.c.l.b16 %v2002
        %v3498 = vunpack.c.h.b16 %v2002
        %v3499 = vunpack.c.l.b16 %v2003
        %v3500 = vunpack.c.h.b16 %v2003
        %v3501 = vunpack.c.l.b16 %v2004
        %v3502 = vunpack.c.h.b16 %v2004
        %v3503 = vunpack.c.l.b16 %v2005
        %v3504 = vunpack.c.h.b16 %v2005
        %v3505 = vunpack.c.l.b16 %v2006
        %v3506 = vunpack.c.h.b16 %v2006
        %v3507 = vunpack.c.l.b16 %v2007
        %v3508 = vunpack.c.h.b16 %v2007
        %v3509 = vunpack.c.l.b16 %v2008
        %v3510 = vunpack.c.h.b16 %v2008
        %v3511 = vunpack.c.l.b16 %v2009
        %v3512 = vunpack.c.h.b16 %v2009
        %v3513 = vunpack.c.l.b16 %v2010
        %v3514 = vunpack.c.h.b16 %v2010
        %v3515 = vunpack.c.l.b16 %v2011
        %v3516 = vunpack.c.h.b16 %v2011
        %v3517 = vunpack.c.l.b16 %v2012
        %v3518 = vunpack.c.h.b16 %v2012
        %v3519 = vunpack.c.l.b16 %v2013
        %v3520 = vunpack.c.h.b16 %v2013
        %v3521 = vunpack.c.l.b16 %v2014
        %v3522 = vunpack.c.h.b16 %v2014
        %v3523 = vunpack.c.l.b16 %v2015
        %v3524 = vunpack.c.h.b16 %v2015
        %v3525 = vunpack.c.l.b16 %v2016
        %v3526 = vunpack.c.h.b16 %v2016
        %v3527 = vunpack.c.l.b16 %v2017
        %v3528 = vunpack.c.h.b16 %v2017
        %v3529 = vunpack.c.l.b16 %v2018
        %v3530 = vunpack.c.h.b16 %v2018
        %v3531 = vunpack.c.l.b16 %v2019
        %v3532 = vunpack.c.h.b16 %v2019
        %v3533 = vunpack.c.l.b16 %v2020
        %v3534 = vunpack.c.h.b16 %v2020
        %v3535 = vunpack.c.l.b16 %v2021
        %v3536 = vunpack.c.h.b16 %v2021
        %v3537 = vunpack.c.l.b16 %v2022
        %v3538 = vunpack.c.h.b16 %v2022
        %v3539 = vunpack.c.l.b16 %v2023
        %v3540 = vunpack.c.h.b16 %v2023
        %v3541 = vunpack.c.l.b16 %v2024
        %v3542 = vunpack.c.h.b16 %v2024
        %v3543 = vunpack.c.l.b16 %v2025
        %v3544 = vunpack.c.h.b16 %v2025
        %v3545 = vunpack.c.l.b16 %v2026
        %v3546 = vunpack.c.h.b16 %v2026
        %v3547 = vunpack.c.l.b16 %v2027
        %v3548 = vunpack.c.h.b16 %v2027
        %v3549 = vunpack.c.l.b16 %v2028
        %v3550 = vunpack.c.h.b16 %v2028
        %v3551 = vunpack.c.l.b16 %v2029
        %v3552 = vunpack.c.h.b16 %v2029
        %v3553 = vunpack.c.l.b16 %v2030
        %v3554 = vunpack.c.h.b16 %v2030
        %v3555 = vunpack.c.l.b16 %v2031
        %v3556 = vunpack.c.h.b16 %v2031
        %v3557 = vunpack.c.l.b16 %v2032
        %v3558 = vunpack.c.h.b16 %v2032
        %v3559 = vunpack.c.l.b16 %v2033
        %v3560 = vunpack.c.h.b16 %v2033
        %v3561 = vunpack.c.l.b16 %v2034
        %v3562 = vunpack.c.h.b16 %v2034
        %v3563 = vunpack.c.l.b16 %v2035
        %v3564 = vunpack.c.h.b16 %v2035
        %v3565 = vunpack.c.l.b16 %v2036
        %v3566 = vunpack.c.h.b16 %v2036
        %v3567 = vunpack.c.l.b16 %v2037
        %v3568 = vunpack.c.h.b16 %v2037
        %v3569 = vunpack.c.l.b16 %v2038
        %v3570 = vunpack.c.h.b16 %v2038
        %v3571 = vunpack.c.l.b16 %v2039
        %v3572 = vunpack.c.h.b16 %v2039
        %v3573 = vunpack.c.l.b16 %v2040
        %v3574 = vunpack.c.h.b16 %v2040
        %v3575 = vunpack.c.l.b16 %v2041
        %v3576 = vunpack.c.h.b16 %v2041
        %v3577 = vunpack.c.l.b16 %v2042
        %v3578 = vunpack.c.h.b16 %v2042
        %v3579 = vunpack.c.l.b16 %v2043
        %v3580 = vunpack.c.h.b16 %v2043
        %v3581 = vunpack.c.l.b16 %v2044
        %v3582 = vunpack.c.h.b16 %v2044
        %v3583 = vunpack.c.l.b16 %v2045
        %v3584 = vunpack.c.h.b16 %v2045
        %v3585 = vunpack.c.l.b16 %v2046
        %v3586 = vunpack.c.h.b16 %v2046
        %v3587 = vunpack.c.l.b16 %v2047
        %v3588 = vunpack.c.h.b16 %v2047
        %v3589 = vunpack.c.l.b16 %v2048
        %v3590 = vunpack.c.h.b16 %v2048
        %v3591 = vunpack.c.l.b16 %v2049
        %v3592 = vunpack.c.h.b16 %v2049
        %v3593 = vunpack.c.l.b16 %v2050
        %v3594 = vunpack.c.h.b16 %v2050
        %v3595 = vunpack.c.l.b16 %v2051
        %v3596 = vunpack.c.h.b16 %v2051
        %v3597 = vunpack.c.l.b16 %v2052
        %v3598 = vunpack.c.h.b16 %v2052
        %v3599 = vunpack.c.l.b16 %v2053
        %v3600 = vunpack.c.h.b16 %v2053
        %v3601 = vunpack.c.l.b16 %v2054
        %v3602 = vunpack.c.h.b16 %v2054
        %v3603 = vunpack.c.l.b16 %v2055
        %v3604 = vunpack.c.h.b16 %v2055
        %v3605 = vunpack.c.l.b16 %v2056
        %v3606 = vunpack.c.h.b16 %v2056
        %v3607 = vunpack.c.l.b16 %v2057
        %v3608 = vunpack.c.h.b16 %v2057
        %v3609 = vunpack.c.l.b16 %v2058
        %v3610 = vunpack.c.h.b16 %v2058
        %v3611 = vunpack.c.l.b16 %v2059
        %v3612 = vunpack.c.h.b16 %v2059
        %v3613 = vunpack.c.l.b16 %v2060
        %v3614 = vunpack.c.h.b16 %v2060
        %v3615 = vpack.c.b16 %v2599, %v2591
        %v3616 = vpack.c.b16 %v2600, %v2592
        %v3617 = vpack.c.b16 %v2601, %v2593
        %v3618 = vpack.c.b16 %v2602, %v2594
        %v3619 = vpack.c.b16 %v2603, %v2595
        %v3620 = vpack.c.b16 %v2604, %v2596
        %v3621 = vpack.c.b16 %v2605, %v2597
        %v3622 = vpack.c.b16 %v2606, %v2598
        %v3623 = vpack.c.b16 %v2615, %v2607
        %v3624 = vpack.c.b16 %v2616, %v2608
        %v3625 = vpack.c.b16 %v2617, %v2609
        %v3626 = vpack.c.b16 %v2618, %v2610
        %v3627 = vpack.c.b16 %v2619, %v2611
        %v3628 = vpack.c.b16 %v2620, %v2612
        %v3629 = vpack.c.b16 %v2621, %v2613
        %v3630 = vpack.c.b16 %v2622, %v2614
        %v3631 = vpack.c.b16 %v2631, %v2623
        %v3632 = vpack.c.b16 %v2632, %v2624
        %v3633 = vpack.c.b16 %v2633, %v2625
        %v3634 = vpack.c.b16 %v2634, %v2626
        %v3635 = vpack.c.b16 %v2635, %v2627
        %v3636 = vpack.c.b16 %v2636, %v2628
        %v3637 = vpack.c.b16 %v2637, %v2629
        %v3638 = vpack.c.b16 %v2638, %v2630
        %v3639 = vpack.c.b16 %v2647, %v2639
        %v3640 = vpack.c.b16 %v2648, %v2640
        %v3641 = vpack.c.b16 %v2649, %v2641
        %v3642 = vpack.c.b16 %v2650, %v2642
        %v3643 = vpack.c.b16 %v2651, %v2643
        %v3644 = vpack.c.b16 %v2652, %v2644
        %v3645 = vpack.c.b16 %v2653, %v2645
        %v3646 = vpack.c.b16 %v2654, %v2646
        %v3647 = vpack.c.b16 %v2663, %v2655
        %v3648 = vpack.c.b16 %v2664, %v2656
        %v3649 = vpack.c.b16 %v2665, %v2657
        %v3650 = vpack.c.b16 %v2666, %v2658
        %v3651 = vpack.c.b16 %v2667, %v2659
        %v3652 = vpack.c.b16 %v2668, %v2660
        %v3653 = vpack.c.b16 %v2669, %v2661
        %v3654 = vpack.c.b16 %v2670, %v2662
        %v3655 = vpack.c.b16 %v2679, %v2671
        %v3656 = vpack.c.b16 %v2680, %v2672
        %v3657 = vpack.c.b16 %v2681, %v2673
        %v3658 = vpack.c.b16 %v2682, %v2674
        %v3659 = vpack.c.b16 %v2683, %v2675
        %v3660 = vpack.c.b16 %v2684, %v2676
        %v3661 = vpack.c.b16 %v2685, %v2677
        %v3662 = vpack.c.b16 %v2686, %v2678
        %v3663 = vpack.c.b16 %v2695, %v2687
        %v3664 = vpack.c.b16 %v2696, %v2688
        %v3665 = vpack.c.b16 %v2697, %v2689
        %v3666 = vpack.c.b16 %v2698, %v2690
        %v3667 = vpack.c.b16 %v2699, %v2691
        %v3668 = vpack.c.b16 %v2700, %v2692
        %v3669 = vpack.c.b16 %v2701, %v2693
        %v3670 = vpack.c.b16 %v2702, %v2694
        %v3671 = vpack.c.b16 %v2711, %v2703
        %v3672 = vpack.c.b16 %v2712, %v2704
        %v3673 = vpack.c.b16 %v2713, %v2705
        %v3674 = vpack.c.b16 %v2714, %v2706
        %v3675 = vpack.c.b16 %v2715, %v2707
        %v3676 = vpack.c.b16 %v2716, %v2708
        %v3677 = vpack.c.b16 %v2717, %v2709
        %v3678 = vpack.c.b16 %v2718, %v2710
        %v3679 = vpack.c.b16 %v2727, %v2719
        %v3680 = vpack.c.b16 %v2728, %v2720
        %v3681 = vpack.c.b16 %v2729, %v2721
        %v3682 = vpack.c.b16 %v2730, %v2722
        %v3683 = vpack.c.b16 %v2731, %v2723
        %v3684 = vpack.c.b16 %v2732, %v2724
        %v3685 = vpack.c.b16 %v2733, %v2725
        %v3686 = vpack.c.b16 %v2734, %v2726
        %v3687 = vpack.c.b16 %v2743, %v2735
        %v3688 = vpack.c.b16 %v2744, %v2736
        %v3689 = vpack.c.b16 %v2745, %v2737
        %v3690 = vpack.c.b16 %v2746, %v2738
        %v3691 = vpack.c.b16 %v2747, %v2739
        %v3692 = vpack.c.b16 %v2748, %v2740
        %v3693 = vpack.c.b16 %v2749, %v2741
        %v3694 = vpack.c.b16 %v2750, %v2742
        %v3695 = vpack.c.b16 %v2759, %v2751
        %v3696 = vpack.c.b16 %v2760, %v2752
        %v3697 = vpack.c.b16 %v2761, %v2753
        %v3698 = vpack.c.b16 %v2762, %v2754
        %v3699 = vpack.c.b16 %v2763, %v2755
        %v3700 = vpack.c.b16 %v2764, %v2756
        %v3701 = vpack.c.b16 %v2765, %v2757
        %v3702 = vpack.c.b16 %v2766, %v2758
        %v3703 = vpack.c.b16 %v2775, %v2767
        %v3704 = vpack.c.b16 %v2776, %v2768
        %v3705 = vpack.c.b16 %v2777, %v2769
        %v3706 = vpack.c.b16 %v2778, %v2770
        %v3707 = vpack.c.b16 %v2779, %v2771
        %v3708 = vpack.c.b16 %v2780, %v2772
        %v3709 = vpack.c.b16 %v2781, %v2773
        %v3710 = vpack.c.b16 %v2782, %v2774
        %v3711 = vpack.c.b16 %v2791, %v2783
        %v3712 = vpack.c.b16 %v2792, %v2784
        %v3713 = vpack.c.b16 %v2793, %v2785
        %v3714 = vpack.c.b16 %v2794, %v2786
        %v3715 = vpack.c.b16 %v2795, %v2787
        %v3716 = vpack.c.b16 %v2796, %v2788
        %v3717 = vpack.c.b16 %v2797, %v2789
        %v3718 = vpack.c.b16 %v2798, %v2790
        %v3719 = vpack.c.b16 %v2807, %v2799
        %v3720 = vpack.c.b16 %v2808, %v2800
        %v3721 = vpack.c.b16 %v2809, %v2801
        %v3722 = vpack.c.b16 %v2810, %v2802
        %v3723 = vpack.c.b16 %v2811, %v2803
        %v3724 = vpack.c.b16 %v2812, %v2804
        %v3725 = vpack.c.b16 %v2813, %v2805
        %v3726 = vpack.c.b16 %v2814, %v2806
        %v3727 = vpack.c.b16 %v2823, %v2815
        %v3728 = vpack.c.b16 %v2824, %v2816
        %v3729 = vpack.c.b16 %v2825, %v2817
        %v3730 = vpack.c.b16 %v2826, %v2818
        %v3731 = vpack.c.b16 %v2827, %v2819
        %v3732 = vpack.c.b16 %v2828, %v2820
        %v3733 = vpack.c.b16 %v2829, %v2821
        %v3734 = vpack.c.b16 %v2830, %v2822
        %v3735 = vpack.c.b16 %v2839, %v2831
        %v3736 = vpack.c.b16 %v2840, %v2832
        %v3737 = vpack.c.b16 %v2841, %v2833
        %v3738 = vpack.c.b16 %v2842, %v2834
        %v3739 = vpack.c.b16 %v2843, %v2835
        %v3740 = vpack.c.b16 %v2844, %v2836
        %v3741 = vpack.c.b16 %v2845, %v2837
        %v3742 = vpack.c.b16 %v2846, %v2838
        %v3743 = vpack.c.b16 %v2855, %v2847
        %v3744 = vpack.c.b16 %v2856, %v2848
        %v3745 = vpack.c.b16 %v2857, %v2849
        %v3746 = vpack.c.b16 %v2858, %v2850
        %v3747 = vpack.c.b16 %v2859, %v2851
        %v3748 = vpack.c.b16 %v2860, %v2852
        %v3749 = vpack.c.b16 %v2861, %v2853
        %v3750 = vpack.c.b16 %v2862, %v2854
        %v3751 = vpack.c.b16 %v2871, %v2863
        %v3752 = vpack.c.b16 %v2872, %v2864
        %v3753 = vpack.c.b16 %v2873, %v2865
        %v3754 = vpack.c.b16 %v2874, %v2866
        %v3755 = vpack.c.b16 %v2875, %v2867
        %v3756 = vpack.c.b16 %v2876, %v2868
        %v3757 = vpack.c.b16 %v2877, %v2869
        %v3758 = vpack.c.b16 %v2878, %v2870
        %v3759 = vpack.c.b16 %v2887, %v2879
        %v3760 = vpack.c.b16 %v2888, %v2880
        %v3761 = vpack.c.b16 %v2889, %v2881
        %v3762 = vpack.c.b16 %v2890, %v2882
        %v3763 = vpack.c.b16 %v2891, %v2883
        %v3764 = vpack.c.b16 %v2892, %v2884
        %v3765 = vpack.c.b16 %v2893, %v2885
        %v3766 = vpack.c.b16 %v2894, %v2886
        %v3767 = vpack.c.b16 %v2903, %v2895
        %v3768 = vpack.c.b16 %v2904, %v2896
        %v3769 = vpack.c.b16 %v2905, %v2897
        %v3770 = vpack.c.b16 %v2906, %v2898
        %v3771 = vpack.c.b16 %v2907, %v2899
        %v3772 = vpack.c.b16 %v2908, %v2900
        %v3773 = vpack.c.b16 %v2909, %v2901
        %v3774 = vpack.c.b16 %v2910, %v2902
        %v3775 = vpack.c.b16 %v2919, %v2911
        %v3776 = vpack.c.b16 %v2920, %v2912
        %v3777 = vpack.c.b16 %v2921, %v2913
        %v3778 = vpack.c.b16 %v2922, %v2914
        %v3779 = vpack.c.b16 %v2923, %v2915
        %v3780 = vpack.c.b16 %v2924, %v2916
        %v3781 = vpack.c.b16 %v2925, %v2917
        %v3782 = vpack.c.b16 %v2926, %v2918
        %v3783 = vpack.c.b16 %v2935, %v2927
        %v3784 = vpack.c.b16 %v2936, %v2928
        %v3785 = vpack.c.b16 %v2937, %v2929
        %v3786 = vpack.c.b16 %v2938, %v2930
        %v3787 = vpack.c.b16 %v2939, %v2931
        %v3788 = vpack.c.b16 %v2940, %v2932
        %v3789 = vpack.c.b16 %v2941, %v2933
        %v3790 = vpack.c.b16 %v2942, %v2934
        %v3791 = vpack.c.b16 %v2951, %v2943
        %v3792 = vpack.c.b16 %v2952, %v2944
        %v3793 = vpack.c.b16 %v2953, %v2945
        %v3794 = vpack.c.b16 %v2954, %v2946
        %v3795 = vpack.c.b16 %v2955, %v2947
        %v3796 = vpack.c.b16 %v2956, %v2948
        %v3797 = vpack.c.b16 %v2957, %v2949
        %v3798 = vpack.c.b16 %v2958, %v2950
        %v3799 = vpack.c.b16 %v2967, %v2959
        %v3800 = vpack.c.b16 %v2968, %v2960
        %v3801 = vpack.c.b16 %v2969, %v2961
        %v3802 = vpack.c.b16 %v2970, %v2962
        %v3803 = vpack.c.b16 %v2971, %v2963
        %v3804 = vpack.c.b16 %v2972, %v2964
        %v3805 = vpack.c.b16 %v2973, %v2965
        %v3806 = vpack.c.b16 %v2974, %v2966
        %v3807 = vpack.c.b16 %v2983, %v2975
        %v3808 = vpack.c.b16 %v2984, %v2976
        %v3809 = vpack.c.b16 %v2985, %v2977
        %v3810 = vpack.c.b16 %v2986, %v2978
        %v3811 = vpack.c.b16 %v2987, %v2979
        %v3812 = vpack.c.b16 %v2988, %v2980
        %v3813 = vpack.c.b16 %v2989, %v2981
        %v3814 = vpack.c.b16 %v2990, %v2982
        %v3815 = vpack.c.b16 %v2999, %v2991
        %v3816 = vpack.c.b16 %v3000, %v2992
        %v3817 = vpack.c.b16 %v3001, %v2993
        %v3818 = vpack.c.b16 %v3002, %v2994
        %v3819 = vpack.c.b16 %v3003, %v2995
        %v3820 = vpack.c.b16 %v3004, %v2996
        %v3821 = vpack.c.b16 %v3005, %v2997
        %v3822 = vpack.c.b16 %v3006, %v2998
        %v3823 = vpack.c.b16 %v3015, %v3007
        %v3824 = vpack.c.b16 %v3016, %v3008
        %v3825 = vpack.c.b16 %v3017, %v3009
        %v3826 = vpack.c.b16 %v3018, %v3010
        %v3827 = vpack.c.b16 %v3019, %v3011
        %v3828 = vpack.c.b16 %v3020, %v3012
        %v3829 = vpack.c.b16 %v3021, %v3013
        %v3830 = vpack.c.b16 %v3022, %v3014
        %v3831 = vpack.c.b16 %v3031, %v3023
        %v3832 = vpack.c.b16 %v3032, %v3024
        %v3833 = vpack.c.b16 %v3033, %v3025
        %v3834 = vpack.c.b16 %v3034, %v3026
        %v3835 = vpack.c.b16 %v3035, %v3027
        %v3836 = vpack.c.b16 %v3036, %v3028
        %v3837 = vpack.c.b16 %v3037, %v3029
        %v3838 = vpack.c.b16 %v3038, %v3030
        %v3839 = vpack.c.b16 %v3047, %v3039
        %v3840 = vpack.c.b16 %v3048, %v3040
        %v3841 = vpack.c.b16 %v3049, %v3041
        %v3842 = vpack.c.b16 %v3050, %v3042
        %v3843 = vpack.c.b16 %v3051, %v3043
        %v3844 = vpack.c.b16 %v3052, %v3044
        %v3845 = vpack.c.b16 %v3053, %v3045
        %v3846 = vpack.c.b16 %v3054, %v3046
        %v3847 = vpack.c.b16 %v3063, %v3055
        %v3848 = vpack.c.b16 %v3064, %v3056
        %v3849 = vpack.c.b16 %v3065, %v3057
        %v3850 = vpack.c.b16 %v3066, %v3058
        %v3851 = vpack.c.b16 %v3067, %v3059
        %v3852 = vpack.c.b16 %v3068, %v3060
        %v3853 = vpack.c.b16 %v3069, %v3061
        %v3854 = vpack.c.b16 %v3070, %v3062
        %v3855 = vpack.c.b16 %v3079, %v3071
        %v3856 = vpack.c.b16 %v3080, %v3072
        %v3857 = vpack.c.b16 %v3081, %v3073
        %v3858 = vpack.c.b16 %v3082, %v3074
        %v3859 = vpack.c.b16 %v3083, %v3075
        %v3860 = vpack.c.b16 %v3084, %v3076
        %v3861 = vpack.c.b16 %v3085, %v3077
        %v3862 = vpack.c.b16 %v3086, %v3078
        %v3863 = vpack.c.b16 %v3095, %v3087
        %v3864 = vpack.c.b16 %v3096, %v3088
        %v3865 = vpack.c.b16 %v3097, %v3089
        %v3866 = vpack.c.b16 %v3098, %v3090
        %v3867 = vpack.c.b16 %v3099, %v3091
        %v3868 = vpack.c.b16 %v3100, %v3092
        %v3869 = vpack.c.b16 %v3101, %v3093
        %v3870 = vpack.c.b16 %v3102, %v3094
        %v3871 = vpack.c.b16 %v3111, %v3103
        %v3872 = vpack.c.b16 %v3112, %v3104
        %v3873 = vpack.c.b16 %v3113, %v3105
        %v3874 = vpack.c.b16 %v3114, %v3106
        %v3875 = vpack.c.b16 %v3115, %v3107
        %v3876 = vpack.c.b16 %v3116, %v3108
        %v3877 = vpack.c.b16 %v3117, %v3109
        %v3878 = vpack.c.b16 %v3118, %v3110
        %v3879 = vpack.c.b16 %v3127, %v3119
        %v3880 = vpack.c.b16 %v3128, %v3120
        %v3881 = vpack.c.b16 %v3129, %v3121
        %v3882 = vpack.c.b16 %v3130, %v3122
        %v3883 = vpack.c.b16 %v3131, %v3123
        %v3884 = vpack.c.b16 %v3132, %v3124
        %v3885 = vpack.c.b16 %v3133, %v3125
        %v3886 = vpack.c.b16 %v3134, %v3126
        %v3887 = vpack.c.b16 %v3143, %v3135
        %v3888 = vpack.c.b16 %v3144, %v3136
        %v3889 = vpack.c.b16 %v3145, %v3137
        %v3890 = vpack.c.b16 %v3146, %v3138
        %v3891 = vpack.c.b16 %v3147, %v3139
        %v3892 = vpack.c.b16 %v3148, %v3140
        %v3893 = vpack.c.b16 %v3149, %v3141
        %v3894 = vpack.c.b16 %v3150, %v3142
        %v3895 = vpack.c.b16 %v3159, %v3151
        %v3896 = vpack.c.b16 %v3160, %v3152
        %v3897 = vpack.c.b16 %v3161, %v3153
        %v3898 = vpack.c.b16 %v3162, %v3154
        %v3899 = vpack.c.b16 %v3163, %v3155
        %v3900 = vpack.c.b16 %v3164, %v3156
        %v3901 = vpack.c.b16 %v3165, %v3157
        %v3902 = vpack.c.b16 %v3166, %v3158
        %v3903 = vpack.c.b16 %v3175, %v3167
        %v3904 = vpack.c.b16 %v3176, %v3168
        %v3905 = vpack.c.b16 %v3177, %v3169
        %v3906 = vpack.c.b16 %v3178, %v3170
        %v3907 = vpack.c.b16 %v3179, %v3171
        %v3908 = vpack.c.b16 %v3180, %v3172
        %v3909 = vpack.c.b16 %v3181, %v3173
        %v3910 = vpack.c.b16 %v3182, %v3174
        %v3911 = vpack.c.b16 %v3191, %v3183
        %v3912 = vpack.c.b16 %v3192, %v3184
        %v3913 = vpack.c.b16 %v3193, %v3185
        %v3914 = vpack.c.b16 %v3194, %v3186
        %v3915 = vpack.c.b16 %v3195, %v3187
        %v3916 = vpack.c.b16 %v3196, %v3188
        %v3917 = vpack.c.b16 %v3197, %v3189
        %v3918 = vpack.c.b16 %v3198, %v3190
        %v3919 = vpack.c.b16 %v3207, %v3199
        %v3920 = vpack.c.b16 %v3208, %v3200
        %v3921 = vpack.c.b16 %v3209, %v3201
        %v3922 = vpack.c.b16 %v3210, %v3202
        %v3923 = vpack.c.b16 %v3211, %v3203
        %v3924 = vpack.c.b16 %v3212, %v3204
        %v3925 = vpack.c.b16 %v3213, %v3205
        %v3926 = vpack.c.b16 %v3214, %v3206
        %v3927 = vpack.c.b16 %v3223, %v3215
        %v3928 = vpack.c.b16 %v3224, %v3216
        %v3929 = vpack.c.b16 %v3225, %v3217
        %v3930 = vpack.c.b16 %v3226, %v3218
        %v3931 = vpack.c.b16 %v3227, %v3219
        %v3932 = vpack.c.b16 %v3228, %v3220
        %v3933 = vpack.c.b16 %v3229, %v3221
        %v3934 = vpack.c.b16 %v3230, %v3222
        %v3935 = vpack.c.b16 %v3239, %v3231
        %v3936 = vpack.c.b16 %v3240, %v3232
        %v3937 = vpack.c.b16 %v3241, %v3233
        %v3938 = vpack.c.b16 %v3242, %v3234
        %v3939 = vpack.c.b16 %v3243, %v3235
        %v3940 = vpack.c.b16 %v3244, %v3236
        %v3941 = vpack.c.b16 %v3245, %v3237
        %v3942 = vpack.c.b16 %v3246, %v3238
        %v3943 = vpack.c.b16 %v3255, %v3247
        %v3944 = vpack.c.b16 %v3256, %v3248
        %v3945 = vpack.c.b16 %v3257, %v3249
        %v3946 = vpack.c.b16 %v3258, %v3250
        %v3947 = vpack.c.b16 %v3259, %v3251
        %v3948 = vpack.c.b16 %v3260, %v3252
        %v3949 = vpack.c.b16 %v3261, %v3253
        %v3950 = vpack.c.b16 %v3262, %v3254
        %v3951 = vpack.c.b16 %v3271, %v3263
        %v3952 = vpack.c.b16 %v3272, %v3264
        %v3953 = vpack.c.b16 %v3273, %v3265
        %v3954 = vpack.c.b16 %v3274, %v3266
        %v3955 = vpack.c.b16 %v3275, %v3267
        %v3956 = vpack.c.b16 %v3276, %v3268
        %v3957 = vpack.c.b16 %v3277, %v3269
        %v3958 = vpack.c.b16 %v3278, %v3270
        %v3959 = vpack.c.b16 %v3287, %v3279
        %v3960 = vpack.c.b16 %v3288, %v3280
        %v3961 = vpack.c.b16 %v3289, %v3281
        %v3962 = vpack.c.b16 %v3290, %v3282
        %v3963 = vpack.c.b16 %v3291, %v3283
        %v3964 = vpack.c.b16 %v3292, %v3284
        %v3965 = vpack.c.b16 %v3293, %v3285
        %v3966 = vpack.c.b16 %v3294, %v3286
        %v3967 = vpack.c.b16 %v3303, %v3295
        %v3968 = vpack.c.b16 %v3304, %v3296
        %v3969 = vpack.c.b16 %v3305, %v3297
        %v3970 = vpack.c.b16 %v3306, %v3298
        %v3971 = vpack.c.b16 %v3307, %v3299
        %v3972 = vpack.c.b16 %v3308, %v3300
        %v3973 = vpack.c.b16 %v3309, %v3301
        %v3974 = vpack.c.b16 %v3310, %v3302
        %v3975 = vpack.c.b16 %v3319, %v3311
        %v3976 = vpack.c.b16 %v3320, %v3312
        %v3977 = vpack.c.b16 %v3321, %v3313
        %v3978 = vpack.c.b16 %v3322, %v3314
        %v3979 = vpack.c.b16 %v3323, %v3315
        %v3980 = vpack.c.b16 %v3324, %v3316
        %v3981 = vpack.c.b16 %v3325, %v3317
        %v3982 = vpack.c.b16 %v3326, %v3318
        %v3983 = vpack.c.b16 %v3335, %v3327
        %v3984 = vpack.c.b16 %v3336, %v3328
        %v3985 = vpack.c.b16 %v3337, %v3329
        %v3986 = vpack.c.b16 %v3338, %v3330
        %v3987 = vpack.c.b16 %v3339, %v3331
        %v3988 = vpack.c.b16 %v3340, %v3332
        %v3989 = vpack.c.b16 %v3341, %v3333
        %v3990 = vpack.c.b16 %v3342, %v3334
        %v3991 = vpack.c.b16 %v3351, %v3343
        %v3992 = vpack.c.b16 %v3352, %v3344
        %v3993 = vpack.c.b16 %v3353, %v3345
        %v3994 = vpack.c.b16 %v3354, %v3346
        %v3995 = vpack.c.b16 %v3355, %v3347
        %v3996 = vpack.c.b16 %v3356, %v3348
        %v3997 = vpack.c.b16 %v3357, %v3349
        %v3998 = vpack.c.b16 %v3358, %v3350
        %v3999 = vpack.c.b16 %v3367, %v3359
        %v4000 = vpack.c.b16 %v3368, %v3360
        %v4001 = vpack.c.b16 %v3369, %v3361
        %v4002 = vpack.c.b16 %v3370, %v3362
        %v4003 = vpack.c.b16 %v3371, %v3363
        %v4004 = vpack.c.b16 %v3372, %v3364
        %v4005 = vpack.c.b16 %v3373, %v3365
        %v4006 = vpack.c.b16 %v3374, %v3366
        %v4007 = vpack.c.b16 %v3383, %v3375
        %v4008 = vpack.c.b16 %v3384, %v3376
        %v4009 = vpack.c.b16 %v3385, %v3377
        %v4010 = vpack.c.b16 %v3386, %v3378
        %v4011 = vpack.c.b16 %v3387, %v3379
        %v4012 = vpack.c.b16 %v3388, %v3380
        %v4013 = vpack.c.b16 %v3389, %v3381
        %v4014 = vpack.c.b16 %v3390, %v3382
        %v4015 = vpack.c.b16 %v3399, %v3391
        %v4016 = vpack.c.b16 %v3400, %v3392
        %v4017 = vpack.c.b16 %v3401, %v3393
        %v4018 = vpack.c.b16 %v3402, %v3394
        %v4019 = vpack.c.b16 %v3403, %v3395
        %v4020 = vpack.c.b16 %v3404, %v3396
        %v4021 = vpack.c.b16 %v3405, %v3397
        %v4022 = vpack.c.b16 %v3406, %v3398
        %v4023 = vpack.c.b16 %v3415, %v3407
        %v4024 = vpack.c.b16 %v3416, %v3408
        %v4025 = vpack.c.b16 %v3417, %v3409
        %v4026 = vpack.c.b16 %v3418, %v3410
        %v4027 = vpack.c.b16 %v3419, %v3411
        %v4028 = vpack.c.b16 %v3420, %v3412
        %v4029 = vpack.c.b16 %v3421, %v3413
        %v4030 = vpack.c.b16 %v3422, %v3414
        %v4031 = vpack.c.b16 %v3431, %v3423
        %v4032 = vpack.c.b16 %v3432, %v3424
        %v4033 = vpack.c.b16 %v3433, %v3425
        %v4034 = vpack.c.b16 %v3434, %v3426
        %v4035 = vpack.c.b16 %v3435, %v3427
        %v4036 = vpack.c.b16 %v3436, %v3428
        %v4037 = vpack.c.b16 %v3437, %v3429
        %v4038 = vpack.c.b16 %v3438, %v3430
        %v4039 = vpack.c.b16 %v3447, %v3439
        %v4040 = vpack.c.b16 %v3448, %v3440
        %v4041 = vpack.c.b16 %v3449, %v3441
        %v4042 = vpack.c.b16 %v3450, %v3442
        %v4043 = vpack.c.b16 %v3451, %v3443
        %v4044 = vpack.c.b16 %v3452, %v3444
        %v4045 = vpack.c.b16 %v3453, %v3445
        %v4046 = vpack.c.b16 %v3454, %v3446
        %v4047 = vpack.c.b16 %v3463, %v3455
        %v4048 = vpack.c.b16 %v3464, %v3456
        %v4049 = vpack.c.b16 %v3465, %v3457
        %v4050 = vpack.c.b16 %v3466, %v3458
        %v4051 = vpack.c.b16 %v3467, %v3459
        %v4052 = vpack.c.b16 %v3468, %v3460
        %v4053 = vpack.c.b16 %v3469, %v3461
        %v4054 = vpack.c.b16 %v3470, %v3462
        %v4055 = vpack.c.b16 %v3479, %v3471
        %v4056 = vpack.c.b16 %v3480, %v3472
        %v4057 = vpack.c.b16 %v3481, %v3473
        %v4058 = vpack.c.b16 %v3482, %v3474
        %v4059 = vpack.c.b16 %v3483, %v3475
        %v4060 = vpack.c.b16 %v3484, %v3476
        %v4061 = vpack.c.b16 %v3485, %v3477
        %v4062 = vpack.c.b16 %v3486, %v3478
        %v4063 = vpack.c.b16 %v3495, %v3487
        %v4064 = vpack.c.b16 %v3496, %v3488
        %v4065 = vpack.c.b16 %v3497, %v3489
        %v4066 = vpack.c.b16 %v3498, %v3490
        %v4067 = vpack.c.b16 %v3499, %v3491
        %v4068 = vpack.c.b16 %v3500, %v3492
        %v4069 = vpack.c.b16 %v3501, %v3493
        %v4070 = vpack.c.b16 %v3502, %v3494
        %v4071 = vpack.c.b16 %v3511, %v3503
        %v4072 = vpack.c.b16 %v3512, %v3504
        %v4073 = vpack.c.b16 %v3513, %v3505
        %v4074 = vpack.c.b16 %v3514, %v3506
        %v4075 = vpack.c.b16 %v3515, %v3507
        %v4076 = vpack.c.b16 %v3516, %v3508
        %v4077 = vpack.c.b16 %v3517, %v3509
        %v4078 = vpack.c.b16 %v3518, %v3510
        %v4079 = vpack.c.b16 %v3527, %v3519
        %v4080 = vpack.c.b16 %v3528, %v3520
        %v4081 = vpack.c.b16 %v3529, %v3521
        %v4082 = vpack.c.b16 %v3530, %v3522
        %v4083 = vpack.c.b16 %v3531, %v3523
        %v4084 = vpack.c.b16 %v3532, %v3524
        %v4085 = vpack.c.b16 %v3533, %v3525
        %v4086 = vpack.c.b16 %v3534, %v3526
        %v4087 = vpack.c.b16 %v3543, %v3535
        %v4088 = vpack.c.b16 %v3544, %v3536
        %v4089 = vpack.c.b16 %v3545, %v3537
        %v4090 = vpack.c.b16 %v3546, %v3538
        %v4091 = vpack.c.b16 %v3547, %v3539
        %v4092 = vpack.c.b16 %v3548, %v3540
        %v4093 = vpack.c.b16 %v3549, %v3541
        %v4094 = vpack.c.b16 %v3550, %v3542
        %v4095 = vpack.c.b16 %v3559, %v3551
        %v4096 = vpack.c.b16 %v3560, %v3552
        %v4097 = vpack.c.b16 %v3561, %v3553
        %v4098 = vpack.c.b16 %v3562, %v3554
        %v4099 = vpack.c.b16 %v3563, %v3555
        %v4100 = vpack.c.b16 %v3564, %v3556
        %v4101 = vpack.c.b16 %v3565, %v3557
        %v4102 = vpack.c.b16 %v3566, %v3558
        %v4103 = vpack.c.b16 %v3575, %v3567
        %v4104 = vpack.c.b16 %v3576, %v3568
        %v4105 = vpack.c.b16 %v3577, %v3569
        %v4106 = vpack.c.b16 %v3578, %v3570
        %v4107 = vpack.c.b16 %v3579, %v3571
        %v4108 = vpack.c.b16 %v3580, %v3572
        %v4109 = vpack.c.b16 %v3581, %v3573
        %v4110 = vpack.c.b16 %v3582, %v3574
        %v4111 = vpack.c.b16 %v3591, %v3583
        %v4112 = vpack.c.b16 %v3592, %v3584
        %v4113 = vpack.c.b16 %v3593, %v3585
        %v4114 = vpack.c.b16 %v3594, %v3586
        %v4115 = vpack.c.b16 %v3595, %v3587
        %v4116 = vpack.c.b16 %v3596, %v3588
        %v4117 = vpack.c.b16 %v3597, %v3589
        %v4118 = vpack.c.b16 %v3598, %v3590
        %v4119 = vpack.c.b16 %v3607, %v3599
        %v4120 = vpack.c.b16 %v3608, %v3600
        %v4121 = vpack.c.b16 %v3609, %v3601
        %v4122 = vpack.c.b16 %v3610, %v3602
        %v4123 = vpack.c.b16 %v3611, %v3603
        %v4124 = vpack.c.b16 %v3612, %v3604
        %v4125 = vpack.c.b16 %v3613, %v3605
        %v4126 = vpack.c.b16 %v3614, %v3606
        %4639 = vmatpush.bf16.msra.mxu0 %v3671
        %4640 = vmatpush.bf16.msra.mxu0 %v3663
        %4641 = vmatpush.bf16.msra.mxu0 %v3655
        %4642 = vmatpush.bf16.msra.mxu0 %v3647
        %4643 = vmatpush.bf16.msra.mxu0 %v3639
        %4644 = vmatpush.bf16.msra.mxu0 %v3631
        %4645 = vmatpush.bf16.msra.mxu0 %v3623
        %4646 = vmatpush.bf16.msra.mxu0 %v3615
        %4647 = vmatmul.bf16.gmra.mxu0 %v1541
        %v4648 = vpop.f32.mrf.mxu0
        %v4649 = vadd.f32 %v2063, %v4648
        %v4650 = vpop.f32.mrf.mxu0
        %v4651 = vadd.f32 %v2063, %v4650
        %4652 = vdwg.mxu0
        %4653 = vmatpush.bf16.msra.mxu0 %v3735
        %4654 = vmatpush.bf16.msra.mxu0 %v3727
        %4655 = vmatpush.bf16.msra.mxu0 %v3719
        %4656 = vmatpush.bf16.msra.mxu0 %v3711
        %4657 = vmatpush.bf16.msra.mxu0 %v3703
        %4658 = vmatpush.bf16.msra.mxu0 %v3695
        %4659 = vmatpush.bf16.msra.mxu0 %v3687
        %4660 = vmatpush.bf16.msra.mxu0 %v3679
        %4661 = vmatmul.bf16.gmra.mxu0 %v1542
        %v4662 = vpop.f32.mrf.mxu0
        %v4663 = vadd.f32 %v4649, %v4662
        %v4664 = vpop.f32.mrf.mxu0
        %v4665 = vadd.f32 %v4651, %v4664
        %4666 = vdwg.mxu0
        %4667 = vmatpush.bf16.msra.mxu0 %v3799
        %4668 = vmatpush.bf16.msra.mxu0 %v3791
        %4669 = vmatpush.bf16.msra.mxu0 %v3783
        %4670 = vmatpush.bf16.msra.mxu0 %v3775
        %4671 = vmatpush.bf16.msra.mxu0 %v3767
        %4672 = vmatpush.bf16.msra.mxu0 %v3759
        %4673 = vmatpush.bf16.msra.mxu0 %v3751
        %4674 = vmatpush.bf16.msra.mxu0 %v3743
        %4675 = vmatmul.bf16.gmra.mxu0 %v1543
        %v4676 = vpop.f32.mrf.mxu0
        %v4677 = vadd.f32 %v4663, %v4676
        %v4678 = vpop.f32.mrf.mxu0
        %v4679 = vadd.f32 %v4665, %v4678
        %4680 = vdwg.mxu0
        %4681 = vmatpush.bf16.msra.mxu0 %v3863
        %4682 = vmatpush.bf16.msra.mxu0 %v3855
        %4683 = vmatpush.bf16.msra.mxu0 %v3847
        %4684 = vmatpush.bf16.msra.mxu0 %v3839
        %4685 = vmatpush.bf16.msra.mxu0 %v3831
        %4686 = vmatpush.bf16.msra.mxu0 %v3823
        %4687 = vmatpush.bf16.msra.mxu0 %v3815
        %4688 = vmatpush.bf16.msra.mxu0 %v3807
        %4689 = vmatmul.bf16.gmra.mxu0 %v1544
        %v4690 = vpop.f32.mrf.mxu0
        %v4691 = vadd.f32 %v4677, %v4690
        %v4692 = vpop.f32.mrf.mxu0
        %v4693 = vadd.f32 %v4679, %v4692
        %4694 = vdwg.mxu0
        %4695 = vmatpush.bf16.msra.mxu0 %v3927
        %4696 = vmatpush.bf16.msra.mxu0 %v3919
        %4697 = vmatpush.bf16.msra.mxu0 %v3911
        %4698 = vmatpush.bf16.msra.mxu0 %v3903
        %4699 = vmatpush.bf16.msra.mxu0 %v3895
        %4700 = vmatpush.bf16.msra.mxu0 %v3887
        %4701 = vmatpush.bf16.msra.mxu0 %v3879
        %4702 = vmatpush.bf16.msra.mxu0 %v3871
        %4703 = vmatmul.bf16.gmra.mxu0 %v1545
        %v4704 = vpop.f32.mrf.mxu0
        %v4705 = vadd.f32 %v4691, %v4704
        %v4706 = vpop.f32.mrf.mxu0
        %v4707 = vadd.f32 %v4693, %v4706
        %4708 = vdwg.mxu0
        %4709 = vmatpush.bf16.msra.mxu0 %v3991
        %4710 = vmatpush.bf16.msra.mxu0 %v3983
        %4711 = vmatpush.bf16.msra.mxu0 %v3975
        %4712 = vmatpush.bf16.msra.mxu0 %v3967
        %4713 = vmatpush.bf16.msra.mxu0 %v3959
        %4714 = vmatpush.bf16.msra.mxu0 %v3951
        %4715 = vmatpush.bf16.msra.mxu0 %v3943
        %4716 = vmatpush.bf16.msra.mxu0 %v3935
        %4717 = vmatmul.bf16.gmra.mxu0 %v1546
        %v4718 = vpop.f32.mrf.mxu0
        %v4719 = vadd.f32 %v4705, %v4718
        %v4720 = vpop.f32.mrf.mxu0
        %v4721 = vadd.f32 %v4707, %v4720
        %4722 = vdwg.mxu0
        %4723 = vmatpush.bf16.msra.mxu0 %v4055
        %4724 = vmatpush.bf16.msra.mxu0 %v4047
        %4725 = vmatpush.bf16.msra.mxu0 %v4039
        %4726 = vmatpush.bf16.msra.mxu0 %v4031
        %4727 = vmatpush.bf16.msra.mxu0 %v4023
        %4728 = vmatpush.bf16.msra.mxu0 %v4015
        %4729 = vmatpush.bf16.msra.mxu0 %v4007
        %4730 = vmatpush.bf16.msra.mxu0 %v3999
        %4731 = vmatmul.bf16.gmra.mxu0 %v1547
        %v4732 = vpop.f32.mrf.mxu0
        %v4733 = vadd.f32 %v4719, %v4732
        %v4734 = vpop.f32.mrf.mxu0
        %v4735 = vadd.f32 %v4721, %v4734
        %4736 = vdwg.mxu0
        %4737 = vmatpush.bf16.msra.mxu0 %v4119
        %4738 = vmatpush.bf16.msra.mxu0 %v4111
        %4739 = vmatpush.bf16.msra.mxu0 %v4103
        %4740 = vmatpush.bf16.msra.mxu0 %v4095
        %4741 = vmatpush.bf16.msra.mxu0 %v4087
        %4742 = vmatpush.bf16.msra.mxu0 %v4079
        %4743 = vmatpush.bf16.msra.mxu0 %v4071
        %4744 = vmatpush.bf16.msra.mxu0 %v4063
        %4745 = vmatmul.bf16.gmra.mxu0 %v1548
        %v4746 = vpop.f32.mrf.mxu0
        %v4747 = vadd.f32 %v4733, %v4746
        %v4748 = vpop.f32.mrf.mxu0
        %v4749 = vadd.f32 %v4735, %v4748
        %4750 = vdwg.mxu0
        %4751 = vmatpush.bf16.msra.mxu0 %v3672
        %4752 = vmatpush.bf16.msra.mxu0 %v3664
        %4753 = vmatpush.bf16.msra.mxu0 %v3656
        %4754 = vmatpush.bf16.msra.mxu0 %v3648
        %4755 = vmatpush.bf16.msra.mxu0 %v3640
        %4756 = vmatpush.bf16.msra.mxu0 %v3632
        %4757 = vmatpush.bf16.msra.mxu0 %v3624
        %4758 = vmatpush.bf16.msra.mxu0 %v3616
        %4759 = vmatmul.bf16.gmra.mxu0 %v1541
        %v4760 = vpop.f32.mrf.mxu0
        %v4761 = vadd.f32 %v2064, %v4760
        %v4762 = vpop.f32.mrf.mxu0
        %v4763 = vadd.f32 %v2064, %v4762
        %4764 = vdwg.mxu0
        %4765 = vmatpush.bf16.msra.mxu0 %v3736
        %4766 = vmatpush.bf16.msra.mxu0 %v3728
        %4767 = vmatpush.bf16.msra.mxu0 %v3720
        %4768 = vmatpush.bf16.msra.mxu0 %v3712
        %4769 = vmatpush.bf16.msra.mxu0 %v3704
        %4770 = vmatpush.bf16.msra.mxu0 %v3696
        %4771 = vmatpush.bf16.msra.mxu0 %v3688
        %4772 = vmatpush.bf16.msra.mxu0 %v3680
        %4773 = vmatmul.bf16.gmra.mxu0 %v1542
        %v4774 = vpop.f32.mrf.mxu0
        %v4775 = vadd.f32 %v4761, %v4774
        %v4776 = vpop.f32.mrf.mxu0
        %v4777 = vadd.f32 %v4763, %v4776
        %4778 = vdwg.mxu0
        %4779 = vmatpush.bf16.msra.mxu0 %v3800
        %4780 = vmatpush.bf16.msra.mxu0 %v3792
        %4781 = vmatpush.bf16.msra.mxu0 %v3784
        %4782 = vmatpush.bf16.msra.mxu0 %v3776
        %4783 = vmatpush.bf16.msra.mxu0 %v3768
        %4784 = vmatpush.bf16.msra.mxu0 %v3760
        %4785 = vmatpush.bf16.msra.mxu0 %v3752
        %4786 = vmatpush.bf16.msra.mxu0 %v3744
        %4787 = vmatmul.bf16.gmra.mxu0 %v1543
        %v4788 = vpop.f32.mrf.mxu0
        %v4789 = vadd.f32 %v4775, %v4788
        %v4790 = vpop.f32.mrf.mxu0
        %v4791 = vadd.f32 %v4777, %v4790
        %4792 = vdwg.mxu0
        %4793 = vmatpush.bf16.msra.mxu0 %v3864
        %4794 = vmatpush.bf16.msra.mxu0 %v3856
        %4795 = vmatpush.bf16.msra.mxu0 %v3848
        %4796 = vmatpush.bf16.msra.mxu0 %v3840
        %4797 = vmatpush.bf16.msra.mxu0 %v3832
        %4798 = vmatpush.bf16.msra.mxu0 %v3824
        %4799 = vmatpush.bf16.msra.mxu0 %v3816
        %4800 = vmatpush.bf16.msra.mxu0 %v3808
        %4801 = vmatmul.bf16.gmra.mxu0 %v1544
        %v4802 = vpop.f32.mrf.mxu0
        %v4803 = vadd.f32 %v4789, %v4802
        %v4804 = vpop.f32.mrf.mxu0
        %v4805 = vadd.f32 %v4791, %v4804
        %4806 = vdwg.mxu0
        %4807 = vmatpush.bf16.msra.mxu0 %v3928
        %4808 = vmatpush.bf16.msra.mxu0 %v3920
        %4809 = vmatpush.bf16.msra.mxu0 %v3912
        %4810 = vmatpush.bf16.msra.mxu0 %v3904
        %4811 = vmatpush.bf16.msra.mxu0 %v3896
        %4812 = vmatpush.bf16.msra.mxu0 %v3888
        %4813 = vmatpush.bf16.msra.mxu0 %v3880
        %4814 = vmatpush.bf16.msra.mxu0 %v3872
        %4815 = vmatmul.bf16.gmra.mxu0 %v1545
        %v4816 = vpop.f32.mrf.mxu0
        %v4817 = vadd.f32 %v4803, %v4816
        %v4818 = vpop.f32.mrf.mxu0
        %v4819 = vadd.f32 %v4805, %v4818
        %4820 = vdwg.mxu0
        %4821 = vmatpush.bf16.msra.mxu0 %v3992
        %4822 = vmatpush.bf16.msra.mxu0 %v3984
        %4823 = vmatpush.bf16.msra.mxu0 %v3976
        %4824 = vmatpush.bf16.msra.mxu0 %v3968
        %4825 = vmatpush.bf16.msra.mxu0 %v3960
        %4826 = vmatpush.bf16.msra.mxu0 %v3952
        %4827 = vmatpush.bf16.msra.mxu0 %v3944
        %4828 = vmatpush.bf16.msra.mxu0 %v3936
        %4829 = vmatmul.bf16.gmra.mxu0 %v1546
        %v4830 = vpop.f32.mrf.mxu0
        %v4831 = vadd.f32 %v4817, %v4830
        %v4832 = vpop.f32.mrf.mxu0
        %v4833 = vadd.f32 %v4819, %v4832
        %4834 = vdwg.mxu0
        %4835 = vmatpush.bf16.msra.mxu0 %v4056
        %4836 = vmatpush.bf16.msra.mxu0 %v4048
        %4837 = vmatpush.bf16.msra.mxu0 %v4040
        %4838 = vmatpush.bf16.msra.mxu0 %v4032
        %4839 = vmatpush.bf16.msra.mxu0 %v4024
        %4840 = vmatpush.bf16.msra.mxu0 %v4016
        %4841 = vmatpush.bf16.msra.mxu0 %v4008
        %4842 = vmatpush.bf16.msra.mxu0 %v4000
        %4843 = vmatmul.bf16.gmra.mxu0 %v1547
        %v4844 = vpop.f32.mrf.mxu0
        %v4845 = vadd.f32 %v4831, %v4844
        %v4846 = vpop.f32.mrf.mxu0
        %v4847 = vadd.f32 %v4833, %v4846
        %4848 = vdwg.mxu0
        %4849 = vmatpush.bf16.msra.mxu0 %v4120
        %4850 = vmatpush.bf16.msra.mxu0 %v4112
        %4851 = vmatpush.bf16.msra.mxu0 %v4104
        %4852 = vmatpush.bf16.msra.mxu0 %v4096
        %4853 = vmatpush.bf16.msra.mxu0 %v4088
        %4854 = vmatpush.bf16.msra.mxu0 %v4080
        %4855 = vmatpush.bf16.msra.mxu0 %v4072
        %4856 = vmatpush.bf16.msra.mxu0 %v4064
        %4857 = vmatmul.bf16.gmra.mxu0 %v1548
        %v4858 = vpop.f32.mrf.mxu0
        %v4859 = vadd.f32 %v4845, %v4858
        %v4860 = vpop.f32.mrf.mxu0
        %v4861 = vadd.f32 %v4847, %v4860
        %4862 = vdwg.mxu0
        %4863 = vmatpush.bf16.msra.mxu0 %v3673
        %4864 = vmatpush.bf16.msra.mxu0 %v3665
        %4865 = vmatpush.bf16.msra.mxu0 %v3657
        %4866 = vmatpush.bf16.msra.mxu0 %v3649
        %4867 = vmatpush.bf16.msra.mxu0 %v3641
        %4868 = vmatpush.bf16.msra.mxu0 %v3633
        %4869 = vmatpush.bf16.msra.mxu0 %v3625
        %4870 = vmatpush.bf16.msra.mxu0 %v3617
        %4871 = vmatmul.bf16.gmra.mxu0 %v1541
        %v4872 = vpop.f32.mrf.mxu0
        %v4873 = vadd.f32 %v2065, %v4872
        %v4874 = vpop.f32.mrf.mxu0
        %v4875 = vadd.f32 %v2065, %v4874
        %4876 = vdwg.mxu0
        %4877 = vmatpush.bf16.msra.mxu0 %v3737
        %4878 = vmatpush.bf16.msra.mxu0 %v3729
        %4879 = vmatpush.bf16.msra.mxu0 %v3721
        %4880 = vmatpush.bf16.msra.mxu0 %v3713
        %4881 = vmatpush.bf16.msra.mxu0 %v3705
        %4882 = vmatpush.bf16.msra.mxu0 %v3697
        %4883 = vmatpush.bf16.msra.mxu0 %v3689
        %4884 = vmatpush.bf16.msra.mxu0 %v3681
        %4885 = vmatmul.bf16.gmra.mxu0 %v1542
        %v4886 = vpop.f32.mrf.mxu0
        %v4887 = vadd.f32 %v4873, %v4886
        %v4888 = vpop.f32.mrf.mxu0
        %v4889 = vadd.f32 %v4875, %v4888
        %4890 = vdwg.mxu0
        %4891 = vmatpush.bf16.msra.mxu0 %v3801
        %4892 = vmatpush.bf16.msra.mxu0 %v3793
        %4893 = vmatpush.bf16.msra.mxu0 %v3785
        %4894 = vmatpush.bf16.msra.mxu0 %v3777
        %4895 = vmatpush.bf16.msra.mxu0 %v3769
        %4896 = vmatpush.bf16.msra.mxu0 %v3761
        %4897 = vmatpush.bf16.msra.mxu0 %v3753
        %4898 = vmatpush.bf16.msra.mxu0 %v3745
        %4899 = vmatmul.bf16.gmra.mxu0 %v1543
        %v4900 = vpop.f32.mrf.mxu0
        %v4901 = vadd.f32 %v4887, %v4900
        %v4902 = vpop.f32.mrf.mxu0
        %v4903 = vadd.f32 %v4889, %v4902
        %4904 = vdwg.mxu0
        %4905 = vmatpush.bf16.msra.mxu0 %v3865
        %4906 = vmatpush.bf16.msra.mxu0 %v3857
        %4907 = vmatpush.bf16.msra.mxu0 %v3849
        %4908 = vmatpush.bf16.msra.mxu0 %v3841
        %4909 = vmatpush.bf16.msra.mxu0 %v3833
        %4910 = vmatpush.bf16.msra.mxu0 %v3825
        %4911 = vmatpush.bf16.msra.mxu0 %v3817
        %4912 = vmatpush.bf16.msra.mxu0 %v3809
        %4913 = vmatmul.bf16.gmra.mxu0 %v1544
        %v4914 = vpop.f32.mrf.mxu0
        %v4915 = vadd.f32 %v4901, %v4914
        %v4916 = vpop.f32.mrf.mxu0
        %v4917 = vadd.f32 %v4903, %v4916
        %4918 = vdwg.mxu0
        %4919 = vmatpush.bf16.msra.mxu0 %v3929
        %4920 = vmatpush.bf16.msra.mxu0 %v3921
        %4921 = vmatpush.bf16.msra.mxu0 %v3913
        %4922 = vmatpush.bf16.msra.mxu0 %v3905
        %4923 = vmatpush.bf16.msra.mxu0 %v3897
        %4924 = vmatpush.bf16.msra.mxu0 %v3889
        %4925 = vmatpush.bf16.msra.mxu0 %v3881
        %4926 = vmatpush.bf16.msra.mxu0 %v3873
        %4927 = vmatmul.bf16.gmra.mxu0 %v1545
        %v4928 = vpop.f32.mrf.mxu0
        %v4929 = vadd.f32 %v4915, %v4928
        %v4930 = vpop.f32.mrf.mxu0
        %v4931 = vadd.f32 %v4917, %v4930
        %4932 = vdwg.mxu0
        %4933 = vmatpush.bf16.msra.mxu0 %v3993
        %4934 = vmatpush.bf16.msra.mxu0 %v3985
        %4935 = vmatpush.bf16.msra.mxu0 %v3977
        %4936 = vmatpush.bf16.msra.mxu0 %v3969
        %4937 = vmatpush.bf16.msra.mxu0 %v3961
        %4938 = vmatpush.bf16.msra.mxu0 %v3953
        %4939 = vmatpush.bf16.msra.mxu0 %v3945
        %4940 = vmatpush.bf16.msra.mxu0 %v3937
        %4941 = vmatmul.bf16.gmra.mxu0 %v1546
        %v4942 = vpop.f32.mrf.mxu0
        %v4943 = vadd.f32 %v4929, %v4942
        %v4944 = vpop.f32.mrf.mxu0
        %v4945 = vadd.f32 %v4931, %v4944
        %4946 = vdwg.mxu0
        %4947 = vmatpush.bf16.msra.mxu0 %v4057
        %4948 = vmatpush.bf16.msra.mxu0 %v4049
        %4949 = vmatpush.bf16.msra.mxu0 %v4041
        %4950 = vmatpush.bf16.msra.mxu0 %v4033
        %4951 = vmatpush.bf16.msra.mxu0 %v4025
        %4952 = vmatpush.bf16.msra.mxu0 %v4017
        %4953 = vmatpush.bf16.msra.mxu0 %v4009
        %4954 = vmatpush.bf16.msra.mxu0 %v4001
        %4955 = vmatmul.bf16.gmra.mxu0 %v1547
        %v4956 = vpop.f32.mrf.mxu0
        %v4957 = vadd.f32 %v4943, %v4956
        %v4958 = vpop.f32.mrf.mxu0
        %v4959 = vadd.f32 %v4945, %v4958
        %4960 = vdwg.mxu0
        %4961 = vmatpush.bf16.msra.mxu0 %v4121
        %4962 = vmatpush.bf16.msra.mxu0 %v4113
        %4963 = vmatpush.bf16.msra.mxu0 %v4105
        %4964 = vmatpush.bf16.msra.mxu0 %v4097
        %4965 = vmatpush.bf16.msra.mxu0 %v4089
        %4966 = vmatpush.bf16.msra.mxu0 %v4081
        %4967 = vmatpush.bf16.msra.mxu0 %v4073
        %4968 = vmatpush.bf16.msra.mxu0 %v4065
        %4969 = vmatmul.bf16.gmra.mxu0 %v1548
        %v4970 = vpop.f32.mrf.mxu0
        %v4971 = vadd.f32 %v4957, %v4970
        %v4972 = vpop.f32.mrf.mxu0
        %v4973 = vadd.f32 %v4959, %v4972
        %4974 = vdwg.mxu0
        %4975 = vmatpush.bf16.msra.mxu0 %v3674
        %4976 = vmatpush.bf16.msra.mxu0 %v3666
        %4977 = vmatpush.bf16.msra.mxu0 %v3658
        %4978 = vmatpush.bf16.msra.mxu0 %v3650
        %4979 = vmatpush.bf16.msra.mxu0 %v3642
        %4980 = vmatpush.bf16.msra.mxu0 %v3634
        %4981 = vmatpush.bf16.msra.mxu0 %v3626
        %4982 = vmatpush.bf16.msra.mxu0 %v3618
        %4983 = vmatmul.bf16.gmra.mxu0 %v1541
        %v4984 = vpop.f32.mrf.mxu0
        %v4985 = vadd.f32 %v2066, %v4984
        %v4986 = vpop.f32.mrf.mxu0
        %v4987 = vadd.f32 %v2066, %v4986
        %4988 = vdwg.mxu0
        %4989 = vmatpush.bf16.msra.mxu0 %v3738
        %4990 = vmatpush.bf16.msra.mxu0 %v3730
        %4991 = vmatpush.bf16.msra.mxu0 %v3722
        %4992 = vmatpush.bf16.msra.mxu0 %v3714
        %4993 = vmatpush.bf16.msra.mxu0 %v3706
        %4994 = vmatpush.bf16.msra.mxu0 %v3698
        %4995 = vmatpush.bf16.msra.mxu0 %v3690
        %4996 = vmatpush.bf16.msra.mxu0 %v3682
        %4997 = vmatmul.bf16.gmra.mxu0 %v1542
        %v4998 = vpop.f32.mrf.mxu0
        %v4999 = vadd.f32 %v4985, %v4998
        %v5000 = vpop.f32.mrf.mxu0
        %v5001 = vadd.f32 %v4987, %v5000
        %5002 = vdwg.mxu0
        %5003 = vmatpush.bf16.msra.mxu0 %v3802
        %5004 = vmatpush.bf16.msra.mxu0 %v3794
        %5005 = vmatpush.bf16.msra.mxu0 %v3786
        %5006 = vmatpush.bf16.msra.mxu0 %v3778
        %5007 = vmatpush.bf16.msra.mxu0 %v3770
        %5008 = vmatpush.bf16.msra.mxu0 %v3762
        %5009 = vmatpush.bf16.msra.mxu0 %v3754
        %5010 = vmatpush.bf16.msra.mxu0 %v3746
        %5011 = vmatmul.bf16.gmra.mxu0 %v1543
        %v5012 = vpop.f32.mrf.mxu0
        %v5013 = vadd.f32 %v4999, %v5012
        %v5014 = vpop.f32.mrf.mxu0
        %v5015 = vadd.f32 %v5001, %v5014
        %5016 = vdwg.mxu0
        %5017 = vmatpush.bf16.msra.mxu0 %v3866
        %5018 = vmatpush.bf16.msra.mxu0 %v3858
        %5019 = vmatpush.bf16.msra.mxu0 %v3850
        %5020 = vmatpush.bf16.msra.mxu0 %v3842
        %5021 = vmatpush.bf16.msra.mxu0 %v3834
        %5022 = vmatpush.bf16.msra.mxu0 %v3826
        %5023 = vmatpush.bf16.msra.mxu0 %v3818
        %5024 = vmatpush.bf16.msra.mxu0 %v3810
        %5025 = vmatmul.bf16.gmra.mxu0 %v1544
        %v5026 = vpop.f32.mrf.mxu0
        %v5027 = vadd.f32 %v5013, %v5026
        %v5028 = vpop.f32.mrf.mxu0
        %v5029 = vadd.f32 %v5015, %v5028
        %5030 = vdwg.mxu0
        %5031 = vmatpush.bf16.msra.mxu0 %v3930
        %5032 = vmatpush.bf16.msra.mxu0 %v3922
        %5033 = vmatpush.bf16.msra.mxu0 %v3914
        %5034 = vmatpush.bf16.msra.mxu0 %v3906
        %5035 = vmatpush.bf16.msra.mxu0 %v3898
        %5036 = vmatpush.bf16.msra.mxu0 %v3890
        %5037 = vmatpush.bf16.msra.mxu0 %v3882
        %5038 = vmatpush.bf16.msra.mxu0 %v3874
        %5039 = vmatmul.bf16.gmra.mxu0 %v1545
        %v5040 = vpop.f32.mrf.mxu0
        %v5041 = vadd.f32 %v5027, %v5040
        %v5042 = vpop.f32.mrf.mxu0
        %v5043 = vadd.f32 %v5029, %v5042
        %5044 = vdwg.mxu0
        %5045 = vmatpush.bf16.msra.mxu0 %v3994
        %5046 = vmatpush.bf16.msra.mxu0 %v3986
        %5047 = vmatpush.bf16.msra.mxu0 %v3978
        %5048 = vmatpush.bf16.msra.mxu0 %v3970
        %5049 = vmatpush.bf16.msra.mxu0 %v3962
        %5050 = vmatpush.bf16.msra.mxu0 %v3954
        %5051 = vmatpush.bf16.msra.mxu0 %v3946
        %5052 = vmatpush.bf16.msra.mxu0 %v3938
        %5053 = vmatmul.bf16.gmra.mxu0 %v1546
        %v5054 = vpop.f32.mrf.mxu0
        %v5055 = vadd.f32 %v5041, %v5054
        %v5056 = vpop.f32.mrf.mxu0
        %v5057 = vadd.f32 %v5043, %v5056
        %5058 = vdwg.mxu0
        %5059 = vmatpush.bf16.msra.mxu0 %v4058
        %5060 = vmatpush.bf16.msra.mxu0 %v4050
        %5061 = vmatpush.bf16.msra.mxu0 %v4042
        %5062 = vmatpush.bf16.msra.mxu0 %v4034
        %5063 = vmatpush.bf16.msra.mxu0 %v4026
        %5064 = vmatpush.bf16.msra.mxu0 %v4018
        %5065 = vmatpush.bf16.msra.mxu0 %v4010
        %5066 = vmatpush.bf16.msra.mxu0 %v4002
        %5067 = vmatmul.bf16.gmra.mxu0 %v1547
        %v5068 = vpop.f32.mrf.mxu0
        %v5069 = vadd.f32 %v5055, %v5068
        %v5070 = vpop.f32.mrf.mxu0
        %v5071 = vadd.f32 %v5057, %v5070
        %5072 = vdwg.mxu0
        %5073 = vmatpush.bf16.msra.mxu0 %v4122
        %5074 = vmatpush.bf16.msra.mxu0 %v4114
        %5075 = vmatpush.bf16.msra.mxu0 %v4106
        %5076 = vmatpush.bf16.msra.mxu0 %v4098
        %5077 = vmatpush.bf16.msra.mxu0 %v4090
        %5078 = vmatpush.bf16.msra.mxu0 %v4082
        %5079 = vmatpush.bf16.msra.mxu0 %v4074
        %5080 = vmatpush.bf16.msra.mxu0 %v4066
        %5081 = vmatmul.bf16.gmra.mxu0 %v1548
        %v5082 = vpop.f32.mrf.mxu0
        %v5083 = vadd.f32 %v5069, %v5082
        %v5084 = vpop.f32.mrf.mxu0
        %v5085 = vadd.f32 %v5071, %v5084
        %5086 = vdwg.mxu0
        %5087 = vmatpush.bf16.msra.mxu0 %v3675
        %5088 = vmatpush.bf16.msra.mxu0 %v3667
        %5089 = vmatpush.bf16.msra.mxu0 %v3659
        %5090 = vmatpush.bf16.msra.mxu0 %v3651
        %5091 = vmatpush.bf16.msra.mxu0 %v3643
        %5092 = vmatpush.bf16.msra.mxu0 %v3635
        %5093 = vmatpush.bf16.msra.mxu0 %v3627
        %5094 = vmatpush.bf16.msra.mxu0 %v3619
        %5095 = vmatmul.bf16.gmra.mxu0 %v1541
        %v5096 = vpop.f32.mrf.mxu0
        %v5097 = vadd.f32 %v2067, %v5096
        %v5098 = vpop.f32.mrf.mxu0
        %v5099 = vadd.f32 %v2067, %v5098
        %5100 = vdwg.mxu0
        %5101 = vmatpush.bf16.msra.mxu0 %v3739
        %5102 = vmatpush.bf16.msra.mxu0 %v3731
        %5103 = vmatpush.bf16.msra.mxu0 %v3723
        %5104 = vmatpush.bf16.msra.mxu0 %v3715
        %5105 = vmatpush.bf16.msra.mxu0 %v3707
        %5106 = vmatpush.bf16.msra.mxu0 %v3699
        %5107 = vmatpush.bf16.msra.mxu0 %v3691
        %5108 = vmatpush.bf16.msra.mxu0 %v3683
        %5109 = vmatmul.bf16.gmra.mxu0 %v1542
        %v5110 = vpop.f32.mrf.mxu0
        %v5111 = vadd.f32 %v5097, %v5110
        %v5112 = vpop.f32.mrf.mxu0
        %v5113 = vadd.f32 %v5099, %v5112
        %5114 = vdwg.mxu0
        %5115 = vmatpush.bf16.msra.mxu0 %v3803
        %5116 = vmatpush.bf16.msra.mxu0 %v3795
        %5117 = vmatpush.bf16.msra.mxu0 %v3787
        %5118 = vmatpush.bf16.msra.mxu0 %v3779
        %5119 = vmatpush.bf16.msra.mxu0 %v3771
        %5120 = vmatpush.bf16.msra.mxu0 %v3763
        %5121 = vmatpush.bf16.msra.mxu0 %v3755
        %5122 = vmatpush.bf16.msra.mxu0 %v3747
        %5123 = vmatmul.bf16.gmra.mxu0 %v1543
        %v5124 = vpop.f32.mrf.mxu0
        %v5125 = vadd.f32 %v5111, %v5124
        %v5126 = vpop.f32.mrf.mxu0
        %v5127 = vadd.f32 %v5113, %v5126
        %5128 = vdwg.mxu0
        %5129 = vmatpush.bf16.msra.mxu0 %v3867
        %5130 = vmatpush.bf16.msra.mxu0 %v3859
        %5131 = vmatpush.bf16.msra.mxu0 %v3851
        %5132 = vmatpush.bf16.msra.mxu0 %v3843
        %5133 = vmatpush.bf16.msra.mxu0 %v3835
        %5134 = vmatpush.bf16.msra.mxu0 %v3827
        %5135 = vmatpush.bf16.msra.mxu0 %v3819
        %5136 = vmatpush.bf16.msra.mxu0 %v3811
        %5137 = vmatmul.bf16.gmra.mxu0 %v1544
        %v5138 = vpop.f32.mrf.mxu0
        %v5139 = vadd.f32 %v5125, %v5138
        %v5140 = vpop.f32.mrf.mxu0
        %v5141 = vadd.f32 %v5127, %v5140
        %5142 = vdwg.mxu0
        %5143 = vmatpush.bf16.msra.mxu0 %v3931
        %5144 = vmatpush.bf16.msra.mxu0 %v3923
        %5145 = vmatpush.bf16.msra.mxu0 %v3915
        %5146 = vmatpush.bf16.msra.mxu0 %v3907
        %5147 = vmatpush.bf16.msra.mxu0 %v3899
        %5148 = vmatpush.bf16.msra.mxu0 %v3891
        %5149 = vmatpush.bf16.msra.mxu0 %v3883
        %5150 = vmatpush.bf16.msra.mxu0 %v3875
        %5151 = vmatmul.bf16.gmra.mxu0 %v1545
        %v5152 = vpop.f32.mrf.mxu0
        %v5153 = vadd.f32 %v5139, %v5152
        %v5154 = vpop.f32.mrf.mxu0
        %v5155 = vadd.f32 %v5141, %v5154
        %5156 = vdwg.mxu0
        %5157 = vmatpush.bf16.msra.mxu0 %v3995
        %5158 = vmatpush.bf16.msra.mxu0 %v3987
        %5159 = vmatpush.bf16.msra.mxu0 %v3979
        %5160 = vmatpush.bf16.msra.mxu0 %v3971
        %5161 = vmatpush.bf16.msra.mxu0 %v3963
        %5162 = vmatpush.bf16.msra.mxu0 %v3955
        %5163 = vmatpush.bf16.msra.mxu0 %v3947
        %5164 = vmatpush.bf16.msra.mxu0 %v3939
        %5165 = vmatmul.bf16.gmra.mxu0 %v1546
        %v5166 = vpop.f32.mrf.mxu0
        %v5167 = vadd.f32 %v5153, %v5166
        %v5168 = vpop.f32.mrf.mxu0
        %v5169 = vadd.f32 %v5155, %v5168
        %5170 = vdwg.mxu0
        %5171 = vmatpush.bf16.msra.mxu0 %v4059
        %5172 = vmatpush.bf16.msra.mxu0 %v4051
        %5173 = vmatpush.bf16.msra.mxu0 %v4043
        %5174 = vmatpush.bf16.msra.mxu0 %v4035
        %5175 = vmatpush.bf16.msra.mxu0 %v4027
        %5176 = vmatpush.bf16.msra.mxu0 %v4019
        %5177 = vmatpush.bf16.msra.mxu0 %v4011
        %5178 = vmatpush.bf16.msra.mxu0 %v4003
        %5179 = vmatmul.bf16.gmra.mxu0 %v1547
        %v5180 = vpop.f32.mrf.mxu0
        %v5181 = vadd.f32 %v5167, %v5180
        %v5182 = vpop.f32.mrf.mxu0
        %v5183 = vadd.f32 %v5169, %v5182
        %5184 = vdwg.mxu0
        %5185 = vmatpush.bf16.msra.mxu0 %v4123
        %5186 = vmatpush.bf16.msra.mxu0 %v4115
        %5187 = vmatpush.bf16.msra.mxu0 %v4107
        %5188 = vmatpush.bf16.msra.mxu0 %v4099
        %5189 = vmatpush.bf16.msra.mxu0 %v4091
        %5190 = vmatpush.bf16.msra.mxu0 %v4083
        %5191 = vmatpush.bf16.msra.mxu0 %v4075
        %5192 = vmatpush.bf16.msra.mxu0 %v4067
        %5193 = vmatmul.bf16.gmra.mxu0 %v1548
        %v5194 = vpop.f32.mrf.mxu0
        %v5195 = vadd.f32 %v5181, %v5194
        %v5196 = vpop.f32.mrf.mxu0
        %v5197 = vadd.f32 %v5183, %v5196
        %5198 = vdwg.mxu0
        %5199 = vmatpush.bf16.msra.mxu0 %v3676
        %5200 = vmatpush.bf16.msra.mxu0 %v3668
        %5201 = vmatpush.bf16.msra.mxu0 %v3660
        %5202 = vmatpush.bf16.msra.mxu0 %v3652
        %5203 = vmatpush.bf16.msra.mxu0 %v3644
        %5204 = vmatpush.bf16.msra.mxu0 %v3636
        %5205 = vmatpush.bf16.msra.mxu0 %v3628
        %5206 = vmatpush.bf16.msra.mxu0 %v3620
        %5207 = vmatmul.bf16.gmra.mxu0 %v1541
        %v5208 = vpop.f32.mrf.mxu0
        %v5209 = vadd.f32 %v2068, %v5208
        %v5210 = vpop.f32.mrf.mxu0
        %v5211 = vadd.f32 %v2068, %v5210
        %5212 = vdwg.mxu0
        %5213 = vmatpush.bf16.msra.mxu0 %v3740
        %5214 = vmatpush.bf16.msra.mxu0 %v3732
        %5215 = vmatpush.bf16.msra.mxu0 %v3724
        %5216 = vmatpush.bf16.msra.mxu0 %v3716
        %5217 = vmatpush.bf16.msra.mxu0 %v3708
        %5218 = vmatpush.bf16.msra.mxu0 %v3700
        %5219 = vmatpush.bf16.msra.mxu0 %v3692
        %5220 = vmatpush.bf16.msra.mxu0 %v3684
        %5221 = vmatmul.bf16.gmra.mxu0 %v1542
        %v5222 = vpop.f32.mrf.mxu0
        %v5223 = vadd.f32 %v5209, %v5222
        %v5224 = vpop.f32.mrf.mxu0
        %v5225 = vadd.f32 %v5211, %v5224
        %5226 = vdwg.mxu0
        %5227 = vmatpush.bf16.msra.mxu0 %v3804
        %5228 = vmatpush.bf16.msra.mxu0 %v3796
        %5229 = vmatpush.bf16.msra.mxu0 %v3788
        %5230 = vmatpush.bf16.msra.mxu0 %v3780
        %5231 = vmatpush.bf16.msra.mxu0 %v3772
        %5232 = vmatpush.bf16.msra.mxu0 %v3764
        %5233 = vmatpush.bf16.msra.mxu0 %v3756
        %5234 = vmatpush.bf16.msra.mxu0 %v3748
        %5235 = vmatmul.bf16.gmra.mxu0 %v1543
        %v5236 = vpop.f32.mrf.mxu0
        %v5237 = vadd.f32 %v5223, %v5236
        %v5238 = vpop.f32.mrf.mxu0
        %v5239 = vadd.f32 %v5225, %v5238
        %5240 = vdwg.mxu0
        %5241 = vmatpush.bf16.msra.mxu0 %v3868
        %5242 = vmatpush.bf16.msra.mxu0 %v3860
        %5243 = vmatpush.bf16.msra.mxu0 %v3852
        %5244 = vmatpush.bf16.msra.mxu0 %v3844
        %5245 = vmatpush.bf16.msra.mxu0 %v3836
        %5246 = vmatpush.bf16.msra.mxu0 %v3828
        %5247 = vmatpush.bf16.msra.mxu0 %v3820
        %5248 = vmatpush.bf16.msra.mxu0 %v3812
        %5249 = vmatmul.bf16.gmra.mxu0 %v1544
        %v5250 = vpop.f32.mrf.mxu0
        %v5251 = vadd.f32 %v5237, %v5250
        %v5252 = vpop.f32.mrf.mxu0
        %v5253 = vadd.f32 %v5239, %v5252
        %5254 = vdwg.mxu0
        %5255 = vmatpush.bf16.msra.mxu0 %v3932
        %5256 = vmatpush.bf16.msra.mxu0 %v3924
        %5257 = vmatpush.bf16.msra.mxu0 %v3916
        %5258 = vmatpush.bf16.msra.mxu0 %v3908
        %5259 = vmatpush.bf16.msra.mxu0 %v3900
        %5260 = vmatpush.bf16.msra.mxu0 %v3892
        %5261 = vmatpush.bf16.msra.mxu0 %v3884
        %5262 = vmatpush.bf16.msra.mxu0 %v3876
        %5263 = vmatmul.bf16.gmra.mxu0 %v1545
        %v5264 = vpop.f32.mrf.mxu0
        %v5265 = vadd.f32 %v5251, %v5264
        %v5266 = vpop.f32.mrf.mxu0
        %v5267 = vadd.f32 %v5253, %v5266
        %5268 = vdwg.mxu0
        %5269 = vmatpush.bf16.msra.mxu0 %v3996
        %5270 = vmatpush.bf16.msra.mxu0 %v3988
        %5271 = vmatpush.bf16.msra.mxu0 %v3980
        %5272 = vmatpush.bf16.msra.mxu0 %v3972
        %5273 = vmatpush.bf16.msra.mxu0 %v3964
        %5274 = vmatpush.bf16.msra.mxu0 %v3956
        %5275 = vmatpush.bf16.msra.mxu0 %v3948
        %5276 = vmatpush.bf16.msra.mxu0 %v3940
        %5277 = vmatmul.bf16.gmra.mxu0 %v1546
        %v5278 = vpop.f32.mrf.mxu0
        %v5279 = vadd.f32 %v5265, %v5278
        %v5280 = vpop.f32.mrf.mxu0
        %v5281 = vadd.f32 %v5267, %v5280
        %5282 = vdwg.mxu0
        %5283 = vmatpush.bf16.msra.mxu0 %v4060
        %5284 = vmatpush.bf16.msra.mxu0 %v4052
        %5285 = vmatpush.bf16.msra.mxu0 %v4044
        %5286 = vmatpush.bf16.msra.mxu0 %v4036
        %5287 = vmatpush.bf16.msra.mxu0 %v4028
        %5288 = vmatpush.bf16.msra.mxu0 %v4020
        %5289 = vmatpush.bf16.msra.mxu0 %v4012
        %5290 = vmatpush.bf16.msra.mxu0 %v4004
        %5291 = vmatmul.bf16.gmra.mxu0 %v1547
        %v5292 = vpop.f32.mrf.mxu0
        %v5293 = vadd.f32 %v5279, %v5292
        %v5294 = vpop.f32.mrf.mxu0
        %v5295 = vadd.f32 %v5281, %v5294
        %5296 = vdwg.mxu0
        %5297 = vmatpush.bf16.msra.mxu0 %v4124
        %5298 = vmatpush.bf16.msra.mxu0 %v4116
        %5299 = vmatpush.bf16.msra.mxu0 %v4108
        %5300 = vmatpush.bf16.msra.mxu0 %v4100
        %5301 = vmatpush.bf16.msra.mxu0 %v4092
        %5302 = vmatpush.bf16.msra.mxu0 %v4084
        %5303 = vmatpush.bf16.msra.mxu0 %v4076
        %5304 = vmatpush.bf16.msra.mxu0 %v4068
        %5305 = vmatmul.bf16.gmra.mxu0 %v1548
        %v5306 = vpop.f32.mrf.mxu0
        %v5307 = vadd.f32 %v5293, %v5306
        %v5308 = vpop.f32.mrf.mxu0
        %v5309 = vadd.f32 %v5295, %v5308
        %5310 = vdwg.mxu0
        %5311 = vmatpush.bf16.msra.mxu0 %v3677
        %5312 = vmatpush.bf16.msra.mxu0 %v3669
        %5313 = vmatpush.bf16.msra.mxu0 %v3661
        %5314 = vmatpush.bf16.msra.mxu0 %v3653
        %5315 = vmatpush.bf16.msra.mxu0 %v3645
        %5316 = vmatpush.bf16.msra.mxu0 %v3637
        %5317 = vmatpush.bf16.msra.mxu0 %v3629
        %5318 = vmatpush.bf16.msra.mxu0 %v3621
        %5319 = vmatmul.bf16.gmra.mxu0 %v1541
        %v5320 = vpop.f32.mrf.mxu0
        %v5321 = vadd.f32 %v2069, %v5320
        %v5322 = vpop.f32.mrf.mxu0
        %v5323 = vadd.f32 %v2069, %v5322
        %5324 = vdwg.mxu0
        %5325 = vmatpush.bf16.msra.mxu0 %v3741
        %5326 = vmatpush.bf16.msra.mxu0 %v3733
        %5327 = vmatpush.bf16.msra.mxu0 %v3725
        %5328 = vmatpush.bf16.msra.mxu0 %v3717
        %5329 = vmatpush.bf16.msra.mxu0 %v3709
        %5330 = vmatpush.bf16.msra.mxu0 %v3701
        %5331 = vmatpush.bf16.msra.mxu0 %v3693
        %5332 = vmatpush.bf16.msra.mxu0 %v3685
        %5333 = vmatmul.bf16.gmra.mxu0 %v1542
        %v5334 = vpop.f32.mrf.mxu0
        %v5335 = vadd.f32 %v5321, %v5334
        %v5336 = vpop.f32.mrf.mxu0
        %v5337 = vadd.f32 %v5323, %v5336
        %5338 = vdwg.mxu0
        %5339 = vmatpush.bf16.msra.mxu0 %v3805
        %5340 = vmatpush.bf16.msra.mxu0 %v3797
        %5341 = vmatpush.bf16.msra.mxu0 %v3789
        %5342 = vmatpush.bf16.msra.mxu0 %v3781
        %5343 = vmatpush.bf16.msra.mxu0 %v3773
        %5344 = vmatpush.bf16.msra.mxu0 %v3765
        %5345 = vmatpush.bf16.msra.mxu0 %v3757
        %5346 = vmatpush.bf16.msra.mxu0 %v3749
        %5347 = vmatmul.bf16.gmra.mxu0 %v1543
        %v5348 = vpop.f32.mrf.mxu0
        %v5349 = vadd.f32 %v5335, %v5348
        %v5350 = vpop.f32.mrf.mxu0
        %v5351 = vadd.f32 %v5337, %v5350
        %5352 = vdwg.mxu0
        %5353 = vmatpush.bf16.msra.mxu0 %v3869
        %5354 = vmatpush.bf16.msra.mxu0 %v3861
        %5355 = vmatpush.bf16.msra.mxu0 %v3853
        %5356 = vmatpush.bf16.msra.mxu0 %v3845
        %5357 = vmatpush.bf16.msra.mxu0 %v3837
        %5358 = vmatpush.bf16.msra.mxu0 %v3829
        %5359 = vmatpush.bf16.msra.mxu0 %v3821
        %5360 = vmatpush.bf16.msra.mxu0 %v3813
        %5361 = vmatmul.bf16.gmra.mxu0 %v1544
        %v5362 = vpop.f32.mrf.mxu0
        %v5363 = vadd.f32 %v5349, %v5362
        %v5364 = vpop.f32.mrf.mxu0
        %v5365 = vadd.f32 %v5351, %v5364
        %5366 = vdwg.mxu0
        %5367 = vmatpush.bf16.msra.mxu0 %v3933
        %5368 = vmatpush.bf16.msra.mxu0 %v3925
        %5369 = vmatpush.bf16.msra.mxu0 %v3917
        %5370 = vmatpush.bf16.msra.mxu0 %v3909
        %5371 = vmatpush.bf16.msra.mxu0 %v3901
        %5372 = vmatpush.bf16.msra.mxu0 %v3893
        %5373 = vmatpush.bf16.msra.mxu0 %v3885
        %5374 = vmatpush.bf16.msra.mxu0 %v3877
        %5375 = vmatmul.bf16.gmra.mxu0 %v1545
        %v5376 = vpop.f32.mrf.mxu0
        %v5377 = vadd.f32 %v5363, %v5376
        %v5378 = vpop.f32.mrf.mxu0
        %v5379 = vadd.f32 %v5365, %v5378
        %5380 = vdwg.mxu0
        %5381 = vmatpush.bf16.msra.mxu0 %v3997
        %5382 = vmatpush.bf16.msra.mxu0 %v3989
        %5383 = vmatpush.bf16.msra.mxu0 %v3981
        %5384 = vmatpush.bf16.msra.mxu0 %v3973
        %5385 = vmatpush.bf16.msra.mxu0 %v3965
        %5386 = vmatpush.bf16.msra.mxu0 %v3957
        %5387 = vmatpush.bf16.msra.mxu0 %v3949
        %5388 = vmatpush.bf16.msra.mxu0 %v3941
        %5389 = vmatmul.bf16.gmra.mxu0 %v1546
        %v5390 = vpop.f32.mrf.mxu0
        %v5391 = vadd.f32 %v5377, %v5390
        %v5392 = vpop.f32.mrf.mxu0
        %v5393 = vadd.f32 %v5379, %v5392
        %5394 = vdwg.mxu0
        %5395 = vmatpush.bf16.msra.mxu0 %v4061
        %5396 = vmatpush.bf16.msra.mxu0 %v4053
        %5397 = vmatpush.bf16.msra.mxu0 %v4045
        %5398 = vmatpush.bf16.msra.mxu0 %v4037
        %5399 = vmatpush.bf16.msra.mxu0 %v4029
        %5400 = vmatpush.bf16.msra.mxu0 %v4021
        %5401 = vmatpush.bf16.msra.mxu0 %v4013
        %5402 = vmatpush.bf16.msra.mxu0 %v4005
        %5403 = vmatmul.bf16.gmra.mxu0 %v1547
        %v5404 = vpop.f32.mrf.mxu0
        %v5405 = vadd.f32 %v5391, %v5404
        %v5406 = vpop.f32.mrf.mxu0
        %v5407 = vadd.f32 %v5393, %v5406
        %5408 = vdwg.mxu0
        %5409 = vmatpush.bf16.msra.mxu0 %v4125
        %5410 = vmatpush.bf16.msra.mxu0 %v4117
        %5411 = vmatpush.bf16.msra.mxu0 %v4109
        %5412 = vmatpush.bf16.msra.mxu0 %v4101
        %5413 = vmatpush.bf16.msra.mxu0 %v4093
        %5414 = vmatpush.bf16.msra.mxu0 %v4085
        %5415 = vmatpush.bf16.msra.mxu0 %v4077
        %5416 = vmatpush.bf16.msra.mxu0 %v4069
        %5417 = vmatmul.bf16.gmra.mxu0 %v1548
        %v5418 = vpop.f32.mrf.mxu0
        %v5419 = vadd.f32 %v5405, %v5418
        %v5420 = vpop.f32.mrf.mxu0
        %v5421 = vadd.f32 %v5407, %v5420
        %5422 = vdwg.mxu0
        %5423 = vmatpush.bf16.msra.mxu0 %v3678
        %5424 = vmatpush.bf16.msra.mxu0 %v3670
        %5425 = vmatpush.bf16.msra.mxu0 %v3662
        %5426 = vmatpush.bf16.msra.mxu0 %v3654
        %5427 = vmatpush.bf16.msra.mxu0 %v3646
        %5428 = vmatpush.bf16.msra.mxu0 %v3638
        %5429 = vmatpush.bf16.msra.mxu0 %v3630
        %5430 = vmatpush.bf16.msra.mxu0 %v3622
        %5431 = vmatmul.bf16.gmra.mxu0 %v1541
        %v5432 = vpop.f32.mrf.mxu0
        %v5433 = vadd.f32 %v2070, %v5432
        %v5434 = vpop.f32.mrf.mxu0
        %v5435 = vadd.f32 %v2070, %v5434
        %5436 = vdwg.mxu0
        %5437 = vmatpush.bf16.msra.mxu0 %v3742
        %5438 = vmatpush.bf16.msra.mxu0 %v3734
        %5439 = vmatpush.bf16.msra.mxu0 %v3726
        %5440 = vmatpush.bf16.msra.mxu0 %v3718
        %5441 = vmatpush.bf16.msra.mxu0 %v3710
        %5442 = vmatpush.bf16.msra.mxu0 %v3702
        %5443 = vmatpush.bf16.msra.mxu0 %v3694
        %5444 = vmatpush.bf16.msra.mxu0 %v3686
        %5445 = vmatmul.bf16.gmra.mxu0 %v1542
        %v5446 = vpop.f32.mrf.mxu0
        %v5447 = vadd.f32 %v5433, %v5446
        %v5448 = vpop.f32.mrf.mxu0
        %v5449 = vadd.f32 %v5435, %v5448
        %5450 = vdwg.mxu0
        %5451 = vmatpush.bf16.msra.mxu0 %v3806
        %5452 = vmatpush.bf16.msra.mxu0 %v3798
        %5453 = vmatpush.bf16.msra.mxu0 %v3790
        %5454 = vmatpush.bf16.msra.mxu0 %v3782
        %5455 = vmatpush.bf16.msra.mxu0 %v3774
        %5456 = vmatpush.bf16.msra.mxu0 %v3766
        %5457 = vmatpush.bf16.msra.mxu0 %v3758
        %5458 = vmatpush.bf16.msra.mxu0 %v3750
        %5459 = vmatmul.bf16.gmra.mxu0 %v1543
        %v5460 = vpop.f32.mrf.mxu0
        %v5461 = vadd.f32 %v5447, %v5460
        %v5462 = vpop.f32.mrf.mxu0
        %v5463 = vadd.f32 %v5449, %v5462
        %5464 = vdwg.mxu0
        %5465 = vmatpush.bf16.msra.mxu0 %v3870
        %5466 = vmatpush.bf16.msra.mxu0 %v3862
        %5467 = vmatpush.bf16.msra.mxu0 %v3854
        %5468 = vmatpush.bf16.msra.mxu0 %v3846
        %5469 = vmatpush.bf16.msra.mxu0 %v3838
        %5470 = vmatpush.bf16.msra.mxu0 %v3830
        %5471 = vmatpush.bf16.msra.mxu0 %v3822
        %5472 = vmatpush.bf16.msra.mxu0 %v3814
        %5473 = vmatmul.bf16.gmra.mxu0 %v1544
        %v5474 = vpop.f32.mrf.mxu0
        %v5475 = vadd.f32 %v5461, %v5474
        %v5476 = vpop.f32.mrf.mxu0
        %v5477 = vadd.f32 %v5463, %v5476
        %5478 = vdwg.mxu0
        %5479 = vmatpush.bf16.msra.mxu0 %v3934
        %5480 = vmatpush.bf16.msra.mxu0 %v3926
        %5481 = vmatpush.bf16.msra.mxu0 %v3918
        %5482 = vmatpush.bf16.msra.mxu0 %v3910
        %5483 = vmatpush.bf16.msra.mxu0 %v3902
        %5484 = vmatpush.bf16.msra.mxu0 %v3894
        %5485 = vmatpush.bf16.msra.mxu0 %v3886
        %5486 = vmatpush.bf16.msra.mxu0 %v3878
        %5487 = vmatmul.bf16.gmra.mxu0 %v1545
        %v5488 = vpop.f32.mrf.mxu0
        %v5489 = vadd.f32 %v5475, %v5488
        %v5490 = vpop.f32.mrf.mxu0
        %v5491 = vadd.f32 %v5477, %v5490
        %5492 = vdwg.mxu0
        %5493 = vmatpush.bf16.msra.mxu0 %v3998
        %5494 = vmatpush.bf16.msra.mxu0 %v3990
        %5495 = vmatpush.bf16.msra.mxu0 %v3982
        %5496 = vmatpush.bf16.msra.mxu0 %v3974
        %5497 = vmatpush.bf16.msra.mxu0 %v3966
        %5498 = vmatpush.bf16.msra.mxu0 %v3958
        %5499 = vmatpush.bf16.msra.mxu0 %v3950
        %5500 = vmatpush.bf16.msra.mxu0 %v3942
        %5501 = vmatmul.bf16.gmra.mxu0 %v1546
        %v5502 = vpop.f32.mrf.mxu0
        %v5503 = vadd.f32 %v5489, %v5502
        %v5504 = vpop.f32.mrf.mxu0
        %v5505 = vadd.f32 %v5491, %v5504
        %5506 = vdwg.mxu0
        %5507 = vmatpush.bf16.msra.mxu0 %v4062
        %5508 = vmatpush.bf16.msra.mxu0 %v4054
        %5509 = vmatpush.bf16.msra.mxu0 %v4046
        %5510 = vmatpush.bf16.msra.mxu0 %v4038
        %5511 = vmatpush.bf16.msra.mxu0 %v4030
        %5512 = vmatpush.bf16.msra.mxu0 %v4022
        %5513 = vmatpush.bf16.msra.mxu0 %v4014
        %5514 = vmatpush.bf16.msra.mxu0 %v4006
        %5515 = vmatmul.bf16.gmra.mxu0 %v1547
        %v5516 = vpop.f32.mrf.mxu0
        %v5517 = vadd.f32 %v5503, %v5516
        %v5518 = vpop.f32.mrf.mxu0
        %v5519 = vadd.f32 %v5505, %v5518
        %5520 = vdwg.mxu0
        %5521 = vmatpush.bf16.msra.mxu0 %v4126
        %5522 = vmatpush.bf16.msra.mxu0 %v4118
        %5523 = vmatpush.bf16.msra.mxu0 %v4110
        %5524 = vmatpush.bf16.msra.mxu0 %v4102
        %5525 = vmatpush.bf16.msra.mxu0 %v4094
        %5526 = vmatpush.bf16.msra.mxu0 %v4086
        %5527 = vmatpush.bf16.msra.mxu0 %v4078
        %5528 = vmatpush.bf16.msra.mxu0 %v4070
        %5529 = vmatmul.bf16.gmra.mxu0 %v1548
        %v5530 = vpop.f32.mrf.mxu0
        %v5531 = vadd.f32 %v5517, %v5530
        %v5532 = vpop.f32.mrf.mxu0
        %v5533 = vadd.f32 %v5519, %v5532
        %5534 = vdwg.mxu0
        %v5535 = vmax.f32 %v4747, 0.0
        %v5536 = vmax.f32 %v4859, 0.0
        %v5537 = vmax.f32 %v4971, 0.0
        %v5538 = vmax.f32 %v5083, 0.0
        %v5539 = vmax.f32 %v5195, 0.0
        %v5540 = vmax.f32 %v5307, 0.0
        %v5541 = vmax.f32 %v5419, 0.0
        %v5542 = vmax.f32 %v5531, 0.0
        %v5543 = vmax.f32 %v4749, 0.0
        %v5544 = vmax.f32 %v4861, 0.0
        %v5545 = vmax.f32 %v4973, 0.0
        %v5546 = vmax.f32 %v5085, 0.0
        %v5547 = vmax.f32 %v5197, 0.0
        %v5548 = vmax.f32 %v5309, 0.0
        %v5549 = vmax.f32 %v5421, 0.0
        %v5550 = vmax.f32 %v5533, 0.0
        %5551 = vst [vmem:[%s729] sm:$0xf] %v1003
        %5552 = vst [vmem:[%s729 + $0x4] sm:$0xf] %v1004
        %v5553 = vld [vmem:[%s753] sm:$0xff]
        %v5554 = vld [vmem:[%s753 + $0x8] sm:$0xff]
        %vm5555 = vcmp.gt.f32.partialorder %v5553, 0.0
        %vm5556 = vcmp.gt.f32.partialorder %v5554, 0.0
        %v5557 = vsel %vm5555, 1, 0
        %v5558 = vsel %vm5556, 1, 0
        %5559 = vset.pattern.permute.xlu0 0
        %5560 = vperm.xlu0 %5559, %v5557
        %v5561 = vpop.permute.xlu0 %5560
        %5562 = vset.pattern.permute.xlu0 0
        %5563 = vperm.xlu0 %5562, %v5558
        %v5564 = vpop.permute.xlu0 %5563
        %vm5565 = vcmp.eq.s32.totalorder %v5561, 1
        %vm5566 = vcmp.eq.s32.totalorder %v5564, 1
        %v5567 = vsel %vm5565, %v5535, 0.0
        %v5568 = vsel %vm5565, %v5536, 0.0
        %v5569 = vsel %vm5565, %v5537, 0.0
        %v5570 = vsel %vm5565, %v5538, 0.0
        %v5571 = vsel %vm5565, %v5539, 0.0
        %v5572 = vsel %vm5565, %v5540, 0.0
        %v5573 = vsel %vm5565, %v5541, 0.0
        %v5574 = vsel %vm5565, %v5542, 0.0
        %v5575 = vsel %vm5566, %v5543, 0.0
        %v5576 = vsel %vm5566, %v5544, 0.0
        %v5577 = vsel %vm5566, %v5545, 0.0
        %v5578 = vsel %vm5566, %v5546, 0.0
        %v5579 = vsel %vm5566, %v5547, 0.0
        %v5580 = vsel %vm5566, %v5548, 0.0
        %v5581 = vsel %vm5566, %v5549, 0.0
        %v5582 = vsel %vm5566, %v5550, 0.0
        %v5583 = vmax.f32 %v5567, %v5575
        %v5584 = vrot.slane %v5583, 4
        %v5585 = vmax.f32 %v5583, %v5584
        %v5586 = vrot.slane %v5585, 2
        %v5587 = vmax.f32 %v5585, %v5586
        %v5588 = vrot.slane %v5587, 1
        %v5589 = vmax.f32 %v5587, %v5588
        %v5590 = vmax.f32 %v5568, %v5576
        %v5591 = vrot.slane %v5590, 4
        %v5592 = vmax.f32 %v5590, %v5591
        %v5593 = vrot.slane %v5592, 2
        %v5594 = vmax.f32 %v5592, %v5593
        %v5595 = vrot.slane %v5594, 1
        %v5596 = vmax.f32 %v5594, %v5595
        %v5597 = vmax.f32 %v5569, %v5577
        %v5598 = vrot.slane %v5597, 4
        %v5599 = vmax.f32 %v5597, %v5598
        %v5600 = vrot.slane %v5599, 2
        %v5601 = vmax.f32 %v5599, %v5600
        %v5602 = vrot.slane %v5601, 1
        %v5603 = vmax.f32 %v5601, %v5602
        %v5604 = vmax.f32 %v5570, %v5578
        %v5605 = vrot.slane %v5604, 4
        %v5606 = vmax.f32 %v5604, %v5605
        %v5607 = vrot.slane %v5606, 2
        %v5608 = vmax.f32 %v5606, %v5607
        %v5609 = vrot.slane %v5608, 1
        %v5610 = vmax.f32 %v5608, %v5609
        %v5611 = vmax.f32 %v5571, %v5579
        %v5612 = vrot.slane %v5611, 4
        %v5613 = vmax.f32 %v5611, %v5612
        %v5614 = vrot.slane %v5613, 2
        %v5615 = vmax.f32 %v5613, %v5614
        %v5616 = vrot.slane %v5615, 1
        %v5617 = vmax.f32 %v5615, %v5616
        %v5618 = vmax.f32 %v5572, %v5580
        %v5619 = vrot.slane %v5618, 4
        %v5620 = vmax.f32 %v5618, %v5619
        %v5621 = vrot.slane %v5620, 2
        %v5622 = vmax.f32 %v5620, %v5621
        %v5623 = vrot.slane %v5622, 1
        %v5624 = vmax.f32 %v5622, %v5623
        %v5625 = vmax.f32 %v5573, %v5581
        %v5626 = vrot.slane %v5625, 4
        %v5627 = vmax.f32 %v5625, %v5626
        %v5628 = vrot.slane %v5627, 2
        %v5629 = vmax.f32 %v5627, %v5628
        %v5630 = vrot.slane %v5629, 1
        %v5631 = vmax.f32 %v5629, %v5630
        %v5632 = vmax.f32 %v5574, %v5582
        %v5633 = vrot.slane %v5632, 4
        %v5634 = vmax.f32 %v5632, %v5633
        %v5635 = vrot.slane %v5634, 2
        %v5636 = vmax.f32 %v5634, %v5635
        %v5637 = vrot.slane %v5636, 1
        %v5638 = vmax.f32 %v5636, %v5637
        %v5639 = vld [vmem:[%s736] ss:$8 sm:$0xf]
        %v5640 = vld [vmem:[%s736] ss:$8 sm:$0xf0]
        %v5641 = vor.u32 %v5639, %v5640
        %v5650 = vrot.slane %v5596, 7
        %v5651 = vrot.slane %v5603, 6
        %v5652 = vrot.slane %v5610, 5
        %v5653 = vrot.slane %v5617, 4
        %v5654 = vrot.slane %v5624, 3
        %v5655 = vrot.slane %v5631, 2
        %v5656 = vrot.slane %v5638, 1
        %vm5657 = vcmask 1040384
        %v5658 = vsel %vm5657, %v5589, %v5650
        %vm5659 = vcmask 1042434
        %v5660 = vsel %vm5659, %v5651, %v5652
        %vm5661 = vcmask 1041408
        %v5662 = vsel %vm5661, %v5658, %v5660
        %vm5663 = vcmask 1044484
        %v5664 = vsel %vm5663, %v5653, %v5654
        %vm5665 = vcmask 1046534
        %v5666 = vsel %vm5665, %v5655, %v5656
        %vm5667 = vcmask 1045508
        %v5668 = vsel %vm5667, %v5664, %v5666
        %v5669 = vsel %vm785, %v5662, %v5668
        %v5671 = vmax.f32 %v5641, %v5669
        %5672 = vst [vmem:[%s736] ss:$8 sm:$0xf] %v5671
        %5673 = vst [vmem:[%s736] ss:$8 sm:$0xf0] %v5671
        %5674 = vset.pattern.permute.xlu0 1
        %5675 = vperm.xlu0 %5674, %v5557
        %v5676 = vpop.permute.xlu0 %5675
        %5677 = vset.pattern.permute.xlu0 1
        %5678 = vperm.xlu0 %5677, %v5558
        %v5679 = vpop.permute.xlu0 %5678
        %vm5680 = vcmp.eq.s32.totalorder %v5676, 1
        %vm5681 = vcmp.eq.s32.totalorder %v5679, 1
        %v5682 = vsel %vm5680, %v5535, 0.0
        %v5683 = vsel %vm5680, %v5536, 0.0
        %v5684 = vsel %vm5680, %v5537, 0.0
        %v5685 = vsel %vm5680, %v5538, 0.0
        %v5686 = vsel %vm5680, %v5539, 0.0
        %v5687 = vsel %vm5680, %v5540, 0.0
        %v5688 = vsel %vm5680, %v5541, 0.0
        %v5689 = vsel %vm5680, %v5542, 0.0
        %v5690 = vsel %vm5681, %v5543, 0.0
        %v5691 = vsel %vm5681, %v5544, 0.0
        %v5692 = vsel %vm5681, %v5545, 0.0
        %v5693 = vsel %vm5681, %v5546, 0.0
        %v5694 = vsel %vm5681, %v5547, 0.0
        %v5695 = vsel %vm5681, %v5548, 0.0
        %v5696 = vsel %vm5681, %v5549, 0.0
        %v5697 = vsel %vm5681, %v5550, 0.0
        %v5698 = vmax.f32 %v5682, %v5690
        %v5699 = vrot.slane %v5698, 4
        %v5700 = vmax.f32 %v5698, %v5699
        %v5701 = vrot.slane %v5700, 2
        %v5702 = vmax.f32 %v5700, %v5701
        %v5703 = vrot.slane %v5702, 1
        %v5704 = vmax.f32 %v5702, %v5703
        %v5705 = vmax.f32 %v5683, %v5691
        %v5706 = vrot.slane %v5705, 4
        %v5707 = vmax.f32 %v5705, %v5706
        %v5708 = vrot.slane %v5707, 2
        %v5709 = vmax.f32 %v5707, %v5708
        %v5710 = vrot.slane %v5709, 1
        %v5711 = vmax.f32 %v5709, %v5710
        %v5712 = vmax.f32 %v5684, %v5692
        %v5713 = vrot.slane %v5712, 4
        %v5714 = vmax.f32 %v5712, %v5713
        %v5715 = vrot.slane %v5714, 2
        %v5716 = vmax.f32 %v5714, %v5715
        %v5717 = vrot.slane %v5716, 1
        %v5718 = vmax.f32 %v5716, %v5717
        %v5719 = vmax.f32 %v5685, %v5693
        %v5720 = vrot.slane %v5719, 4
        %v5721 = vmax.f32 %v5719, %v5720
        %v5722 = vrot.slane %v5721, 2
        %v5723 = vmax.f32 %v5721, %v5722
        %v5724 = vrot.slane %v5723, 1
        %v5725 = vmax.f32 %v5723, %v5724
        %v5726 = vmax.f32 %v5686, %v5694
        %v5727 = vrot.slane %v5726, 4
        %v5728 = vmax.f32 %v5726, %v5727
        %v5729 = vrot.slane %v5728, 2
        %v5730 = vmax.f32 %v5728, %v5729
        %v5731 = vrot.slane %v5730, 1
        %v5732 = vmax.f32 %v5730, %v5731
        %v5733 = vmax.f32 %v5687, %v5695
        %v5734 = vrot.slane %v5733, 4
        %v5735 = vmax.f32 %v5733, %v5734
        %v5736 = vrot.slane %v5735, 2
        %v5737 = vmax.f32 %v5735, %v5736
        %v5738 = vrot.slane %v5737, 1
        %v5739 = vmax.f32 %v5737, %v5738
        %v5740 = vmax.f32 %v5688, %v5696
        %v5741 = vrot.slane %v5740, 4
        %v5742 = vmax.f32 %v5740, %v5741
        %v5743 = vrot.slane %v5742, 2
        %v5744 = vmax.f32 %v5742, %v5743
        %v5745 = vrot.slane %v5744, 1
        %v5746 = vmax.f32 %v5744, %v5745
        %v5747 = vmax.f32 %v5689, %v5697
        %v5748 = vrot.slane %v5747, 4
        %v5749 = vmax.f32 %v5747, %v5748
        %v5750 = vrot.slane %v5749, 2
        %v5751 = vmax.f32 %v5749, %v5750
        %v5752 = vrot.slane %v5751, 1
        %v5753 = vmax.f32 %v5751, %v5752
        %s5754 = scalar_lea.vmem %s736, 1 [#allocation23]
        %v5755 = vld [vmem:[%s5754] ss:$8 sm:$0xf]
        %v5756 = vld [vmem:[%s5754] ss:$8 sm:$0xf0]
        %v5757 = vor.u32 %v5755, %v5756
        %v5766 = vrot.slane %v5711, 7
        %v5767 = vrot.slane %v5718, 6
        %v5768 = vrot.slane %v5725, 5
        %v5769 = vrot.slane %v5732, 4
        %v5770 = vrot.slane %v5739, 3
        %v5771 = vrot.slane %v5746, 2
        %v5772 = vrot.slane %v5753, 1
        %v5773 = vsel %vm5657, %v5704, %v5766
        %v5774 = vsel %vm5659, %v5767, %v5768
        %v5775 = vsel %vm5661, %v5773, %v5774
        %v5776 = vsel %vm5663, %v5769, %v5770
        %v5777 = vsel %vm5665, %v5771, %v5772
        %v5778 = vsel %vm5667, %v5776, %v5777
        %v5779 = vsel %vm785, %v5775, %v5778
        %v5781 = vmax.f32 %v5757, %v5779
        %5782 = vst [vmem:[%s5754] ss:$8 sm:$0xf] %v5781
        %5783 = vst [vmem:[%s5754] ss:$8 sm:$0xf0] %v5781
        %5784 = vset.pattern.permute.xlu0 2
        %5785 = vperm.xlu0 %5784, %v5557
        %v5786 = vpop.permute.xlu0 %5785
        %5787 = vset.pattern.permute.xlu0 2
        %5788 = vperm.xlu0 %5787, %v5558
        %v5789 = vpop.permute.xlu0 %5788
        %vm5790 = vcmp.eq.s32.totalorder %v5786, 1
        %vm5791 = vcmp.eq.s32.totalorder %v5789, 1
        %v5792 = vsel %vm5790, %v5535, 0.0
        %v5793 = vsel %vm5790, %v5536, 0.0
        %v5794 = vsel %vm5790, %v5537, 0.0
        %v5795 = vsel %vm5790, %v5538, 0.0
        %v5796 = vsel %vm5790, %v5539, 0.0
        %v5797 = vsel %vm5790, %v5540, 0.0
        %v5798 = vsel %vm5790, %v5541, 0.0
        %v5799 = vsel %vm5790, %v5542, 0.0
        %v5800 = vsel %vm5791, %v5543, 0.0
        %v5801 = vsel %vm5791, %v5544, 0.0
        %v5802 = vsel %vm5791, %v5545, 0.0
        %v5803 = vsel %vm5791, %v5546, 0.0
        %v5804 = vsel %vm5791, %v5547, 0.0
        %v5805 = vsel %vm5791, %v5548, 0.0
        %v5806 = vsel %vm5791, %v5549, 0.0
        %v5807 = vsel %vm5791, %v5550, 0.0
        %v5808 = vmax.f32 %v5792, %v5800
        %v5809 = vrot.slane %v5808, 4
        %v5810 = vmax.f32 %v5808, %v5809
        %v5811 = vrot.slane %v5810, 2
        %v5812 = vmax.f32 %v5810, %v5811
        %v5813 = vrot.slane %v5812, 1
        %v5814 = vmax.f32 %v5812, %v5813
        %v5815 = vmax.f32 %v5793, %v5801
        %v5816 = vrot.slane %v5815, 4
        %v5817 = vmax.f32 %v5815, %v5816
        %v5818 = vrot.slane %v5817, 2
        %v5819 = vmax.f32 %v5817, %v5818
        %v5820 = vrot.slane %v5819, 1
        %v5821 = vmax.f32 %v5819, %v5820
        %v5822 = vmax.f32 %v5794, %v5802
        %v5823 = vrot.slane %v5822, 4
        %v5824 = vmax.f32 %v5822, %v5823
        %v5825 = vrot.slane %v5824, 2
        %v5826 = vmax.f32 %v5824, %v5825
        %v5827 = vrot.slane %v5826, 1
        %v5828 = vmax.f32 %v5826, %v5827
        %v5829 = vmax.f32 %v5795, %v5803
        %v5830 = vrot.slane %v5829, 4
        %v5831 = vmax.f32 %v5829, %v5830
        %v5832 = vrot.slane %v5831, 2
        %v5833 = vmax.f32 %v5831, %v5832
        %v5834 = vrot.slane %v5833, 1
        %v5835 = vmax.f32 %v5833, %v5834
        %v5836 = vmax.f32 %v5796, %v5804
        %v5837 = vrot.slane %v5836, 4
        %v5838 = vmax.f32 %v5836, %v5837
        %v5839 = vrot.slane %v5838, 2
        %v5840 = vmax.f32 %v5838, %v5839
        %v5841 = vrot.slane %v5840, 1
        %v5842 = vmax.f32 %v5840, %v5841
        %v5843 = vmax.f32 %v5797, %v5805
        %v5844 = vrot.slane %v5843, 4
        %v5845 = vmax.f32 %v5843, %v5844
        %v5846 = vrot.slane %v5845, 2
        %v5847 = vmax.f32 %v5845, %v5846
        %v5848 = vrot.slane %v5847, 1
        %v5849 = vmax.f32 %v5847, %v5848
        %v5850 = vmax.f32 %v5798, %v5806
        %v5851 = vrot.slane %v5850, 4
        %v5852 = vmax.f32 %v5850, %v5851
        %v5853 = vrot.slane %v5852, 2
        %v5854 = vmax.f32 %v5852, %v5853
        %v5855 = vrot.slane %v5854, 1
        %v5856 = vmax.f32 %v5854, %v5855
        %v5857 = vmax.f32 %v5799, %v5807
        %v5858 = vrot.slane %v5857, 4
        %v5859 = vmax.f32 %v5857, %v5858
        %v5860 = vrot.slane %v5859, 2
        %v5861 = vmax.f32 %v5859, %v5860
        %v5862 = vrot.slane %v5861, 1
        %v5863 = vmax.f32 %v5861, %v5862
        %s5864 = scalar_lea.vmem %s736, 2 [#allocation23]
        %v5865 = vld [vmem:[%s5864] ss:$8 sm:$0xf]
        %v5866 = vld [vmem:[%s5864] ss:$8 sm:$0xf0]
        %v5867 = vor.u32 %v5865, %v5866
        %v5876 = vrot.slane %v5821, 7
        %v5877 = vrot.slane %v5828, 6
        %v5878 = vrot.slane %v5835, 5
        %v5879 = vrot.slane %v5842, 4
        %v5880 = vrot.slane %v5849, 3
        %v5881 = vrot.slane %v5856, 2
        %v5882 = vrot.slane %v5863, 1
        %v5883 = vsel %vm5657, %v5814, %v5876
        %v5884 = vsel %vm5659, %v5877, %v5878
        %v5885 = vsel %vm5661, %v5883, %v5884
        %v5886 = vsel %vm5663, %v5879, %v5880
        %v5887 = vsel %vm5665, %v5881, %v5882
        %v5888 = vsel %vm5667, %v5886, %v5887
        %v5889 = vsel %vm785, %v5885, %v5888
        %v5891 = vmax.f32 %v5867, %v5889
        %5892 = vst [vmem:[%s5864] ss:$8 sm:$0xf] %v5891
        %5893 = vst [vmem:[%s5864] ss:$8 sm:$0xf0] %v5891
        %5894 = vset.pattern.permute.xlu0 3
        %5895 = vperm.xlu0 %5894, %v5557
        %v5896 = vpop.permute.xlu0 %5895
        %5897 = vset.pattern.permute.xlu0 3
        %5898 = vperm.xlu0 %5897, %v5558
        %v5899 = vpop.permute.xlu0 %5898
        %vm5900 = vcmp.eq.s32.totalorder %v5896, 1
        %vm5901 = vcmp.eq.s32.totalorder %v5899, 1
        %v5902 = vsel %vm5900, %v5535, 0.0
        %v5903 = vsel %vm5900, %v5536, 0.0
        %v5904 = vsel %vm5900, %v5537, 0.0
        %v5905 = vsel %vm5900, %v5538, 0.0
        %v5906 = vsel %vm5900, %v5539, 0.0
        %v5907 = vsel %vm5900, %v5540, 0.0
        %v5908 = vsel %vm5900, %v5541, 0.0
        %v5909 = vsel %vm5900, %v5542, 0.0
        %v5910 = vsel %vm5901, %v5543, 0.0
        %v5911 = vsel %vm5901, %v5544, 0.0
        %v5912 = vsel %vm5901, %v5545, 0.0
        %v5913 = vsel %vm5901, %v5546, 0.0
        %v5914 = vsel %vm5901, %v5547, 0.0
        %v5915 = vsel %vm5901, %v5548, 0.0
        %v5916 = vsel %vm5901, %v5549, 0.0
        %v5917 = vsel %vm5901, %v5550, 0.0
        %v5918 = vmax.f32 %v5902, %v5910
        %v5919 = vrot.slane %v5918, 4
        %v5920 = vmax.f32 %v5918, %v5919
        %v5921 = vrot.slane %v5920, 2
        %v5922 = vmax.f32 %v5920, %v5921
        %v5923 = vrot.slane %v5922, 1
        %v5924 = vmax.f32 %v5922, %v5923
        %v5925 = vmax.f32 %v5903, %v5911
        %v5926 = vrot.slane %v5925, 4
        %v5927 = vmax.f32 %v5925, %v5926
        %v5928 = vrot.slane %v5927, 2
        %v5929 = vmax.f32 %v5927, %v5928
        %v5930 = vrot.slane %v5929, 1
        %v5931 = vmax.f32 %v5929, %v5930
        %v5932 = vmax.f32 %v5904, %v5912
        %v5933 = vrot.slane %v5932, 4
        %v5934 = vmax.f32 %v5932, %v5933
        %v5935 = vrot.slane %v5934, 2
        %v5936 = vmax.f32 %v5934, %v5935
        %v5937 = vrot.slane %v5936, 1
        %v5938 = vmax.f32 %v5936, %v5937
        %v5939 = vmax.f32 %v5905, %v5913
        %v5940 = vrot.slane %v5939, 4
        %v5941 = vmax.f32 %v5939, %v5940
        %v5942 = vrot.slane %v5941, 2
        %v5943 = vmax.f32 %v5941, %v5942
        %v5944 = vrot.slane %v5943, 1
        %v5945 = vmax.f32 %v5943, %v5944
        %v5946 = vmax.f32 %v5906, %v5914
        %v5947 = vrot.slane %v5946, 4
        %v5948 = vmax.f32 %v5946, %v5947
        %v5949 = vrot.slane %v5948, 2
        %v5950 = vmax.f32 %v5948, %v5949
        %v5951 = vrot.slane %v5950, 1
        %v5952 = vmax.f32 %v5950, %v5951
        %v5953 = vmax.f32 %v5907, %v5915
        %v5954 = vrot.slane %v5953, 4
        %v5955 = vmax.f32 %v5953, %v5954
        %v5956 = vrot.slane %v5955, 2
        %v5957 = vmax.f32 %v5955, %v5956
        %v5958 = vrot.slane %v5957, 1
        %v5959 = vmax.f32 %v5957, %v5958
        %v5960 = vmax.f32 %v5908, %v5916
        %v5961 = vrot.slane %v5960, 4
        %v5962 = vmax.f32 %v5960, %v5961
        %v5963 = vrot.slane %v5962, 2
        %v5964 = vmax.f32 %v5962, %v5963
        %v5965 = vrot.slane %v5964, 1
        %v5966 = vmax.f32 %v5964, %v5965
        %v5967 = vmax.f32 %v5909, %v5917
        %v5968 = vrot.slane %v5967, 4
        %v5969 = vmax.f32 %v5967, %v5968
        %v5970 = vrot.slane %v5969, 2
        %v5971 = vmax.f32 %v5969, %v5970
        %v5972 = vrot.slane %v5971, 1
        %v5973 = vmax.f32 %v5971, %v5972
        %s5974 = scalar_lea.vmem %s736, 3 [#allocation23]
        %v5975 = vld [vmem:[%s5974] ss:$8 sm:$0xf]
        %v5976 = vld [vmem:[%s5974] ss:$8 sm:$0xf0]
        %v5977 = vor.u32 %v5975, %v5976
        %v5986 = vrot.slane %v5931, 7
        %v5987 = vrot.slane %v5938, 6
        %v5988 = vrot.slane %v5945, 5
        %v5989 = vrot.slane %v5952, 4
        %v5990 = vrot.slane %v5959, 3
        %v5991 = vrot.slane %v5966, 2
        %v5992 = vrot.slane %v5973, 1
        %v5993 = vsel %vm5657, %v5924, %v5986
        %v5994 = vsel %vm5659, %v5987, %v5988
        %v5995 = vsel %vm5661, %v5993, %v5994
        %v5996 = vsel %vm5663, %v5989, %v5990
        %v5997 = vsel %vm5665, %v5991, %v5992
        %v5998 = vsel %vm5667, %v5996, %v5997
        %v5999 = vsel %vm785, %v5995, %v5998
        %v6001 = vmax.f32 %v5977, %v5999
        %6002 = vst [vmem:[%s5974] ss:$8 sm:$0xf] %v6001
        %6003 = vst [vmem:[%s5974] ss:$8 sm:$0xf0] %v6001
        %6004 = vset.pattern.permute.xlu0 4
        %6005 = vperm.xlu0 %6004, %v5557
        %v6006 = vpop.permute.xlu0 %6005
        %6007 = vset.pattern.permute.xlu0 4
        %6008 = vperm.xlu0 %6007, %v5558
        %v6009 = vpop.permute.xlu0 %6008
        %vm6010 = vcmp.eq.s32.totalorder %v6006, 1
        %vm6011 = vcmp.eq.s32.totalorder %v6009, 1
        %v6012 = vsel %vm6010, %v5535, 0.0
        %v6013 = vsel %vm6010, %v5536, 0.0
        %v6014 = vsel %vm6010, %v5537, 0.0
        %v6015 = vsel %vm6010, %v5538, 0.0
        %v6016 = vsel %vm6010, %v5539, 0.0
        %v6017 = vsel %vm6010, %v5540, 0.0
        %v6018 = vsel %vm6010, %v5541, 0.0
        %v6019 = vsel %vm6010, %v5542, 0.0
        %v6020 = vsel %vm6011, %v5543, 0.0
        %v6021 = vsel %vm6011, %v5544, 0.0
        %v6022 = vsel %vm6011, %v5545, 0.0
        %v6023 = vsel %vm6011, %v5546, 0.0
        %v6024 = vsel %vm6011, %v5547, 0.0
        %v6025 = vsel %vm6011, %v5548, 0.0
        %v6026 = vsel %vm6011, %v5549, 0.0
        %v6027 = vsel %vm6011, %v5550, 0.0
        %v6028 = vmax.f32 %v6012, %v6020
        %v6029 = vrot.slane %v6028, 4
        %v6030 = vmax.f32 %v6028, %v6029
        %v6031 = vrot.slane %v6030, 2
        %v6032 = vmax.f32 %v6030, %v6031
        %v6033 = vrot.slane %v6032, 1
        %v6034 = vmax.f32 %v6032, %v6033
        %v6035 = vmax.f32 %v6013, %v6021
        %v6036 = vrot.slane %v6035, 4
        %v6037 = vmax.f32 %v6035, %v6036
        %v6038 = vrot.slane %v6037, 2
        %v6039 = vmax.f32 %v6037, %v6038
        %v6040 = vrot.slane %v6039, 1
        %v6041 = vmax.f32 %v6039, %v6040
        %v6042 = vmax.f32 %v6014, %v6022
        %v6043 = vrot.slane %v6042, 4
        %v6044 = vmax.f32 %v6042, %v6043
        %v6045 = vrot.slane %v6044, 2
        %v6046 = vmax.f32 %v6044, %v6045
        %v6047 = vrot.slane %v6046, 1
        %v6048 = vmax.f32 %v6046, %v6047
        %v6049 = vmax.f32 %v6015, %v6023
        %v6050 = vrot.slane %v6049, 4
        %v6051 = vmax.f32 %v6049, %v6050
        %v6052 = vrot.slane %v6051, 2
        %v6053 = vmax.f32 %v6051, %v6052
        %v6054 = vrot.slane %v6053, 1
        %v6055 = vmax.f32 %v6053, %v6054
        %v6056 = vmax.f32 %v6016, %v6024
        %v6057 = vrot.slane %v6056, 4
        %v6058 = vmax.f32 %v6056, %v6057
        %v6059 = vrot.slane %v6058, 2
        %v6060 = vmax.f32 %v6058, %v6059
        %v6061 = vrot.slane %v6060, 1
        %v6062 = vmax.f32 %v6060, %v6061
        %v6063 = vmax.f32 %v6017, %v6025
        %v6064 = vrot.slane %v6063, 4
        %v6065 = vmax.f32 %v6063, %v6064
        %v6066 = vrot.slane %v6065, 2
        %v6067 = vmax.f32 %v6065, %v6066
        %v6068 = vrot.slane %v6067, 1
        %v6069 = vmax.f32 %v6067, %v6068
        %v6070 = vmax.f32 %v6018, %v6026
        %v6071 = vrot.slane %v6070, 4
        %v6072 = vmax.f32 %v6070, %v6071
        %v6073 = vrot.slane %v6072, 2
        %v6074 = vmax.f32 %v6072, %v6073
        %v6075 = vrot.slane %v6074, 1
        %v6076 = vmax.f32 %v6074, %v6075
        %v6077 = vmax.f32 %v6019, %v6027
        %v6078 = vrot.slane %v6077, 4
        %v6079 = vmax.f32 %v6077, %v6078
        %v6080 = vrot.slane %v6079, 2
        %v6081 = vmax.f32 %v6079, %v6080
        %v6082 = vrot.slane %v6081, 1
        %v6083 = vmax.f32 %v6081, %v6082
        %s6084 = scalar_lea.vmem %s736, 4 [#allocation23]
        %v6085 = vld [vmem:[%s6084] ss:$8 sm:$0xf]
        %v6086 = vld [vmem:[%s6084] ss:$8 sm:$0xf0]
        %v6087 = vor.u32 %v6085, %v6086
        %v6096 = vrot.slane %v6041, 7
        %v6097 = vrot.slane %v6048, 6
        %v6098 = vrot.slane %v6055, 5
        %v6099 = vrot.slane %v6062, 4
        %v6100 = vrot.slane %v6069, 3
        %v6101 = vrot.slane %v6076, 2
        %v6102 = vrot.slane %v6083, 1
        %v6103 = vsel %vm5657, %v6034, %v6096
        %v6104 = vsel %vm5659, %v6097, %v6098
        %v6105 = vsel %vm5661, %v6103, %v6104
        %v6106 = vsel %vm5663, %v6099, %v6100
        %v6107 = vsel %vm5665, %v6101, %v6102
        %v6108 = vsel %vm5667, %v6106, %v6107
        %v6109 = vsel %vm785, %v6105, %v6108
        %v6111 = vmax.f32 %v6087, %v6109
        %6112 = vst [vmem:[%s6084] ss:$8 sm:$0xf] %v6111
        %6113 = vst [vmem:[%s6084] ss:$8 sm:$0xf0] %v6111
        %6114 = vset.pattern.permute.xlu0 5
        %6115 = vperm.xlu0 %6114, %v5557
        %v6116 = vpop.permute.xlu0 %6115
        %6117 = vset.pattern.permute.xlu0 5
        %6118 = vperm.xlu0 %6117, %v5558
        %v6119 = vpop.permute.xlu0 %6118
        %vm6120 = vcmp.eq.s32.totalorder %v6116, 1
        %vm6121 = vcmp.eq.s32.totalorder %v6119, 1
        %v6122 = vsel %vm6120, %v5535, 0.0
        %v6123 = vsel %vm6120, %v5536, 0.0
        %v6124 = vsel %vm6120, %v5537, 0.0
        %v6125 = vsel %vm6120, %v5538, 0.0
        %v6126 = vsel %vm6120, %v5539, 0.0
        %v6127 = vsel %vm6120, %v5540, 0.0
        %v6128 = vsel %vm6120, %v5541, 0.0
        %v6129 = vsel %vm6120, %v5542, 0.0
        %v6130 = vsel %vm6121, %v5543, 0.0
        %v6131 = vsel %vm6121, %v5544, 0.0
        %v6132 = vsel %vm6121, %v5545, 0.0
        %v6133 = vsel %vm6121, %v5546, 0.0
        %v6134 = vsel %vm6121, %v5547, 0.0
        %v6135 = vsel %vm6121, %v5548, 0.0
        %v6136 = vsel %vm6121, %v5549, 0.0
        %v6137 = vsel %vm6121, %v5550, 0.0
        %v6138 = vmax.f32 %v6122, %v6130
        %v6139 = vrot.slane %v6138, 4
        %v6140 = vmax.f32 %v6138, %v6139
        %v6141 = vrot.slane %v6140, 2
        %v6142 = vmax.f32 %v6140, %v6141
        %v6143 = vrot.slane %v6142, 1
        %v6144 = vmax.f32 %v6142, %v6143
        %v6145 = vmax.f32 %v6123, %v6131
        %v6146 = vrot.slane %v6145, 4
        %v6147 = vmax.f32 %v6145, %v6146
        %v6148 = vrot.slane %v6147, 2
        %v6149 = vmax.f32 %v6147, %v6148
        %v6150 = vrot.slane %v6149, 1
        %v6151 = vmax.f32 %v6149, %v6150
        %v6152 = vmax.f32 %v6124, %v6132
        %v6153 = vrot.slane %v6152, 4
        %v6154 = vmax.f32 %v6152, %v6153
        %v6155 = vrot.slane %v6154, 2
        %v6156 = vmax.f32 %v6154, %v6155
        %v6157 = vrot.slane %v6156, 1
        %v6158 = vmax.f32 %v6156, %v6157
        %v6159 = vmax.f32 %v6125, %v6133
        %v6160 = vrot.slane %v6159, 4
        %v6161 = vmax.f32 %v6159, %v6160
        %v6162 = vrot.slane %v6161, 2
        %v6163 = vmax.f32 %v6161, %v6162
        %v6164 = vrot.slane %v6163, 1
        %v6165 = vmax.f32 %v6163, %v6164
        %v6166 = vmax.f32 %v6126, %v6134
        %v6167 = vrot.slane %v6166, 4
        %v6168 = vmax.f32 %v6166, %v6167
        %v6169 = vrot.slane %v6168, 2
        %v6170 = vmax.f32 %v6168, %v6169
        %v6171 = vrot.slane %v6170, 1
        %v6172 = vmax.f32 %v6170, %v6171
        %v6173 = vmax.f32 %v6127, %v6135
        %v6174 = vrot.slane %v6173, 4
        %v6175 = vmax.f32 %v6173, %v6174
        %v6176 = vrot.slane %v6175, 2
        %v6177 = vmax.f32 %v6175, %v6176
        %v6178 = vrot.slane %v6177, 1
        %v6179 = vmax.f32 %v6177, %v6178
        %v6180 = vmax.f32 %v6128, %v6136
        %v6181 = vrot.slane %v6180, 4
        %v6182 = vmax.f32 %v6180, %v6181
        %v6183 = vrot.slane %v6182, 2
        %v6184 = vmax.f32 %v6182, %v6183
        %v6185 = vrot.slane %v6184, 1
        %v6186 = vmax.f32 %v6184, %v6185
        %v6187 = vmax.f32 %v6129, %v6137
        %v6188 = vrot.slane %v6187, 4
        %v6189 = vmax.f32 %v6187, %v6188
        %v6190 = vrot.slane %v6189, 2
        %v6191 = vmax.f32 %v6189, %v6190
        %v6192 = vrot.slane %v6191, 1
        %v6193 = vmax.f32 %v6191, %v6192
        %s6194 = scalar_lea.vmem %s736, 5 [#allocation23]
        %v6195 = vld [vmem:[%s6194] ss:$8 sm:$0xf]
        %v6196 = vld [vmem:[%s6194] ss:$8 sm:$0xf0]
        %v6197 = vor.u32 %v6195, %v6196
        %v6206 = vrot.slane %v6151, 7
        %v6207 = vrot.slane %v6158, 6
        %v6208 = vrot.slane %v6165, 5
        %v6209 = vrot.slane %v6172, 4
        %v6210 = vrot.slane %v6179, 3
        %v6211 = vrot.slane %v6186, 2
        %v6212 = vrot.slane %v6193, 1
        %v6213 = vsel %vm5657, %v6144, %v6206
        %v6214 = vsel %vm5659, %v6207, %v6208
        %v6215 = vsel %vm5661, %v6213, %v6214
        %v6216 = vsel %vm5663, %v6209, %v6210
        %v6217 = vsel %vm5665, %v6211, %v6212
        %v6218 = vsel %vm5667, %v6216, %v6217
        %v6219 = vsel %vm785, %v6215, %v6218
        %v6221 = vmax.f32 %v6197, %v6219
        %6222 = vst [vmem:[%s6194] ss:$8 sm:$0xf] %v6221
        %6223 = vst [vmem:[%s6194] ss:$8 sm:$0xf0] %v6221
        %6224 = vset.pattern.permute.xlu0 6
        %6225 = vperm.xlu0 %6224, %v5557
        %v6226 = vpop.permute.xlu0 %6225
        %6227 = vset.pattern.permute.xlu0 6
        %6228 = vperm.xlu0 %6227, %v5558
        %v6229 = vpop.permute.xlu0 %6228
        %vm6230 = vcmp.eq.s32.totalorder %v6226, 1
        %vm6231 = vcmp.eq.s32.totalorder %v6229, 1
        %v6232 = vsel %vm6230, %v5535, 0.0
        %v6233 = vsel %vm6230, %v5536, 0.0
        %v6234 = vsel %vm6230, %v5537, 0.0
        %v6235 = vsel %vm6230, %v5538, 0.0
        %v6236 = vsel %vm6230, %v5539, 0.0
        %v6237 = vsel %vm6230, %v5540, 0.0
        %v6238 = vsel %vm6230, %v5541, 0.0
        %v6239 = vsel %vm6230, %v5542, 0.0
        %v6240 = vsel %vm6231, %v5543, 0.0
        %v6241 = vsel %vm6231, %v5544, 0.0
        %v6242 = vsel %vm6231, %v5545, 0.0
        %v6243 = vsel %vm6231, %v5546, 0.0
        %v6244 = vsel %vm6231, %v5547, 0.0
        %v6245 = vsel %vm6231, %v5548, 0.0
        %v6246 = vsel %vm6231, %v5549, 0.0
        %v6247 = vsel %vm6231, %v5550, 0.0
        %v6248 = vmax.f32 %v6232, %v6240
        %v6249 = vrot.slane %v6248, 4
        %v6250 = vmax.f32 %v6248, %v6249
        %v6251 = vrot.slane %v6250, 2
        %v6252 = vmax.f32 %v6250, %v6251
        %v6253 = vrot.slane %v6252, 1
        %v6254 = vmax.f32 %v6252, %v6253
        %v6255 = vmax.f32 %v6233, %v6241
        %v6256 = vrot.slane %v6255, 4
        %v6257 = vmax.f32 %v6255, %v6256
        %v6258 = vrot.slane %v6257, 2
        %v6259 = vmax.f32 %v6257, %v6258
        %v6260 = vrot.slane %v6259, 1
        %v6261 = vmax.f32 %v6259, %v6260
        %v6262 = vmax.f32 %v6234, %v6242
        %v6263 = vrot.slane %v6262, 4
        %v6264 = vmax.f32 %v6262, %v6263
        %v6265 = vrot.slane %v6264, 2
        %v6266 = vmax.f32 %v6264, %v6265
        %v6267 = vrot.slane %v6266, 1
        %v6268 = vmax.f32 %v6266, %v6267
        %v6269 = vmax.f32 %v6235, %v6243
        %v6270 = vrot.slane %v6269, 4
        %v6271 = vmax.f32 %v6269, %v6270
        %v6272 = vrot.slane %v6271, 2
        %v6273 = vmax.f32 %v6271, %v6272
        %v6274 = vrot.slane %v6273, 1
        %v6275 = vmax.f32 %v6273, %v6274
        %v6276 = vmax.f32 %v6236, %v6244
        %v6277 = vrot.slane %v6276, 4
        %v6278 = vmax.f32 %v6276, %v6277
        %v6279 = vrot.slane %v6278, 2
        %v6280 = vmax.f32 %v6278, %v6279
        %v6281 = vrot.slane %v6280, 1
        %v6282 = vmax.f32 %v6280, %v6281
        %v6283 = vmax.f32 %v6237, %v6245
        %v6284 = vrot.slane %v6283, 4
        %v6285 = vmax.f32 %v6283, %v6284
        %v6286 = vrot.slane %v6285, 2
        %v6287 = vmax.f32 %v6285, %v6286
        %v6288 = vrot.slane %v6287, 1
        %v6289 = vmax.f32 %v6287, %v6288
        %v6290 = vmax.f32 %v6238, %v6246
        %v6291 = vrot.slane %v6290, 4
        %v6292 = vmax.f32 %v6290, %v6291
        %v6293 = vrot.slane %v6292, 2
        %v6294 = vmax.f32 %v6292, %v6293
        %v6295 = vrot.slane %v6294, 1
        %v6296 = vmax.f32 %v6294, %v6295
        %v6297 = vmax.f32 %v6239, %v6247
        %v6298 = vrot.slane %v6297, 4
        %v6299 = vmax.f32 %v6297, %v6298
        %v6300 = vrot.slane %v6299, 2
        %v6301 = vmax.f32 %v6299, %v6300
        %v6302 = vrot.slane %v6301, 1
        %v6303 = vmax.f32 %v6301, %v6302
        %s6304 = scalar_lea.vmem %s736, 6 [#allocation23]
        %v6305 = vld [vmem:[%s6304] ss:$8 sm:$0xf]
        %v6306 = vld [vmem:[%s6304] ss:$8 sm:$0xf0]
        %v6307 = vor.u32 %v6305, %v6306
        %v6316 = vrot.slane %v6261, 7
        %v6317 = vrot.slane %v6268, 6
        %v6318 = vrot.slane %v6275, 5
        %v6319 = vrot.slane %v6282, 4
        %v6320 = vrot.slane %v6289, 3
        %v6321 = vrot.slane %v6296, 2
        %v6322 = vrot.slane %v6303, 1
        %v6323 = vsel %vm5657, %v6254, %v6316
        %v6324 = vsel %vm5659, %v6317, %v6318
        %v6325 = vsel %vm5661, %v6323, %v6324
        %v6326 = vsel %vm5663, %v6319, %v6320
        %v6327 = vsel %vm5665, %v6321, %v6322
        %v6328 = vsel %vm5667, %v6326, %v6327
        %v6329 = vsel %vm785, %v6325, %v6328
        %v6331 = vmax.f32 %v6307, %v6329
        %6332 = vst [vmem:[%s6304] ss:$8 sm:$0xf] %v6331
        %6333 = vst [vmem:[%s6304] ss:$8 sm:$0xf0] %v6331
        %6334 = vset.pattern.permute.xlu0 7
        %6335 = vperm.xlu0 %6334, %v5557
        %v6336 = vpop.permute.xlu0 %6335
        %6337 = vset.pattern.permute.xlu0 7
        %6338 = vperm.xlu0 %6337, %v5558
        %v6339 = vpop.permute.xlu0 %6338
        %vm6340 = vcmp.eq.s32.totalorder %v6336, 1
        %vm6341 = vcmp.eq.s32.totalorder %v6339, 1
        %v6342 = vsel %vm6340, %v5535, 0.0
        %v6343 = vsel %vm6340, %v5536, 0.0
        %v6344 = vsel %vm6340, %v5537, 0.0
        %v6345 = vsel %vm6340, %v5538, 0.0
        %v6346 = vsel %vm6340, %v5539, 0.0
        %v6347 = vsel %vm6340, %v5540, 0.0
        %v6348 = vsel %vm6340, %v5541, 0.0
        %v6349 = vsel %vm6340, %v5542, 0.0
        %v6350 = vsel %vm6341, %v5543, 0.0
        %v6351 = vsel %vm6341, %v5544, 0.0
        %v6352 = vsel %vm6341, %v5545, 0.0
        %v6353 = vsel %vm6341, %v5546, 0.0
        %v6354 = vsel %vm6341, %v5547, 0.0
        %v6355 = vsel %vm6341, %v5548, 0.0
        %v6356 = vsel %vm6341, %v5549, 0.0
        %v6357 = vsel %vm6341, %v5550, 0.0
        %v6358 = vmax.f32 %v6342, %v6350
        %v6359 = vrot.slane %v6358, 4
        %v6360 = vmax.f32 %v6358, %v6359
        %v6361 = vrot.slane %v6360, 2
        %v6362 = vmax.f32 %v6360, %v6361
        %v6363 = vrot.slane %v6362, 1
        %v6364 = vmax.f32 %v6362, %v6363
        %v6365 = vmax.f32 %v6343, %v6351
        %v6366 = vrot.slane %v6365, 4
        %v6367 = vmax.f32 %v6365, %v6366
        %v6368 = vrot.slane %v6367, 2
        %v6369 = vmax.f32 %v6367, %v6368
        %v6370 = vrot.slane %v6369, 1
        %v6371 = vmax.f32 %v6369, %v6370
        %v6372 = vmax.f32 %v6344, %v6352
        %v6373 = vrot.slane %v6372, 4
        %v6374 = vmax.f32 %v6372, %v6373
        %v6375 = vrot.slane %v6374, 2
        %v6376 = vmax.f32 %v6374, %v6375
        %v6377 = vrot.slane %v6376, 1
        %v6378 = vmax.f32 %v6376, %v6377
        %v6379 = vmax.f32 %v6345, %v6353
        %v6380 = vrot.slane %v6379, 4
        %v6381 = vmax.f32 %v6379, %v6380
        %v6382 = vrot.slane %v6381, 2
        %v6383 = vmax.f32 %v6381, %v6382
        %v6384 = vrot.slane %v6383, 1
        %v6385 = vmax.f32 %v6383, %v6384
        %v6386 = vmax.f32 %v6346, %v6354
        %v6387 = vrot.slane %v6386, 4
        %v6388 = vmax.f32 %v6386, %v6387
        %v6389 = vrot.slane %v6388, 2
        %v6390 = vmax.f32 %v6388, %v6389
        %v6391 = vrot.slane %v6390, 1
        %v6392 = vmax.f32 %v6390, %v6391
        %v6393 = vmax.f32 %v6347, %v6355
        %v6394 = vrot.slane %v6393, 4
        %v6395 = vmax.f32 %v6393, %v6394
        %v6396 = vrot.slane %v6395, 2
        %v6397 = vmax.f32 %v6395, %v6396
        %v6398 = vrot.slane %v6397, 1
        %v6399 = vmax.f32 %v6397, %v6398
        %v6400 = vmax.f32 %v6348, %v6356
        %v6401 = vrot.slane %v6400, 4
        %v6402 = vmax.f32 %v6400, %v6401
        %v6403 = vrot.slane %v6402, 2
        %v6404 = vmax.f32 %v6402, %v6403
        %v6405 = vrot.slane %v6404, 1
        %v6406 = vmax.f32 %v6404, %v6405
        %v6407 = vmax.f32 %v6349, %v6357
        %v6408 = vrot.slane %v6407, 4
        %v6409 = vmax.f32 %v6407, %v6408
        %v6410 = vrot.slane %v6409, 2
        %v6411 = vmax.f32 %v6409, %v6410
        %v6412 = vrot.slane %v6411, 1
        %v6413 = vmax.f32 %v6411, %v6412
        %s6414 = scalar_lea.vmem %s736, 7 [#allocation23]
        %v6415 = vld [vmem:[%s6414] ss:$8 sm:$0xf]
        %v6416 = vld [vmem:[%s6414] ss:$8 sm:$0xf0]
        %v6417 = vor.u32 %v6415, %v6416
        %v6426 = vrot.slane %v6371, 7
        %v6427 = vrot.slane %v6378, 6
        %v6428 = vrot.slane %v6385, 5
        %v6429 = vrot.slane %v6392, 4
        %v6430 = vrot.slane %v6399, 3
        %v6431 = vrot.slane %v6406, 2
        %v6432 = vrot.slane %v6413, 1
        %v6433 = vsel %vm5657, %v6364, %v6426
        %v6434 = vsel %vm5659, %v6427, %v6428
        %v6435 = vsel %vm5661, %v6433, %v6434
        %v6436 = vsel %vm5663, %v6429, %v6430
        %v6437 = vsel %vm5665, %v6431, %v6432
        %v6438 = vsel %vm5667, %v6436, %v6437
        %v6439 = vsel %vm785, %v6435, %v6438
        %v6441 = vmax.f32 %v6417, %v6439
        %6442 = vst [vmem:[%s6414] ss:$8 sm:$0xf] %v6441
        %6443 = vst [vmem:[%s6414] ss:$8 sm:$0xf0] %v6441
        %s6444 = sand.u32 %s376, 1
        %s6445 = scalar_lea.sflag [#allocation4], %s6444
        %s6446 = sand.u32 %s376, 1
        %s6447 = smul.addr %s6446, 8
        %s6448 = scalar_lea.vmem [#allocation22], %s6447
        %s6449 = sand.u32 %s402, 1
        %s6450 = scalar_lea.sflag [#allocation24], %s6449
        %s6451 = sand.u32 %s402, 1
        %s6452 = smul.addr %s6451, 64
        %s6453 = scalar_lea.vmem [#allocation23], %s6452
        // Predicated region
        $region129: #{tpu_custom_call.1} parent=75 // pred_check
          %p6454 = pneg %p386
        $region130: #{tpu_custom_call.1} parent=75 // pred_check_branch
          %6456 = sbr.rel (%p6454) target = $region132
        $region131: #{tpu_custom_call.1} parent=75 // pred_region
          %s6457 = smul.u32 %s44, 2
          %s6458 = sadd.s32 %s6457, %s45
          %s6459 = smul.u32 2, %s6458
          %6461 = vsyncadd %s6445, 0
          %s6462 = smul.addr %s6459, 4
          %s6463 = scalar_lea.hbm %s14, %s6462
          %s6464 = sshll.u32 %s6448, 4
          %s6465 = int_to_ptr.vmem [resolvable:$true] %s6464
          %s6466 = sshll.u32 %s6463, 4
          %s6467 = int_to_ptr.hbm [resolvable:$true] %s6466
          %6472 = dma.vmem_to_hbm [thread:$0]  %s6465, 128, %s6467, %s6445, 64, 64, 4
        $region132: #{tpu_custom_call.1} parent=75 // pred_fallthru
          _
        // Predicated region
        $region133: #{tpu_custom_call.1} parent=75 // pred_check
          %p6473 = pneg %p412
        $region134: #{tpu_custom_call.1} parent=75 // pred_check_branch
          %6475 = sbr.rel (%p6473) target = $region136
        $region135: #{tpu_custom_call.1} parent=75 // pred_region
          %6477 = vsyncadd %s6450, 0
          %s6478 = smul.addr %s44, 8
          %s6479 = smul.addr %s6478, 8
          %s6480 = scalar_lea.hbm %s15, %s6479
          %s6482 = sshll.u32 %s6453, 4
          %s6483 = int_to_ptr.vmem [resolvable:$true] %s6482
          %s6484 = sshll.u32 %s6480, 4
          %s6485 = int_to_ptr.hbm [resolvable:$true] %s6484
          %6487 = dma.vmem_to_hbm [thread:$0]  %s6483, 1024, %s6485, %s6450
        $region136: #{tpu_custom_call.1} parent=75 // pred_fallthru
          _
      $region76: #{tpu_custom_call.1} parent=5 // pred_fallthru
        _
      %p6488 = scmp.le.s32.totalorder 2, %s35
      // Predicated region
      $region137: #{tpu_custom_call.1} parent=5 // pred_check
        %p6489 = pneg %p6488
      $region138: #{tpu_custom_call.1} parent=5 // pred_check_branch
        %6491 = sbr.rel (%p6489) target = $region140
      $region139: #{tpu_custom_call.1} parent=5 // pred_region
        %s6492 = ssub.s32 %s35, 2
        // Predicated region
        $region141: #{tpu_custom_call.1} parent=139 // pred_check
          %p6493 = pneg %p392
        $region142: #{tpu_custom_call.1} parent=139 // pred_check_branch
          %6495 = sbr.rel (%p6493) target = $region144
        $region143: #{tpu_custom_call.1} parent=139 // pred_region
          %s6496 = sand.u32 %s377, 1
          %s6497 = scalar_lea.sflag [#allocation4], %s6496
          %s6498 = sand.u32 %s377, 1
          %s6499 = smul.addr %s6498, 8
          %s6500 = scalar_lea.vmem [#allocation22], %s6499
          %6502 = dma.done %s6497, 128
        $region144: #{tpu_custom_call.1} parent=139 // pred_fallthru
          _
        // Predicated region
        $region145: #{tpu_custom_call.1} parent=139 // pred_check
          %p6503 = pneg %p418
        $region146: #{tpu_custom_call.1} parent=139 // pred_check_branch
          %6505 = sbr.rel (%p6503) target = $region148
        $region147: #{tpu_custom_call.1} parent=139 // pred_region
          %s6506 = sand.u32 %s403, 1
          %s6507 = scalar_lea.sflag [#allocation24], %s6506
          %s6508 = sand.u32 %s403, 1
          %s6509 = smul.addr %s6508, 64
          %s6510 = scalar_lea.vmem [#allocation23], %s6509
          %6512 = dma.done %s6507, 1024
        $region148: #{tpu_custom_call.1} parent=139 // pred_fallthru
          _
      $region140: #{tpu_custom_call.1} parent=5 // pred_fallthru
        _
    $region6: #{tpu_custom_call.1} parent=1 // loop_footer
      %s39 = sadd.s32 1, %s35
    $region7: #{tpu_custom_call.1} parent=1 // loop_footer_branch
      %34 = sbr.rel target = $region3
    $region8: #{tpu_custom_call.1} parent=1 // loop_exit
      _
    %6513 = vsyncpa [#allocation3], 1
    %s6514 = scalar_lea.sflag [#allocation3], 1
    %6515 = vsyncpa %s6514, 1
    %6516 = vsyncpa [#allocation6], 1
    %6517 = vsyncpa [#allocation9], 1
    %6518 = vsyncpa [#allocation12], 1
    %6519 = vsyncpa [#allocation15], 1
    %6520 = vsyncpa [#allocation18], 1
    %6521 = vsyncpa [#allocation21], 1
    %6522 = vsyncpa [#allocation4], 1
    %s6523 = scalar_lea.sflag [#allocation4], 1
    %6524 = vsyncpa %s6523, 1
    %6525 = vsyncpa [#allocation24], 1
    %s6526 = scalar_lea.sflag [#allocation24], 1
    %6527 = vsyncpa %s6526, 1

</llo_original>
